<compile_context>
chip_gen: v7x
topology: tpu7x:2x2x1
jax: 0.10.0
libtpu: 0.0.40
codegen_flags: <defaults>
</compile_context>

<pallas_src>
import jax
import jax.numpy as jnp
from jax import lax
from jax.experimental import pallas as pl
from jax.experimental.pallas import tpu as pltpu

LEAKY_SLOPE = 0.2
BN_EPS = 1e-5
_TILE_BYTES = 2 * 1024 * 1024        # per-input row-block byte budget
_MAX_TILE_ROWS = 512


def _vmem_limit_bytes():
    # ~96 MiB on v5e/v6e (128 MiB physical), ~48 MiB on v7x (64 MiB physical).
    try:
        phys = int(pltpu.get_tpu_info().vmem_capacity_bytes)
        return min(phys * 3 // 4, 96 * 1024 * 1024)
    except Exception:
        return 32 * 1024 * 1024


_VMEM_LIMIT = _vmem_limit_bytes()


def _row_tile(nrows, bytes_per_row):
    """Largest divisor of nrows whose input block fits the byte budget."""
    cap = max(1, min(nrows, _MAX_TILE_ROWS,
                     _TILE_BYTES // max(bytes_per_row, 1)))
    best = 1
    for d in range(1, cap + 1):
        if nrows % d == 0:
            best = d
    return best


# ---------------------------------------------------------------------------
# Kernel 1: LeakyReLU(0.2) -> Conv2d(k=4, s=2, p=1, bias=False) -> ReLU
# on a space-to-depth relayout of the zero-padded input (k=2/s=1 form),
# computed as 4 per-tap matmuls accumulated in f32 (no im2col patch).
# ---------------------------------------------------------------------------
def _down_kernel(xa_ref, xb_ref, w_ref, o_ref):
    # xa: (1, TR, Ws, 4*Cin) rows [i*TR, i*TR+TR) of x_s2d
    # xb: (1, 1,  Ws, 4*Cin) halo row i*TR+TR
    # w : (4, 4*Cin, Cout) bf16, tap index = a*2 + b
    tr = xa_ref.shape[1]
    ws = xa_ref.shape[2]
    wo = ws - 1
    cout = o_ref.shape[-1]

    rows = jnp.concatenate([xa_ref[0], xb_ref[0]], axis=0)        # (TR+1, Ws, 4C)
    rows = jnp.where(rows >= 0, rows, LEAKY_SLOPE * rows)         # fused LeakyReLU
    rows = rows.astype(jnp.bfloat16)                              # bf16 MXU operand

    acc = jnp.zeros((tr * wo, cout), jnp.float32)
    for a in (0, 1):
        for b in (0, 1):
            tap = rows[a:a + tr, b:b + wo, :].reshape(tr * wo, -1)
            acc = acc + jnp.dot(tap, w_ref[a * 2 + b],
                                preferred_element_type=jnp.float32)
    acc = jnp.maximum(acc, 0.0)                                   # fused ReLU
    o_ref[...] = acc.reshape(1, tr, wo, cout).astype(o_ref.dtype)


def down_block(x, w_pt):
    """x: (N,H,W,Cin) f32, w_pt: PyTorch Conv2d weight (Cout, Cin, 4, 4)."""
    n, h, w, cin = x.shape
    cout = w_pt.shape[0]
    assert h % 2 == 0 and w % 2 == 0
    ho, wo = h // 2, w // 2
    hs, ws = ho + 1, wo + 1

    # space-to-depth of the zero-padded input, channel order (di, dj, ci):
    #   x_s2d[n, i, j, (di,dj,ci)] = xpad[n, 2i+di, 2j+dj, ci]
    xpad = jnp.pad(x, ((0, 0), (1, 1), (1, 1), (0, 0)))
    x_s2d = xpad.reshape(n, hs, 2, ws, 2, cin).transpose(0, 1, 3, 2, 4, 5)
    x_s2d = x_s2d.reshape(n, hs, ws, 4 * cin)

    # per-tap weights: index (a, b), rows ordered (di, dj, ci).
    w_hwio = jnp.transpose(w_pt, (2, 3, 1, 0))                    # (kh, kw, ci, co)
    w_tap = w_hwio.reshape(2, 2, 2, 2, cin, cout).transpose(0, 2, 1, 3, 4, 5)
    w_tap = w_tap.reshape(4, 4 * cin, cout).astype(jnp.bfloat16)

    tr = _row_tile(ho, ws * 4 * cin * 4)
    cost = pl.CostEstimate(
        flops=2 * n * ho * wo * 16 * cin * cout, transcendentals=0,
        bytes_accessed=int(x_s2d.size * 4 + w_tap.size * 2
                           + n * ho * wo * cout * 4))
    return pl.pallas_call(
        _down_kernel,
        out_shape=jax.ShapeDtypeStruct((n, ho, wo, cout), jnp.float32),
        grid=(n, ho // tr),
        in_specs=[
            pl.BlockSpec((1, tr, ws, 4 * cin), lambda b, i: (b, i, 0, 0)),
            pl.BlockSpec((1, 1, ws, 4 * cin), lambda b, i: (b, i * tr + tr, 0, 0)),
            pl.BlockSpec((4, 4 * cin, cout), lambda b, i: (0, 0, 0)),
        ],
        out_specs=pl.BlockSpec((1, tr, wo, cout), lambda b, i: (b, i, 0, 0)),
        compiler_params=pltpu.CompilerParams(
            dimension_semantics=("parallel", "parallel"),
            vmem_limit_bytes=_VMEM_LIMIT),
        cost_estimate=cost,
    )(x_s2d, x_s2d, w_tap)


# ---------------------------------------------------------------------------
# Kernel 2: ConvTranspose2d(k=4, s=2, p=1, bias=False) as 4 phases x 4 taps of
# k=2/s=1 matmuls on the zero-padded input, with the depth-to-space layout
# emitted directly from the kernel and BatchNorm batch statistics fused into
# per-batch accumulator outputs.
#   out[b, 2m+pi, 2w+pj, co] = sum_{a,c,ci} xpad[b, m+pi+a, w+pj+c, ci]
#                                           * w_pt[ci, co, 3-pi-2a, 3-pj-2c]
# ---------------------------------------------------------------------------
def _up_kernel(x0_ref, x1_ref, x2_ref, w_ref, y_ref, s_ref, q_ref):
    # x0: (1, TR, Wp, C2) rows [i*TR, i*TR+TR) of xpad
    # x1: (1, 1,  Wp, C2) halo row i*TR+TR
    # x2: (1, 1,  Wp, C2) halo row i*TR+TR+1
    # w : (16, C2, Cout) bf16, index = (pi*2+pj)*4 + a*2 + b
    # y : (1, TR, 2, Wi, 2*Cout) f32 (depth-to-space layout, free reshape later)
    # s,q: (1, 1, Cout) per-batch BN statistic accumulators
    @pl.when(pl.program_id(1) == 0)
    def _init():
        s_ref[...] = jnp.zeros_like(s_ref)
        q_ref[...] = jnp.zeros_like(q_ref)

    tr = x0_ref.shape[1]
    wp = x0_ref.shape[2]
    wi = wp - 2
    cout = s_ref.shape[-1]

    rows = jnp.concatenate([x0_ref[0], x1_ref[0], x2_ref[0]], axis=0)
    rows = rows.astype(jnp.bfloat16)                              # bf16 MXU operand

    s_acc = jnp.zeros((1, 1, cout), jnp.float32)
    q_acc = jnp.zeros((1, 1, cout), jnp.float32)
    phase = []
    for pi in (0, 1):
        for pj in (0, 1):
            acc = jnp.zeros((tr * wi, cout), jnp.float32)
            for a in (0, 1):
                for b in (0, 1):
                    tap = rows[pi + a:pi + a + tr, pj + b:pj + b + wi, :]
                    acc = acc + jnp.dot(tap.reshape(tr * wi, -1),
                                        w_ref[(pi * 2 + pj) * 4 + a * 2 + b],
                                        preferred_element_type=jnp.float32)
            s_acc = s_acc + jnp.sum(acc, axis=0).reshape(1, 1, cout)
            q_acc = q_acc + jnp.sum(acc * acc, axis=0).reshape(1, 1, cout)
            phase.append(acc.reshape(tr, wi, cout))
    s_ref[...] += s_acc                                           # fused BN stats
    q_ref[...] += q_acc

    # depth-to-space emitted in-kernel: (pj, co) packed on lanes, pi as a
    # separate axis of size 2 -> out block (1, TR, 2, Wi, 2*Cout).
    even = jnp.concatenate([phase[0], phase[1]], axis=-1)         # pi = 0
    odd = jnp.concatenate([phase[2], phase[3]], axis=-1)          # pi = 1
    y = jnp.stack([even, odd], axis=1)                            # (TR, 2, Wi, 2*Cout)
    y_ref[...] = y[None].astype(y_ref.dtype)


def up_block(xc, w_pt):
    """xc: (N,Hi,Wi,C2) f32, w_pt: PyTorch ConvTranspose2d weight (C2,Cout,4,4)."""
    n, hi, wi, c2 = xc.shape
    cout = w_pt.shape[1]
    xpad = jnp.pad(xc, ((0, 0), (1, 1), (1, 1), (0, 0)))          # (N, Hi+2, Wi+2, C2)
    wp = wi + 2

    # per-(phase, tap) weights: (16, C2, Cout)
    w_list = []
    for pi in (0, 1):
        for pj in (0, 1):
            for a in (0, 1):
                for b in (0, 1):
                    w_list.append(w_pt[:, :, 3 - pi - 2 * a, 3 - pj - 2 * b])
    w_ph = jnp.stack(w_list, axis=0).astype(jnp.bfloat16)

    tr = _row_tile(hi, wp * c2 * 4)
    cost = pl.CostEstimate(
        flops=2 * n * hi * wi * 16 * c2 * cout, transcendentals=0,
        bytes_accessed=int(xpad.size * 4 + w_ph.size * 2
                           + n * hi * wi * 4 * cout * 4))
    y5, s, q = pl.pallas_call(
        _up_kernel,
        out_shape=(jax.ShapeDtypeStruct((n, hi, 2, wi, 2 * cout), jnp.float32),
                   jax.ShapeDtypeStruct((n, 1, cout), jnp.float32),
                   jax.ShapeDtypeStruct((n, 1, cout), jnp.float32)),
        grid=(n, hi // tr),
        in_specs=[
            pl.BlockSpec((1, tr, wp, c2), lambda b, i: (b, i, 0, 0)),
            pl.BlockSpec((1, 1, wp, c2), lambda b, i: (b, i * tr + tr, 0, 0)),
            pl.BlockSpec((1, 1, wp, c2), lambda b, i: (b, i * tr + tr + 1, 0, 0)),
            pl.BlockSpec((16, c2, cout), lambda b, i: (0, 0, 0)),
        ],
        out_specs=(
            pl.BlockSpec((1, tr, 2, wi, 2 * cout),
                         lambda b, i: (b, i, 0, 0, 0)),
            pl.BlockSpec((1, 1, cout), lambda b, i: (b, 0, 0)),
            pl.BlockSpec((1, 1, cout), lambda b, i: (b, 0, 0)),
        ),
        compiler_params=pltpu.CompilerParams(
            # batch axis parallel (v7x megacore); per-batch s/q accumulators
            # make this race-free.  Row axis carries the accumulation.
            dimension_semantics=("parallel", "arbitrary"),
            vmem_limit_bytes=_VMEM_LIMIT),
        cost_estimate=cost,
    )(xpad, xpad, xpad, w_ph)
    return y5, s, q


# ---------------------------------------------------------------------------
# Kernel 3 (finalize): BatchNorm affine + skip concat in one streaming pass.
# ---------------------------------------------------------------------------
def _finalize_kernel(x_ref, y_ref, sc_ref, sh_ref, o_ref):
    y = y_ref[0] * sc_ref[...] + sh_ref[...]
    o_ref[...] = jnp.concatenate([x_ref[0], y], axis=-1)[None].astype(o_ref.dtype)


def finalize_concat(x, y, scale, shift):
    """x: (N,H,W,Cx), y: (N,H,W,Cout) raw ConvT output -> (N,H,W,Cx+Cout)."""
    n, h, w, cx = x.shape
    cout = y.shape[-1]
    tr = _row_tile(h, w * (cx + 2 * cout) * 4)
    return pl.pallas_call(
        _finalize_kernel,
        out_shape=jax.ShapeDtypeStruct((n, h, w, cx + cout), jnp.float32),
        grid=(n, h // tr),
        in_specs=[
            pl.BlockSpec((1, tr, w, cx), lambda b, i: (b, i, 0, 0)),
            pl.BlockSpec((1, tr, w, cout), lambda b, i: (b, i, 0, 0)),
            pl.BlockSpec((1, cout), lambda b, i: (0, 0)),
            pl.BlockSpec((1, cout), lambda b, i: (0, 0)),
        ],
        out_specs=pl.BlockSpec((1, tr, w, cx + cout), lambda b, i: (b, i, 0, 0)),
        compiler_params=pltpu.CompilerParams(
            dimension_semantics=("parallel", "parallel"),
            vmem_limit_bytes=_VMEM_LIMIT),
    )(x, y, scale.reshape(1, cout), shift.reshape(1, cout))


# ---------------------------------------------------------------------------
# Forward of UnetSkipConnectionBlock(innermost=True, norm=BatchNorm2d).
# ---------------------------------------------------------------------------
def unet_innermost_forward(x_nchw, params):
    """Returns (cat([x, x_new], channel), xc) -- xc is the bottleneck activation
    the PyTorch module stores as `self.model.fc`."""
    x = jnp.transpose(x_nchw, (0, 2, 3, 1)).astype(jnp.float32)   # NHWC
    n, h, w, _ = x.shape
    cout = params["w_up"].shape[1]                                # outer_nc

    # down: LeakyReLU -> Conv(k4,s2,p1) -> ReLU (single fused kernel)
    xc = down_block(x, params["w_down"])                          # (N, H/2, W/2, inner)

    # up: ConvTranspose(k4,s2,p1) with fused BN batch statistics; the kernel
    # already emits the depth-to-space layout, so this reshape is free.
    y5, s, q = up_block(xc, params["w_up"])
    y = y5.reshape(n, h, w, cout)

    # BatchNorm2d, training-mode batch statistics (biased variance, as PyTorch).
    # TODO(synk): E[x^2]-E[x]^2 can lose precision vs Welford for huge activations.
    cnt = jnp.float32(n * h * w)
    s_c = jnp.sum(s, axis=(0, 1))
    q_c = jnp.sum(q, axis=(0, 1))
    mean = s_c / cnt
    var = jnp.maximum(q_c / cnt - mean * mean, 0.0)
    inv = lax.rsqrt(var + BN_EPS)
    scale = params["gamma"] * inv
    shift = params["beta"] - mean * scale

    # finalize: BN affine + skip concat fused, then back to NCHW.
    out = finalize_concat(x, y, scale, shift)                     # (N, H, W, Cx+Cout)
    return (jnp.transpose(out, (0, 3, 1, 2)),
            jnp.transpose(xc, (0, 3, 1, 2)))


# ---------------------------------------------------------------------------
# Pure-XLA reference of the same forward (f32) for a numerics check.
# ---------------------------------------------------------------------------
def _reference_forward(x_nchw, params):
    x = jnp.transpose(x_nchw, (0, 2, 3, 1)).astype(jnp.float32)
    h = jnp.where(x >= 0, x, LEAKY_SLOPE * x)
    w_hwio = jnp.transpose(params["w_down"], (2, 3, 1, 0))
    xc = lax.conv_general_dilated(h, w_hwio, (2, 2), ((1, 1), (1, 1)),
                                  dimension_numbers=("NHWC", "HWIO", "NHWC"))
    xc = jnp.maximum(xc, 0.0)
    wt = jnp.transpose(params["w_up"], (2, 3, 0, 1))[::-1, ::-1]   # flip kh, kw
    y = lax.conv_general_dilated(xc, wt, (1, 1), ((2, 2), (2, 2)),
                                 lhs_dilation=(2, 2),
                                 dimension_numbers=("NHWC", "HWIO", "NHWC"))
    mean = jnp.mean(y, axis=(0, 1, 2))
    var = jnp.var(y, axis=(0, 1, 2))
    y = (y - mean) * lax.rsqrt(var + BN_EPS) * params["gamma"] + params["beta"]
    out = jnp.concatenate([x, y], axis=-1)
    return jnp.transpose(out, (0, 3, 1, 2))


if __name__ == "__main__":
    key = jax.random.PRNGKey(0)
    kx, kd, ku, kg, kb = jax.random.split(key, 5)

    outer_nc, inner_nc = 4, 8       # input_nc defaults to outer_nc in the module
    N, H, W = 2, 16, 16
    x = jax.random.normal(kx, (N, outer_nc, H, W), jnp.float32)   # NCHW input

    params = dict(
        # PyTorch Conv2d weight layout (Cout, Cin, kh, kw)
        w_down=0.05 * jax.random.normal(kd, (inner_nc, outer_nc, 4, 4), jnp.float32),
        # PyTorch ConvTranspose2d weight layout (Cin, Cout, kh, kw)
        w_up=0.05 * jax.random.normal(ku, (inner_nc, outer_nc, 4, 4), jnp.float32),
        gamma=1.0 + 0.1 * jax.random.normal(kg, (outer_nc,), jnp.float32),
        beta=0.1 * jax.random.normal(kb, (outer_nc,), jnp.float32),
    )

    fwd = jax.jit(lambda inp: unet_innermost_forward(inp, params))
    out, fc = fwd(x)
    jax.block_until_ready(out)
    jax.block_until_ready(fc)

    assert out.shape == (N, 2 * outer_nc, H, W), out.shape
    assert fc.shape == (N, inner_nc, H // 2, W // 2), fc.shape
    assert bool(jnp.all(jnp.isfinite(out)))

    ref = _reference_forward(x, params)
    assert jnp.allclose(out, ref, atol=5e-2, rtol=5e-2), \
        float(jnp.max(jnp.abs(out - ref)))

    print("KERNEL_OK")
</pallas_src>

<mosaic_0001>
module attributes {stable_mosaic.version = 11 : i64} {
  func.func @_down_kernel(%arg0: i32, %arg1: i32, %arg2: memref<1x8x9x16xf32, #tpu.memory_space<vmem>>, %arg3: memref<1x1x9x16xf32, #tpu.memory_space<vmem>>, %arg4: memref<4x16x8xbf16, #tpu.memory_space<vmem>>, %arg5: memref<1x8x8x8xf32, #tpu.memory_space<vmem>>) attributes {dimension_semantics = [#tpu.dimension_semantics<parallel>, #tpu.dimension_semantics<parallel>], iteration_bounds = array<i64: 2, 1>, scalar_prefetch = 0 : i64, scratch_operands = 0 : i64, tpu.core_type = #tpu.core_type<tc>, window_params = [{transform_indices = @transform_0, window_bounds = array<i64: 1, 8, 9, 16>}, {transform_indices = @transform_1, window_bounds = array<i64: 1, 1, 9, 16>}, {pipeline_mode = #tpu.pipeline_mode<synchronous>, transform_indices = @transform_2, window_bounds = array<i64: 4, 16, 8>}, {transform_indices = @transform_3, window_bounds = array<i64: 1, 8, 8, 8>}]} {
    %c0 = arith.constant 0 : index
    %c0_0 = arith.constant 0 : index
    %c0_1 = arith.constant 0 : index
    %c0_2 = arith.constant 0 : index
    %0 = vector.load %arg2[%c0, %c0_0, %c0_1, %c0_2] : memref<1x8x9x16xf32, #tpu.memory_space<vmem>>, vector<1x8x9x16xf32>
    %1 = vector.shape_cast %0 : vector<1x8x9x16xf32> to vector<8x9x16xf32>
    %c0_3 = arith.constant 0 : index
    %c0_4 = arith.constant 0 : index
    %c0_5 = arith.constant 0 : index
    %c0_6 = arith.constant 0 : index
    %2 = vector.load %arg3[%c0_3, %c0_4, %c0_5, %c0_6] : memref<1x1x9x16xf32, #tpu.memory_space<vmem>>, vector<1x1x9x16xf32>
    %3 = vector.shape_cast %2 : vector<1x1x9x16xf32> to vector<1x9x16xf32>
    %4 = tpu.concatenate %1, %3 in 0 : vector<8x9x16xf32>, vector<1x9x16xf32> -> vector<9x9x16xf32>
    %cst = arith.constant 0.000000e+00 : f32
    %5 = vector.broadcast %cst : f32 to vector<9x9x16xf32>
    %6 = arith.cmpf oge, %4, %5 : vector<9x9x16xf32>
    %cst_7 = arith.constant 2.000000e-01 : f32
    %7 = vector.broadcast %cst_7 : f32 to vector<9x9x16xf32>
    %8 = arith.mulf %7, %4 : vector<9x9x16xf32>
    %9 = arith.select %6, %4, %8 : vector<9x9x16xi1>, vector<9x9x16xf32>
    %10 = arith.truncf %9 : vector<9x9x16xf32> to vector<9x9x16xbf16>
    %cst_8 = arith.constant 0.000000e+00 : f32
    %11 = vector.broadcast %cst_8 : f32 to vector<64x8xf32>
    %12 = vector.extract_strided_slice %10 {offsets = [0, 0, 0], sizes = [8, 8, 16], strides = [1, 1, 1]} : vector<9x9x16xbf16> to vector<8x8x16xbf16>
    %13 = vector.shape_cast %12 : vector<8x8x16xbf16> to vector<64x16xbf16>
    %c0_9 = arith.constant 0 : index
    %c0_10 = arith.constant 0 : index
    %c0_11 = arith.constant 0 : index
    %14 = vector.load %arg4[%c0_9, %c0_10, %c0_11] : memref<4x16x8xbf16, #tpu.memory_space<vmem>>, vector<1x16x8xbf16>
    %15 = vector.shape_cast %14 : vector<1x16x8xbf16> to vector<16x8xbf16>
    %cst_12 = arith.constant dense<0.000000e+00> : vector<64x8xf32>
    %16 = tpu.matmul %13, %15, %cst_12 {dimension_numbers = #tpu.dot_dimension_numbers<[1], [0], [0], [1], [0, 0, 1, 1], [], []>} : vector<64x16xbf16>, vector<16x8xbf16>, vector<64x8xf32> -> vector<64x8xf32>
    %17 = arith.addf %11, %16 : vector<64x8xf32>
    %18 = vector.extract_strided_slice %10 {offsets = [0, 1, 0], sizes = [8, 8, 16], strides = [1, 1, 1]} : vector<9x9x16xbf16> to vector<8x8x16xbf16>
    %19 = vector.shape_cast %18 : vector<8x8x16xbf16> to vector<64x16xbf16>
    %c1 = arith.constant 1 : index
    %c0_13 = arith.constant 0 : index
    %c0_14 = arith.constant 0 : index
    %20 = vector.load %arg4[%c1, %c0_13, %c0_14] : memref<4x16x8xbf16, #tpu.memory_space<vmem>>, vector<1x16x8xbf16>
    %21 = vector.shape_cast %20 : vector<1x16x8xbf16> to vector<16x8xbf16>
    %cst_15 = arith.constant dense<0.000000e+00> : vector<64x8xf32>
    %22 = tpu.matmul %19, %21, %cst_15 {dimension_numbers = #tpu.dot_dimension_numbers<[1], [0], [0], [1], [0, 0, 1, 1], [], []>} : vector<64x16xbf16>, vector<16x8xbf16>, vector<64x8xf32> -> vector<64x8xf32>
    %23 = arith.addf %17, %22 : vector<64x8xf32>
    %24 = vector.extract_strided_slice %10 {offsets = [1, 0, 0], sizes = [8, 8, 16], strides = [1, 1, 1]} : vector<9x9x16xbf16> to vector<8x8x16xbf16>
    %25 = vector.shape_cast %24 : vector<8x8x16xbf16> to vector<64x16xbf16>
    %c2 = arith.constant 2 : index
    %c0_16 = arith.constant 0 : index
    %c0_17 = arith.constant 0 : index
    %26 = vector.load %arg4[%c2, %c0_16, %c0_17] : memref<4x16x8xbf16, #tpu.memory_space<vmem>>, vector<1x16x8xbf16>
    %27 = vector.shape_cast %26 : vector<1x16x8xbf16> to vector<16x8xbf16>
    %cst_18 = arith.constant dense<0.000000e+00> : vector<64x8xf32>
    %28 = tpu.matmul %25, %27, %cst_18 {dimension_numbers = #tpu.dot_dimension_numbers<[1], [0], [0], [1], [0, 0, 1, 1], [], []>} : vector<64x16xbf16>, vector<16x8xbf16>, vector<64x8xf32> -> vector<64x8xf32>
    %29 = arith.addf %23, %28 : vector<64x8xf32>
    %30 = vector.extract_strided_slice %10 {offsets = [1, 1, 0], sizes = [8, 8, 16], strides = [1, 1, 1]} : vector<9x9x16xbf16> to vector<8x8x16xbf16>
    %31 = vector.shape_cast %30 : vector<8x8x16xbf16> to vector<64x16xbf16>
    %c3 = arith.constant 3 : index
    %c0_19 = arith.constant 0 : index
    %c0_20 = arith.constant 0 : index
    %32 = vector.load %arg4[%c3, %c0_19, %c0_20] : memref<4x16x8xbf16, #tpu.memory_space<vmem>>, vector<1x16x8xbf16>
    %33 = vector.shape_cast %32 : vector<1x16x8xbf16> to vector<16x8xbf16>
    %cst_21 = arith.constant dense<0.000000e+00> : vector<64x8xf32>
    %34 = tpu.matmul %31, %33, %cst_21 {dimension_numbers = #tpu.dot_dimension_numbers<[1], [0], [0], [1], [0, 0, 1, 1], [], []>} : vector<64x16xbf16>, vector<16x8xbf16>, vector<64x8xf32> -> vector<64x8xf32>
    %35 = arith.addf %29, %34 : vector<64x8xf32>
    %cst_22 = arith.constant 0.000000e+00 : f32
    %36 = vector.broadcast %cst_22 : f32 to vector<64x8xf32>
    %37 = arith.maximumf %35, %36 : vector<64x8xf32>
    %38 = vector.shape_cast %37 : vector<64x8xf32> to vector<1x8x8x8xf32>
    %c0_23 = arith.constant 0 : index
    %c0_24 = arith.constant 0 : index
    %c0_25 = arith.constant 0 : index
    %c0_26 = arith.constant 0 : index
    %39 = vector.load %arg5[%c0_23, %c0_24, %c0_25, %c0_26] : memref<1x8x8x8xf32, #tpu.memory_space<vmem>>, vector<1x8x8x8xf32>
    tpu.vector_store %arg5[%c0_23, %c0_24, %c0_25, %c0_26], %38 {strides = array<i32>} : memref<1x8x8x8xf32, #tpu.memory_space<vmem>>, vector<1x8x8x8xf32>,
    return
  }
  func.func @transform_0(%arg0: i32, %arg1: i32) -> (i32, i32, i32, i32) {
    %c0_i32 = arith.constant 0 : i32
    %c0_i32_0 = arith.constant 0 : i32
    %c0_i32_1 = arith.constant 0 : i32
    return %arg0, %arg1, %c0_i32, %c0_i32_0 : i32, i32, i32, i32
  }
  func.func @transform_1(%arg0: i32, %arg1: i32) -> (i32, i32, i32, i32) {
    %c8_i32 = arith.constant 8 : i32
    %0 = arith.muli %arg1, %c8_i32 : i32
    %c8_i32_0 = arith.constant 8 : i32
    %1 = arith.addi %0, %c8_i32_0 : i32
    %c0_i32 = arith.constant 0 : i32
    %c0_i32_1 = arith.constant 0 : i32
    %c0_i32_2 = arith.constant 0 : i32
    return %arg0, %1, %c0_i32, %c0_i32_1 : i32, i32, i32, i32
  }
  func.func @transform_2(%arg0: i32, %arg1: i32) -> (i32, i32, i32) {
    %c0_i32 = arith.constant 0 : i32
    %c0_i32_0 = arith.constant 0 : i32
    %c0_i32_1 = arith.constant 0 : i32
    %c0_i32_2 = arith.constant 0 : i32
    return %c0_i32, %c0_i32_0, %c0_i32_1 : i32, i32, i32
  }
  func.func @transform_3(%arg0: i32, %arg1: i32) -> (i32, i32, i32, i32) {
    %c0_i32 = arith.constant 0 : i32
    %c0_i32_0 = arith.constant 0 : i32
    %c0_i32_1 = arith.constant 0 : i32
    return %arg0, %arg1, %c0_i32, %c0_i32_0 : i32, i32, i32, i32
  }
}

module attributes {stable_mosaic.version = 11 : i64} {
  func.func @_up_kernel(%arg0: i32, %arg1: i32, %arg2: memref<1x8x10x8xf32, #tpu.memory_space<vmem>>, %arg3: memref<1x1x10x8xf32, #tpu.memory_space<vmem>>, %arg4: memref<1x1x10x8xf32, #tpu.memory_space<vmem>>, %arg5: memref<16x8x4xbf16, #tpu.memory_space<vmem>>, %arg6: memref<1x8x2x8x8xf32, #tpu.memory_space<vmem>>, %arg7: memref<1x1x4xf32, #tpu.memory_space<vmem>>, %arg8: memref<1x1x4xf32, #tpu.memory_space<vmem>>) attributes {dimension_semantics = [#tpu.dimension_semantics<parallel>, #tpu.dimension_semantics<arbitrary>], iteration_bounds = array<i64: 2, 1>, scalar_prefetch = 0 : i64, scratch_operands = 0 : i64, tpu.core_type = #tpu.core_type<tc>, window_params = [{transform_indices = @transform_0, window_bounds = array<i64: 1, 8, 10, 8>}, {transform_indices = @transform_1, window_bounds = array<i64: 1, 1, 10, 8>}, {transform_indices = @transform_2, window_bounds = array<i64: 1, 1, 10, 8>}, {pipeline_mode = #tpu.pipeline_mode<synchronous>, transform_indices = @transform_3, window_bounds = array<i64: 16, 8, 4>}, {transform_indices = @transform_4, window_bounds = array<i64: 1, 8, 2, 8, 8>}, {transform_indices = @transform_5, window_bounds = array<i64: 1, 1, 4>}, {transform_indices = @transform_6, window_bounds = array<i64: 1, 1, 4>}]} {
    %c0_i32 = arith.constant 0 : i32
    %0 = arith.cmpi eq, %arg1, %c0_i32 : i32
    %1 = arith.extui %0 : i1 to i32
    %c0_i32_0 = arith.constant 0 : i32
    %2 = arith.cmpi ne, %1, %c0_i32_0 : i32
    scf.if %2 {
      %cst_91 = arith.constant 0.000000e+00 : f32
      %158 = vector.broadcast %cst_91 : f32 to vector<1x1x4xf32>
      %c0_92 = arith.constant 0 : index
      %c0_93 = arith.constant 0 : index
      %c0_94 = arith.constant 0 : index
      %159 = vector.load %arg7[%c0_92, %c0_93, %c0_94] : memref<1x1x4xf32, #tpu.memory_space<vmem>>, vector<1x1x4xf32>
      tpu.vector_store %arg7[%c0_92, %c0_93, %c0_94], %158 {strides = array<i32>} : memref<1x1x4xf32, #tpu.memory_space<vmem>>, vector<1x1x4xf32>,
      %cst_95 = arith.constant 0.000000e+00 : f32
      %160 = vector.broadcast %cst_95 : f32 to vector<1x1x4xf32>
      %c0_96 = arith.constant 0 : index
      %c0_97 = arith.constant 0 : index
      %c0_98 = arith.constant 0 : index
      %161 = vector.load %arg8[%c0_96, %c0_97, %c0_98] : memref<1x1x4xf32, #tpu.memory_space<vmem>>, vector<1x1x4xf32>
      tpu.vector_store %arg8[%c0_96, %c0_97, %c0_98], %160 {strides = array<i32>} : memref<1x1x4xf32, #tpu.memory_space<vmem>>, vector<1x1x4xf32>,
    } else {
    }
    %c0 = arith.constant 0 : index
    %c0_1 = arith.constant 0 : index
    %c0_2 = arith.constant 0 : index
    %c0_3 = arith.constant 0 : index
    %3 = vector.load %arg2[%c0, %c0_1, %c0_2, %c0_3] : memref<1x8x10x8xf32, #tpu.memory_space<vmem>>, vector<1x8x10x8xf32>
    %4 = vector.shape_cast %3 : vector<1x8x10x8xf32> to vector<8x10x8xf32>
    %c0_4 = arith.constant 0 : index
    %c0_5 = arith.constant 0 : index
    %c0_6 = arith.constant 0 : index
    %c0_7 = arith.constant 0 : index
    %5 = vector.load %arg3[%c0_4, %c0_5, %c0_6, %c0_7] : memref<1x1x10x8xf32, #tpu.memory_space<vmem>>, vector<1x1x10x8xf32>
    %6 = vector.shape_cast %5 : vector<1x1x10x8xf32> to vector<1x10x8xf32>
    %c0_8 = arith.constant 0 : index
    %c0_9 = arith.constant 0 : index
    %c0_10 = arith.constant 0 : index
    %c0_11 = arith.constant 0 : index
    %7 = vector.load %arg4[%c0_8, %c0_9, %c0_10, %c0_11] : memref<1x1x10x8xf32, #tpu.memory_space<vmem>>, vector<1x1x10x8xf32>
    %8 = vector.shape_cast %7 : vector<1x1x10x8xf32> to vector<1x10x8xf32>
    %9 = tpu.concatenate %4, %6, %8 in 0 : vector<8x10x8xf32>, vector<1x10x8xf32>, vector<1x10x8xf32> -> vector<10x10x8xf32>
    %10 = arith.truncf %9 : vector<10x10x8xf32> to vector<10x10x8xbf16>
    %cst = arith.constant 0.000000e+00 : f32
    %11 = vector.broadcast %cst : f32 to vector<1x1x4xf32>
    %cst_12 = arith.constant 0.000000e+00 : f32
    %12 = vector.broadcast %cst_12 : f32 to vector<1x1x4xf32>
    %cst_13 = arith.constant 0.000000e+00 : f32
    %13 = vector.broadcast %cst_13 : f32 to vector<64x4xf32>
    %14 = vector.extract_strided_slice %10 {offsets = [0, 0, 0], sizes = [8, 8, 8], strides = [1, 1, 1]} : vector<10x10x8xbf16> to vector<8x8x8xbf16>
    %15 = vector.shape_cast %14 : vector<8x8x8xbf16> to vector<64x8xbf16>
    %c0_14 = arith.constant 0 : index
    %c0_15 = arith.constant 0 : index
    %c0_16 = arith.constant 0 : index
    %16 = vector.load %arg5[%c0_14, %c0_15, %c0_16] : memref<16x8x4xbf16, #tpu.memory_space<vmem>>, vector<1x8x4xbf16>
    %17 = vector.shape_cast %16 : vector<1x8x4xbf16> to vector<8x4xbf16>
    %cst_17 = arith.constant dense<0.000000e+00> : vector<64x4xf32>
    %18 = tpu.matmul %15, %17, %cst_17 {dimension_numbers = #tpu.dot_dimension_numbers<[1], [0], [0], [1], [0, 0, 1, 1], [], []>} : vector<64x8xbf16>, vector<8x4xbf16>, vector<64x4xf32> -> vector<64x4xf32>
    %19 = arith.addf %13, %18 : vector<64x4xf32>
    %20 = vector.extract_strided_slice %10 {offsets = [0, 1, 0], sizes = [8, 8, 8], strides = [1, 1, 1]} : vector<10x10x8xbf16> to vector<8x8x8xbf16>
    %21 = vector.shape_cast %20 : vector<8x8x8xbf16> to vector<64x8xbf16>
    %c1 = arith.constant 1 : index
    %c0_18 = arith.constant 0 : index
    %c0_19 = arith.constant 0 : index
    %22 = vector.load %arg5[%c1, %c0_18, %c0_19] : memref<16x8x4xbf16, #tpu.memory_space<vmem>>, vector<1x8x4xbf16>
    %23 = vector.shape_cast %22 : vector<1x8x4xbf16> to vector<8x4xbf16>
    %cst_20 = arith.constant dense<0.000000e+00> : vector<64x4xf32>
    %24 = tpu.matmul %21, %23, %cst_20 {dimension_numbers = #tpu.dot_dimension_numbers<[1], [0], [0], [1], [0, 0, 1, 1], [], []>} : vector<64x8xbf16>, vector<8x4xbf16>, vector<64x4xf32> -> vector<64x4xf32>
    %25 = arith.addf %19, %24 : vector<64x4xf32>
    %26 = vector.extract_strided_slice %10 {offsets = [1, 0, 0], sizes = [8, 8, 8], strides = [1, 1, 1]} : vector<10x10x8xbf16> to vector<8x8x8xbf16>
    %27 = vector.shape_cast %26 : vector<8x8x8xbf16> to vector<64x8xbf16>
    %c2 = arith.constant 2 : index
    %c0_21 = arith.constant 0 : index
    %c0_22 = arith.constant 0 : index
    %28 = vector.load %arg5[%c2, %c0_21, %c0_22] : memref<16x8x4xbf16, #tpu.memory_space<vmem>>, vector<1x8x4xbf16>
    %29 = vector.shape_cast %28 : vector<1x8x4xbf16> to vector<8x4xbf16>
    %cst_23 = arith.constant dense<0.000000e+00> : vector<64x4xf32>
    %30 = tpu.matmul %27, %29, %cst_23 {dimension_numbers = #tpu.dot_dimension_numbers<[1], [0], [0], [1], [0, 0, 1, 1], [], []>} : vector<64x8xbf16>, vector<8x4xbf16>, vector<64x4xf32> -> vector<64x4xf32>
    %31 = arith.addf %25, %30 : vector<64x4xf32>
    %32 = vector.extract_strided_slice %10 {offsets = [1, 1, 0], sizes = [8, 8, 8], strides = [1, 1, 1]} : vector<10x10x8xbf16> to vector<8x8x8xbf16>
    %33 = vector.shape_cast %32 : vector<8x8x8xbf16> to vector<64x8xbf16>
    %c3 = arith.constant 3 : index
    %c0_24 = arith.constant 0 : index
    %c0_25 = arith.constant 0 : index
    %34 = vector.load %arg5[%c3, %c0_24, %c0_25] : memref<16x8x4xbf16, #tpu.memory_space<vmem>>, vector<1x8x4xbf16>
    %35 = vector.shape_cast %34 : vector<1x8x4xbf16> to vector<8x4xbf16>
    %cst_26 = arith.constant dense<0.000000e+00> : vector<64x4xf32>
    %36 = tpu.matmul %33, %35, %cst_26 {dimension_numbers = #tpu.dot_dimension_numbers<[1], [0], [0], [1], [0, 0, 1, 1], [], []>} : vector<64x8xbf16>, vector<8x4xbf16>, vector<64x4xf32> -> vector<64x4xf32>
    %37 = arith.addf %31, %36 : vector<64x4xf32>
    %cst_27 = arith.constant dense<0.000000e+00> : vector<4xf32>
    %38 = vector.multi_reduction <add>, %37, %cst_27 [0] : vector<64x4xf32> to vector<4xf32>
    %39 = vector.shape_cast %38 : vector<4xf32> to vector<1x1x4xf32>
    %40 = arith.addf %11, %39 : vector<1x1x4xf32>
    %41 = arith.mulf %37, %37 : vector<64x4xf32>
    %cst_28 = arith.constant dense<0.000000e+00> : vector<4xf32>
    %42 = vector.multi_reduction <add>, %41, %cst_28 [0] : vector<64x4xf32> to vector<4xf32>
    %43 = vector.shape_cast %42 : vector<4xf32> to vector<1x1x4xf32>
    %44 = arith.addf %12, %43 : vector<1x1x4xf32>
    %45 = vector.shape_cast %37 : vector<64x4xf32> to vector<8x8x4xf32>
    %cst_29 = arith.constant 0.000000e+00 : f32
    %46 = vector.broadcast %cst_29 : f32 to vector<64x4xf32>
    %47 = vector.extract_strided_slice %10 {offsets = [0, 1, 0], sizes = [8, 8, 8], strides = [1, 1, 1]} : vector<10x10x8xbf16> to vector<8x8x8xbf16>
    %48 = vector.shape_cast %47 : vector<8x8x8xbf16> to vector<64x8xbf16>
    %c4 = arith.constant 4 : index
    %c0_30 = arith.constant 0 : index
    %c0_31 = arith.constant 0 : index
    %49 = vector.load %arg5[%c4, %c0_30, %c0_31] : memref<16x8x4xbf16, #tpu.memory_space<vmem>>, vector<1x8x4xbf16>
    %50 = vector.shape_cast %49 : vector<1x8x4xbf16> to vector<8x4xbf16>
    %cst_32 = arith.constant dense<0.000000e+00> : vector<64x4xf32>
    %51 = tpu.matmul %48, %50, %cst_32 {dimension_numbers = #tpu.dot_dimension_numbers<[1], [0], [0], [1], [0, 0, 1, 1], [], []>} : vector<64x8xbf16>, vector<8x4xbf16>, vector<64x4xf32> -> vector<64x4xf32>
    %52 = arith.addf %46, %51 : vector<64x4xf32>
    %53 = vector.extract_strided_slice %10 {offsets = [0, 2, 0], sizes = [8, 8, 8], strides = [1, 1, 1]} : vector<10x10x8xbf16> to vector<8x8x8xbf16>
    %54 = vector.shape_cast %53 : vector<8x8x8xbf16> to vector<64x8xbf16>
    %c5 = arith.constant 5 : index
    %c0_33 = arith.constant 0 : index
    %c0_34 = arith.constant 0 : index
    %55 = vector.load %arg5[%c5, %c0_33, %c0_34] : memref<16x8x4xbf16, #tpu.memory_space<vmem>>, vector<1x8x4xbf16>
    %56 = vector.shape_cast %55 : vector<1x8x4xbf16> to vector<8x4xbf16>
    %cst_35 = arith.constant dense<0.000000e+00> : vector<64x4xf32>
    %57 = tpu.matmul %54, %56, %cst_35 {dimension_numbers = #tpu.dot_dimension_numbers<[1], [0], [0], [1], [0, 0, 1, 1], [], []>} : vector<64x8xbf16>, vector<8x4xbf16>, vector<64x4xf32> -> vector<64x4xf32>
    %58 = arith.addf %52, %57 : vector<64x4xf32>
    %59 = vector.extract_strided_slice %10 {offsets = [1, 1, 0], sizes = [8, 8, 8], strides = [1, 1, 1]} : vector<10x10x8xbf16> to vector<8x8x8xbf16>
    %60 = vector.shape_cast %59 : vector<8x8x8xbf16> to vector<64x8xbf16>
    %c6 = arith.constant 6 : index
    %c0_36 = arith.constant 0 : index
    %c0_37 = arith.constant 0 : index
    %61 = vector.load %arg5[%c6, %c0_36, %c0_37] : memref<16x8x4xbf16, #tpu.memory_space<vmem>>, vector<1x8x4xbf16>
    %62 = vector.shape_cast %61 : vector<1x8x4xbf16> to vector<8x4xbf16>
    %cst_38 = arith.constant dense<0.000000e+00> : vector<64x4xf32>
    %63 = tpu.matmul %60, %62, %cst_38 {dimension_numbers = #tpu.dot_dimension_numbers<[1], [0], [0], [1], [0, 0, 1, 1], [], []>} : vector<64x8xbf16>, vector<8x4xbf16>, vector<64x4xf32> -> vector<64x4xf32>
    %64 = arith.addf %58, %63 : vector<64x4xf32>
    %65 = vector.extract_strided_slice %10 {offsets = [1, 2, 0], sizes = [8, 8, 8], strides = [1, 1, 1]} : vector<10x10x8xbf16> to vector<8x8x8xbf16>
    %66 = vector.shape_cast %65 : vector<8x8x8xbf16> to vector<64x8xbf16>
    %c7 = arith.constant 7 : index
    %c0_39 = arith.constant 0 : index
    %c0_40 = arith.constant 0 : index
    %67 = vector.load %arg5[%c7, %c0_39, %c0_40] : memref<16x8x4xbf16, #tpu.memory_space<vmem>>, vector<1x8x4xbf16>
    %68 = vector.shape_cast %67 : vector<1x8x4xbf16> to vector<8x4xbf16>
    %cst_41 = arith.constant dense<0.000000e+00> : vector<64x4xf32>
    %69 = tpu.matmul %66, %68, %cst_41 {dimension_numbers = #tpu.dot_dimension_numbers<[1], [0], [0], [1], [0, 0, 1, 1], [], []>} : vector<64x8xbf16>, vector<8x4xbf16>, vector<64x4xf32> -> vector<64x4xf32>
    %70 = arith.addf %64, %69 : vector<64x4xf32>
    %cst_42 = arith.constant dense<0.000000e+00> : vector<4xf32>
    %71 = vector.multi_reduction <add>, %70, %cst_42 [0] : vector<64x4xf32> to vector<4xf32>
    %72 = vector.shape_cast %71 : vector<4xf32> to vector<1x1x4xf32>
    %73 = arith.addf %40, %72 : vector<1x1x4xf32>
    %74 = arith.mulf %70, %70 : vector<64x4xf32>
    %cst_43 = arith.constant dense<0.000000e+00> : vector<4xf32>
    %75 = vector.multi_reduction <add>, %74, %cst_43 [0] : vector<64x4xf32> to vector<4xf32>
    %76 = vector.shape_cast %75 : vector<4xf32> to vector<1x1x4xf32>
    %77 = arith.addf %44, %76 : vector<1x1x4xf32>
    %78 = vector.shape_cast %70 : vector<64x4xf32> to vector<8x8x4xf32>
    %cst_44 = arith.constant 0.000000e+00 : f32
    %79 = vector.broadcast %cst_44 : f32 to vector<64x4xf32>
    %80 = vector.extract_strided_slice %10 {offsets = [1, 0, 0], sizes = [8, 8, 8], strides = [1, 1, 1]} : vector<10x10x8xbf16> to vector<8x8x8xbf16>
    %81 = vector.shape_cast %80 : vector<8x8x8xbf16> to vector<64x8xbf16>
    %c8 = arith.constant 8 : index
    %c0_45 = arith.constant 0 : index
    %c0_46 = arith.constant 0 : index
    %82 = vector.load %arg5[%c8, %c0_45, %c0_46] : memref<16x8x4xbf16, #tpu.memory_space<vmem>>, vector<1x8x4xbf16>
    %83 = vector.shape_cast %82 : vector<1x8x4xbf16> to vector<8x4xbf16>
    %cst_47 = arith.constant dense<0.000000e+00> : vector<64x4xf32>
    %84 = tpu.matmul %81, %83, %cst_47 {dimension_numbers = #tpu.dot_dimension_numbers<[1], [0], [0], [1], [0, 0, 1, 1], [], []>} : vector<64x8xbf16>, vector<8x4xbf16>, vector<64x4xf32> -> vector<64x4xf32>
    %85 = arith.addf %79, %84 : vector<64x4xf32>
    %86 = vector.extract_strided_slice %10 {offsets = [1, 1, 0], sizes = [8, 8, 8], strides = [1, 1, 1]} : vector<10x10x8xbf16> to vector<8x8x8xbf16>
    %87 = vector.shape_cast %86 : vector<8x8x8xbf16> to vector<64x8xbf16>
    %c9 = arith.constant 9 : index
    %c0_48 = arith.constant 0 : index
    %c0_49 = arith.constant 0 : index
    %88 = vector.load %arg5[%c9, %c0_48, %c0_49] : memref<16x8x4xbf16, #tpu.memory_space<vmem>>, vector<1x8x4xbf16>
    %89 = vector.shape_cast %88 : vector<1x8x4xbf16> to vector<8x4xbf16>
    %cst_50 = arith.constant dense<0.000000e+00> : vector<64x4xf32>
    %90 = tpu.matmul %87, %89, %cst_50 {dimension_numbers = #tpu.dot_dimension_numbers<[1], [0], [0], [1], [0, 0, 1, 1], [], []>} : vector<64x8xbf16>, vector<8x4xbf16>, vector<64x4xf32> -> vector<64x4xf32>
    %91 = arith.addf %85, %90 : vector<64x4xf32>
    %92 = vector.extract_strided_slice %10 {offsets = [2, 0, 0], sizes = [8, 8, 8], strides = [1, 1, 1]} : vector<10x10x8xbf16> to vector<8x8x8xbf16>
    %93 = vector.shape_cast %92 : vector<8x8x8xbf16> to vector<64x8xbf16>
    %c10 = arith.constant 10 : index
    %c0_51 = arith.constant 0 : index
    %c0_52 = arith.constant 0 : index
    %94 = vector.load %arg5[%c10, %c0_51, %c0_52] : memref<16x8x4xbf16, #tpu.memory_space<vmem>>, vector<1x8x4xbf16>
    %95 = vector.shape_cast %94 : vector<1x8x4xbf16> to vector<8x4xbf16>
    %cst_53 = arith.constant dense<0.000000e+00> : vector<64x4xf32>
    %96 = tpu.matmul %93, %95, %cst_53 {dimension_numbers = #tpu.dot_dimension_numbers<[1], [0], [0], [1], [0, 0, 1, 1], [], []>} : vector<64x8xbf16>, vector<8x4xbf16>, vector<64x4xf32> -> vector<64x4xf32>
    %97 = arith.addf %91, %96 : vector<64x4xf32>
    %98 = vector.extract_strided_slice %10 {offsets = [2, 1, 0], sizes = [8, 8, 8], strides = [1, 1, 1]} : vector<10x10x8xbf16> to vector<8x8x8xbf16>
    %99 = vector.shape_cast %98 : vector<8x8x8xbf16> to vector<64x8xbf16>
    %c11 = arith.constant 11 : index
    %c0_54 = arith.constant 0 : index
    %c0_55 = arith.constant 0 : index
    %100 = vector.load %arg5[%c11, %c0_54, %c0_55] : memref<16x8x4xbf16, #tpu.memory_space<vmem>>, vector<1x8x4xbf16>
    %101 = vector.shape_cast %100 : vector<1x8x4xbf16> to vector<8x4xbf16>
    %cst_56 = arith.constant dense<0.000000e+00> : vector<64x4xf32>
    %102 = tpu.matmul %99, %101, %cst_56 {dimension_numbers = #tpu.dot_dimension_numbers<[1], [0], [0], [1], [0, 0, 1, 1], [], []>} : vector<64x8xbf16>, vector<8x4xbf16>, vector<64x4xf32> -> vector<64x4xf32>
    %103 = arith.addf %97, %102 : vector<64x4xf32>
    %cst_57 = arith.constant dense<0.000000e+00> : vector<4xf32>
    %104 = vector.multi_reduction <add>, %103, %cst_57 [0] : vector<64x4xf32> to vector<4xf32>
    %105 = vector.shape_cast %104 : vector<4xf32> to vector<1x1x4xf32>
    %106 = arith.addf %73, %105 : vector<1x1x4xf32>
    %107 = arith.mulf %103, %103 : vector<64x4xf32>
    %cst_58 = arith.constant dense<0.000000e+00> : vector<4xf32>
    %108 = vector.multi_reduction <add>, %107, %cst_58 [0] : vector<64x4xf32> to vector<4xf32>
    %109 = vector.shape_cast %108 : vector<4xf32> to vector<1x1x4xf32>
    %110 = arith.addf %77, %109 : vector<1x1x4xf32>
    %111 = vector.shape_cast %103 : vector<64x4xf32> to vector<8x8x4xf32>
    %cst_59 = arith.constant 0.000000e+00 : f32
    %112 = vector.broadcast %cst_59 : f32 to vector<64x4xf32>
    %113 = vector.extract_strided_slice %10 {offsets = [1, 1, 0], sizes = [8, 8, 8], strides = [1, 1, 1]} : vector<10x10x8xbf16> to vector<8x8x8xbf16>
    %114 = vector.shape_cast %113 : vector<8x8x8xbf16> to vector<64x8xbf16>
    %c12 = arith.constant 12 : index
    %c0_60 = arith.constant 0 : index
    %c0_61 = arith.constant 0 : index
    %115 = vector.load %arg5[%c12, %c0_60, %c0_61] : memref<16x8x4xbf16, #tpu.memory_space<vmem>>, vector<1x8x4xbf16>
    %116 = vector.shape_cast %115 : vector<1x8x4xbf16> to vector<8x4xbf16>
    %cst_62 = arith.constant dense<0.000000e+00> : vector<64x4xf32>
    %117 = tpu.matmul %114, %116, %cst_62 {dimension_numbers = #tpu.dot_dimension_numbers<[1], [0], [0], [1], [0, 0, 1, 1], [], []>} : vector<64x8xbf16>, vector<8x4xbf16>, vector<64x4xf32> -> vector<64x4xf32>
    %118 = arith.addf %112, %117 : vector<64x4xf32>
    %119 = vector.extract_strided_slice %10 {offsets = [1, 2, 0], sizes = [8, 8, 8], strides = [1, 1, 1]} : vector<10x10x8xbf16> to vector<8x8x8xbf16>
    %120 = vector.shape_cast %119 : vector<8x8x8xbf16> to vector<64x8xbf16>
    %c13 = arith.constant 13 : index
    %c0_63 = arith.constant 0 : index
    %c0_64 = arith.constant 0 : index
    %121 = vector.load %arg5[%c13, %c0_63, %c0_64] : memref<16x8x4xbf16, #tpu.memory_space<vmem>>, vector<1x8x4xbf16>
    %122 = vector.shape_cast %121 : vector<1x8x4xbf16> to vector<8x4xbf16>
    %cst_65 = arith.constant dense<0.000000e+00> : vector<64x4xf32>
    %123 = tpu.matmul %120, %122, %cst_65 {dimension_numbers = #tpu.dot_dimension_numbers<[1], [0], [0], [1], [0, 0, 1, 1], [], []>} : vector<64x8xbf16>, vector<8x4xbf16>, vector<64x4xf32> -> vector<64x4xf32>
    %124 = arith.addf %118, %123 : vector<64x4xf32>
    %125 = vector.extract_strided_slice %10 {offsets = [2, 1, 0], sizes = [8, 8, 8], strides = [1, 1, 1]} : vector<10x10x8xbf16> to vector<8x8x8xbf16>
    %126 = vector.shape_cast %125 : vector<8x8x8xbf16> to vector<64x8xbf16>
    %c14 = arith.constant 14 : index
    %c0_66 = arith.constant 0 : index
    %c0_67 = arith.constant 0 : index
    %127 = vector.load %arg5[%c14, %c0_66, %c0_67] : memref<16x8x4xbf16, #tpu.memory_space<vmem>>, vector<1x8x4xbf16>
    %128 = vector.shape_cast %127 : vector<1x8x4xbf16> to vector<8x4xbf16>
    %cst_68 = arith.constant dense<0.000000e+00> : vector<64x4xf32>
    %129 = tpu.matmul %126, %128, %cst_68 {dimension_numbers = #tpu.dot_dimension_numbers<[1], [0], [0], [1], [0, 0, 1, 1], [], []>} : vector<64x8xbf16>, vector<8x4xbf16>, vector<64x4xf32> -> vector<64x4xf32>
    %130 = arith.addf %124, %129 : vector<64x4xf32>
    %131 = vector.extract_strided_slice %10 {offsets = [2, 2, 0], sizes = [8, 8, 8], strides = [1, 1, 1]} : vector<10x10x8xbf16> to vector<8x8x8xbf16>
    %132 = vector.shape_cast %131 : vector<8x8x8xbf16> to vector<64x8xbf16>
    %c15 = arith.constant 15 : index
    %c0_69 = arith.constant 0 : index
    %c0_70 = arith.constant 0 : index
    %133 = vector.load %arg5[%c15, %c0_69, %c0_70] : memref<16x8x4xbf16, #tpu.memory_space<vmem>>, vector<1x8x4xbf16>
    %134 = vector.shape_cast %133 : vector<1x8x4xbf16> to vector<8x4xbf16>
    %cst_71 = arith.constant dense<0.000000e+00> : vector<64x4xf32>
    %135 = tpu.matmul %132, %134, %cst_71 {dimension_numbers = #tpu.dot_dimension_numbers<[1], [0], [0], [1], [0, 0, 1, 1], [], []>} : vector<64x8xbf16>, vector<8x4xbf16>, vector<64x4xf32> -> vector<64x4xf32>
    %136 = arith.addf %130, %135 : vector<64x4xf32>
    %cst_72 = arith.constant dense<0.000000e+00> : vector<4xf32>
    %137 = vector.multi_reduction <add>, %136, %cst_72 [0] : vector<64x4xf32> to vector<4xf32>
    %138 = vector.shape_cast %137 : vector<4xf32> to vector<1x1x4xf32>
    %139 = arith.addf %106, %138 : vector<1x1x4xf32>
    %140 = arith.mulf %136, %136 : vector<64x4xf32>
    %cst_73 = arith.constant dense<0.000000e+00> : vector<4xf32>
    %141 = vector.multi_reduction <add>, %140, %cst_73 [0] : vector<64x4xf32> to vector<4xf32>
    %142 = vector.shape_cast %141 : vector<4xf32> to vector<1x1x4xf32>
    %143 = arith.addf %110, %142 : vector<1x1x4xf32>
    %144 = vector.shape_cast %136 : vector<64x4xf32> to vector<8x8x4xf32>
    %c0_74 = arith.constant 0 : index
    %c0_75 = arith.constant 0 : index
    %c0_76 = arith.constant 0 : index
    %145 = vector.load %arg7[%c0_74, %c0_75, %c0_76] : memref<1x1x4xf32, #tpu.memory_space<vmem>>, vector<1x1x4xf32>
    %146 = arith.addf %145, %139 : vector<1x1x4xf32>
    %c0_77 = arith.constant 0 : index
    %c0_78 = arith.constant 0 : index
    %c0_79 = arith.constant 0 : index
    %147 = vector.load %arg7[%c0_77, %c0_78, %c0_79] : memref<1x1x4xf32, #tpu.memory_space<vmem>>, vector<1x1x4xf32>
    tpu.vector_store %arg7[%c0_77, %c0_78, %c0_79], %146 {strides = array<i32>} : memref<1x1x4xf32, #tpu.memory_space<vmem>>, vector<1x1x4xf32>,
    %c0_80 = arith.constant 0 : index
    %c0_81 = arith.constant 0 : index
    %c0_82 = arith.constant 0 : index
    %148 = vector.load %arg8[%c0_80, %c0_81, %c0_82] : memref<1x1x4xf32, #tpu.memory_space<vmem>>, vector<1x1x4xf32>
    %149 = arith.addf %148, %143 : vector<1x1x4xf32>
    %c0_83 = arith.constant 0 : index
    %c0_84 = arith.constant 0 : index
    %c0_85 = arith.constant 0 : index
    %150 = vector.load %arg8[%c0_83, %c0_84, %c0_85] : memref<1x1x4xf32, #tpu.memory_space<vmem>>, vector<1x1x4xf32>
    tpu.vector_store %arg8[%c0_83, %c0_84, %c0_85], %149 {strides = array<i32>} : memref<1x1x4xf32, #tpu.memory_space<vmem>>, vector<1x1x4xf32>,
    %151 = tpu.concatenate %45, %78 in 2 : vector<8x8x4xf32>, vector<8x8x4xf32> -> vector<8x8x8xf32>
    %152 = tpu.concatenate %111, %144 in 2 : vector<8x8x4xf32>, vector<8x8x4xf32> -> vector<8x8x8xf32>
    %153 = vector.shape_cast %151 : vector<8x8x8xf32> to vector<8x1x8x8xf32>
    %154 = vector.shape_cast %152 : vector<8x8x8xf32> to vector<8x1x8x8xf32>
    %155 = tpu.concatenate %153, %154 in 1 : vector<8x1x8x8xf32>, vector<8x1x8x8xf32> -> vector<8x2x8x8xf32>
    %156 = vector.shape_cast %155 : vector<8x2x8x8xf32> to vector<1x8x2x8x8xf32>
    %c0_86 = arith.constant 0 : index
    %c0_87 = arith.constant 0 : index
    %c0_88 = arith.constant 0 : index
    %c0_89 = arith.constant 0 : index
    %c0_90 = arith.constant 0 : index
    %157 = vector.load %arg6[%c0_86, %c0_87, %c0_88, %c0_89, %c0_90] : memref<1x8x2x8x8xf32, #tpu.memory_space<vmem>>, vector<1x8x2x8x8xf32>
    tpu.vector_store %arg6[%c0_86, %c0_87, %c0_88, %c0_89, %c0_90], %156 {strides = array<i32>} : memref<1x8x2x8x8xf32, #tpu.memory_space<vmem>>, vector<1x8x2x8x8xf32>,
    return
  }
  func.func @transform_0(%arg0: i32, %arg1: i32) -> (i32, i32, i32, i32) {
    %c0_i32 = arith.constant 0 : i32
    %c0_i32_0 = arith.constant 0 : i32
    %c0_i32_1 = arith.constant 0 : i32
    return %arg0, %arg1, %c0_i32, %c0_i32_0 : i32, i32, i32, i32
  }
  func.func @transform_1(%arg0: i32, %arg1: i32) -> (i32, i32, i32, i32) {
    %c8_i32 = arith.constant 8 : i32
    %0 = arith.muli %arg1, %c8_i32 : i32
    %c8_i32_0 = arith.constant 8 : i32
    %1 = arith.addi %0, %c8_i32_0 : i32
    %c0_i32 = arith.constant 0 : i32
    %c0_i32_1 = arith.constant 0 : i32
    %c0_i32_2 = arith.constant 0 : i32
    return %arg0, %1, %c0_i32, %c0_i32_1 : i32, i32, i32, i32
  }
  func.func @transform_2(%arg0: i32, %arg1: i32) -> (i32, i32, i32, i32) {
    %c8_i32 = arith.constant 8 : i32
    %0 = arith.muli %arg1, %c8_i32 : i32
    %c8_i32_0 = arith.constant 8 : i32
    %1 = arith.addi %0, %c8_i32_0 : i32
    %c1_i32 = arith.constant 1 : i32
    %2 = arith.addi %1, %c1_i32 : i32
    %c0_i32 = arith.constant 0 : i32
    %c0_i32_1 = arith.constant 0 : i32
    %c0_i32_2 = arith.constant 0 : i32
    return %arg0, %2, %c0_i32, %c0_i32_1 : i32, i32, i32, i32
  }
  func.func @transform_3(%arg0: i32, %arg1: i32) -> (i32, i32, i32) {
    %c0_i32 = arith.constant 0 : i32
    %c0_i32_0 = arith.constant 0 : i32
    %c0_i32_1 = arith.constant 0 : i32
    %c0_i32_2 = arith.constant 0 : i32
    return %c0_i32, %c0_i32_0, %c0_i32_1 : i32, i32, i32
  }
  func.func @transform_4(%arg0: i32, %arg1: i32) -> (i32, i32, i32, i32, i32) {
    %c0_i32 = arith.constant 0 : i32
    %c0_i32_0 = arith.constant 0 : i32
    %c0_i32_1 = arith.constant 0 : i32
    %c0_i32_2 = arith.constant 0 : i32
    return %arg0, %arg1, %c0_i32, %c0_i32_0, %c0_i32_1 : i32, i32, i32, i32, i32
  }
  func.func @transform_5(%arg0: i32, %arg1: i32) -> (i32, i32, i32) {
    %c0_i32 = arith.constant 0 : i32
    %c0_i32_0 = arith.constant 0 : i32
    %c0_i32_1 = arith.constant 0 : i32
    return %arg0, %c0_i32, %c0_i32_0 : i32, i32, i32
  }
  func.func @transform_6(%arg0: i32, %arg1: i32) -> (i32, i32, i32) {
    %c0_i32 = arith.constant 0 : i32
    %c0_i32_0 = arith.constant 0 : i32
    %c0_i32_1 = arith.constant 0 : i32
    return %arg0, %c0_i32, %c0_i32_0 : i32, i32, i32
  }
}

module attributes {stable_mosaic.version = 11 : i64} {
  func.func @_finalize_kernel(%arg0: i32, %arg1: i32, %arg2: memref<1x16x16x4xf32, #tpu.memory_space<vmem>>, %arg3: memref<1x16x16x4xf32, #tpu.memory_space<vmem>>, %arg4: memref<1x4xf32, #tpu.memory_space<vmem>>, %arg5: memref<1x4xf32, #tpu.memory_space<vmem>>, %arg6: memref<1x16x16x8xf32, #tpu.memory_space<vmem>>) attributes {dimension_semantics = [#tpu.dimension_semantics<parallel>, #tpu.dimension_semantics<parallel>], iteration_bounds = array<i64: 2, 1>, scalar_prefetch = 0 : i64, scratch_operands = 0 : i64, tpu.core_type = #tpu.core_type<tc>, window_params = [{transform_indices = @transform_0, window_bounds = array<i64: 1, 16, 16, 4>}, {transform_indices = @transform_1, window_bounds = array<i64: 1, 16, 16, 4>}, {pipeline_mode = #tpu.pipeline_mode<synchronous>, transform_indices = @transform_2, window_bounds = array<i64: 1, 4>}, {pipeline_mode = #tpu.pipeline_mode<synchronous>, transform_indices = @transform_3, window_bounds = array<i64: 1, 4>}, {transform_indices = @transform_4, window_bounds = array<i64: 1, 16, 16, 8>}]} {
    %c0 = arith.constant 0 : index
    %c0_0 = arith.constant 0 : index
    %c0_1 = arith.constant 0 : index
    %c0_2 = arith.constant 0 : index
    %0 = vector.load %arg3[%c0, %c0_0, %c0_1, %c0_2] : memref<1x16x16x4xf32, #tpu.memory_space<vmem>>, vector<1x16x16x4xf32>
    %1 = vector.shape_cast %0 : vector<1x16x16x4xf32> to vector<16x16x4xf32>
    %c0_3 = arith.constant 0 : index
    %c0_4 = arith.constant 0 : index
    %2 = vector.load %arg4[%c0_3, %c0_4] : memref<1x4xf32, #tpu.memory_space<vmem>>, vector<1x4xf32>
    %3 = vector.shape_cast %2 : vector<1x4xf32> to vector<1x1x4xf32>
    %4 = vector.broadcast %3 : vector<1x1x4xf32> to vector<16x16x4xf32>
    %5 = arith.mulf %1, %4 : vector<16x16x4xf32>
    %c0_5 = arith.constant 0 : index
    %c0_6 = arith.constant 0 : index
    %6 = vector.load %arg5[%c0_5, %c0_6] : memref<1x4xf32, #tpu.memory_space<vmem>>, vector<1x4xf32>
    %7 = vector.shape_cast %6 : vector<1x4xf32> to vector<1x1x4xf32>
    %8 = vector.broadcast %7 : vector<1x1x4xf32> to vector<16x16x4xf32>
    %9 = arith.addf %5, %8 : vector<16x16x4xf32>
    %c0_7 = arith.constant 0 : index
    %c0_8 = arith.constant 0 : index
    %c0_9 = arith.constant 0 : index
    %c0_10 = arith.constant 0 : index
    %10 = vector.load %arg2[%c0_7, %c0_8, %c0_9, %c0_10] : memref<1x16x16x4xf32, #tpu.memory_space<vmem>>, vector<1x16x16x4xf32>
    %11 = vector.shape_cast %10 : vector<1x16x16x4xf32> to vector<16x16x4xf32>
    %12 = tpu.concatenate %11, %9 in 2 : vector<16x16x4xf32>, vector<16x16x4xf32> -> vector<16x16x8xf32>
    %13 = vector.shape_cast %12 : vector<16x16x8xf32> to vector<1x16x16x8xf32>
    %c0_11 = arith.constant 0 : index
    %c0_12 = arith.constant 0 : index
    %c0_13 = arith.constant 0 : index
    %c0_14 = arith.constant 0 : index
    %14 = vector.load %arg6[%c0_11, %c0_12, %c0_13, %c0_14] : memref<1x16x16x8xf32, #tpu.memory_space<vmem>>, vector<1x16x16x8xf32>
    tpu.vector_store %arg6[%c0_11, %c0_12, %c0_13, %c0_14], %13 {strides = array<i32>} : memref<1x16x16x8xf32, #tpu.memory_space<vmem>>, vector<1x16x16x8xf32>,
    return
  }
  func.func @transform_0(%arg0: i32, %arg1: i32) -> (i32, i32, i32, i32) {
    %c0_i32 = arith.constant 0 : i32
    %c0_i32_0 = arith.constant 0 : i32
    %c0_i32_1 = arith.constant 0 : i32
    return %arg0, %arg1, %c0_i32, %c0_i32_0 : i32, i32, i32, i32
  }
  func.func @transform_1(%arg0: i32, %arg1: i32) -> (i32, i32, i32, i32) {
    %c0_i32 = arith.constant 0 : i32
    %c0_i32_0 = arith.constant 0 : i32
    %c0_i32_1 = arith.constant 0 : i32
    return %arg0, %arg1, %c0_i32, %c0_i32_0 : i32, i32, i32, i32
  }
  func.func @transform_2(%arg0: i32, %arg1: i32) -> (i32, i32) {
    %c0_i32 = arith.constant 0 : i32
    %c0_i32_0 = arith.constant 0 : i32
    %c0_i32_1 = arith.constant 0 : i32
    return %c0_i32, %c0_i32_0 : i32, i32
  }
  func.func @transform_3(%arg0: i32, %arg1: i32) -> (i32, i32) {
    %c0_i32 = arith.constant 0 : i32
    %c0_i32_0 = arith.constant 0 : i32
    %c0_i32_1 = arith.constant 0 : i32
    return %c0_i32, %c0_i32_0 : i32, i32
  }
  func.func @transform_4(%arg0: i32, %arg1: i32) -> (i32, i32, i32, i32) {
    %c0_i32 = arith.constant 0 : i32
    %c0_i32_0 = arith.constant 0 : i32
    %c0_i32_1 = arith.constant 0 : i32
    return %arg0, %arg1, %c0_i32, %c0_i32_0 : i32, i32, i32, i32
  }
}

</mosaic_0001>

<llo_original>
// kernel: _lambda_.3
$region0: #{_lambda_.3}
  #allocation0 [shape = 'u32[]', space=smem, size = 0x4, offset = 0x4, fixed_abs, tag = 'smem constant byte address 0x4 - core index']
  #allocation1 [shape = 'u32[144,128]{1,0:T(1,128)}', space=vmem, size = 0x12000, scoped, tag = 'internal scratch']
  %s0 = inlined_call_operand.vmem [shape: f32[2,9,9,16], index: 0, kind: input, shape index: {}, may-alias: {0,1}]
  %s1 = inlined_call_operand.vmem [shape: f32[2,9,9,16], index: 1, kind: input, shape index: {}, may-alias: {0,1}]
  %s2 = inlined_call_operand.vmem [shape: bf16[4,16,8], index: 2, kind: input, shape index: {}]
  %s3 = inlined_call_operand.vmem [shape: f32[2,8,8,8], index: 3, kind: output, shape index: {}]
  %s4 = sld [smem:[#allocation0]]
  $region45: #{_lambda_.3} parent=0
    _
  %s6 = ssub.s32 1, %s4
  %s7 = scalar_select 0, %s6, %s4
  loop: start=0, step=1, limit=4
  $region2: #{_lambda_.3} parent=0 // loop_pre_header
    _
  $region3: #{_lambda_.3} parent=0 // loop_header
    %s9 = sphi 0, %s13
    %p10 = scmp.ge.s32.totalorder %s9, 4
    %s16 = sphi 0, %s28
    %s17 = sphi 0, %s24
    %s18 = sphi 0, %s16
    %s19 = sphi 0, %s17
    %s20 = sphi 0, %s18
    %s21 = sphi 0, %s19
    %s33 = sphi 0, %s35
    %s36 = sphi 0, %s33
    %s37 = sphi 0, %s36
    %s53 = sphi 0, %s37
    %s65 = sphi 0, %s67
    %s68 = sphi 0, %s65
    %s69 = sphi 0, %s68
    %s85 = sphi 0, %s69
    %s89 = sphi 0, %s89
    %s91 = sphi 0, %s89
    %s92 = sphi 0, %s91
    %s106 = sphi 0, %s92
    %s114 = sphi 0, %s116
    %s117 = sphi 0, %s114
    %s118 = sphi 0, %s117
    %s134 = sphi 0, %s118
  $region4: #{_lambda_.3} parent=0 // loop_header_branch
    %12 = sbr.rel (%p10) target = $region8
  $region5: #{_lambda_.3} parent=0 // loop_body
    %s14 = ssub.s32 %s9, 1
    %s15 = ssub.s32 %s9, 2
    %s22 = sadd.s32 1, %s17
    %p23 = scmp.ge.s32.totalorder %s22, 1
    %s24 = scalar_select %p23, 0, %s22
    %s25 = sadd.s32 1, %s16
    %s26 = scalar_select %p23, %s25, %s16
    %p27 = scmp.ge.s32.totalorder %s26, 2
    %s28 = scalar_select %p27, 0, %s26
    %s29 = ssub.s32 %s16, %s28
    %s30 = ssub.s32 %s17, %s24
    %s31 = sor.u32 %s29, %s30
    %p32 = scmp.eq.s32.totalorder %s31, 0
    %s34 = sadd.s32 %s33, 1
    %s35 = scalar_select %p32, %s33, %s34
    %p38 = pneg %p32
    %p39 = scmp.eq.s32.totalorder %s9, 1
    %p40 = por %p38, %p39
    %p41 = scmp.ne.s32.totalorder %s33, %s36
    %p42 = scmp.eq.s32.totalorder %s9, 0
    %p43 = por %p41, %p42
    %p44 = scmp.ne.s32.totalorder %s33, %s36
    %p45 = scmp.eq.s32.totalorder %s14, 1
    %p46 = por %p44, %p45
    %p47 = scmp.ne.s32.totalorder %s36, %s37
    %p48 = scmp.eq.s32.totalorder %s14, 0
    %p49 = por %p47, %p48
    %p50 = scmp.ne.s32.totalorder %s36, %s37
    %p51 = scmp.eq.s32.totalorder %s15, 1
    %p52 = por %p50, %p51
    %p54 = scmp.ne.s32.totalorder %s37, %s53
    %p55 = scmp.eq.s32.totalorder %s15, 0
    %p56 = por %p54, %p55
    %s57 = smul.u32 %s17, 8
    %s58 = sadd.s32 %s57, 8
    %s59 = smul.u32 %s24, 8
    %s60 = sadd.s32 %s59, 8
    %s61 = ssub.s32 %s16, %s28
    %s62 = ssub.s32 %s58, %s60
    %s63 = sor.u32 %s61, %s62
    %p64 = scmp.eq.s32.totalorder %s63, 0
    %s66 = sadd.s32 %s65, 1
    %s67 = scalar_select %p64, %s65, %s66
    %p70 = pneg %p64
    %p71 = scmp.eq.s32.totalorder %s9, 1
    %p72 = por %p70, %p71
    %p73 = scmp.ne.s32.totalorder %s65, %s68
    %p74 = scmp.eq.s32.totalorder %s9, 0
    %p75 = por %p73, %p74
    %p76 = scmp.ne.s32.totalorder %s65, %s68
    %p77 = scmp.eq.s32.totalorder %s14, 1
    %p78 = por %p76, %p77
    %p79 = scmp.ne.s32.totalorder %s68, %s69
    %p80 = scmp.eq.s32.totalorder %s14, 0
    %p81 = por %p79, %p80
    %p82 = scmp.ne.s32.totalorder %s68, %s69
    %p83 = scmp.eq.s32.totalorder %s15, 1
    %p84 = por %p82, %p83
    %p86 = scmp.ne.s32.totalorder %s69, %s85
    %p87 = scmp.eq.s32.totalorder %s15, 0
    %p88 = por %p86, %p87
    %s90 = sadd.s32 %s89, 1
    %p93 = scmp.eq.s32.totalorder %s9, 1
    %p94 = scmp.ne.s32.totalorder %s89, %s91
    %p95 = scmp.eq.s32.totalorder %s9, 0
    %p96 = por %p94, %p95
    %p97 = scmp.ne.s32.totalorder %s89, %s91
    %p98 = scmp.eq.s32.totalorder %s14, 1
    %p99 = por %p97, %p98
    %p100 = scmp.ne.s32.totalorder %s91, %s92
    %p101 = scmp.eq.s32.totalorder %s14, 0
    %p102 = por %p100, %p101
    %p103 = scmp.ne.s32.totalorder %s91, %s92
    %p104 = scmp.eq.s32.totalorder %s15, 1
    %p105 = por %p103, %p104
    %p107 = scmp.ne.s32.totalorder %s92, %s106
    %p108 = scmp.eq.s32.totalorder %s15, 0
    %p109 = por %p107, %p108
    %s110 = ssub.s32 %s16, %s28
    %s111 = ssub.s32 %s17, %s24
    %s112 = sor.u32 %s110, %s111
    %p113 = scmp.eq.s32.totalorder %s112, 0
    %s115 = sadd.s32 %s114, 1
    %s116 = scalar_select %p113, %s114, %s115
    %p119 = pneg %p113
    %p120 = scmp.eq.s32.totalorder %s9, 1
    %p121 = por %p119, %p120
    %p122 = scmp.ne.s32.totalorder %s114, %s117
    %p123 = scmp.eq.s32.totalorder %s9, 0
    %p124 = por %p122, %p123
    %p125 = scmp.ne.s32.totalorder %s114, %s117
    %p126 = scmp.eq.s32.totalorder %s14, 1
    %p127 = por %p125, %p126
    %p128 = scmp.ne.s32.totalorder %s117, %s118
    %p129 = scmp.eq.s32.totalorder %s14, 0
    %p130 = por %p128, %p129
    %p131 = scmp.ne.s32.totalorder %s117, %s118
    %p132 = scmp.eq.s32.totalorder %s15, 1
    %p133 = por %p131, %p132
    %p135 = scmp.ne.s32.totalorder %s118, %s134
    %p136 = scmp.eq.s32.totalorder %s15, 0
    %p137 = por %p135, %p136
    %p138 = scmp.le.s32.totalorder 1, %s9
    %p139 = scmp.lt.s32.totalorder %s9, 3
    %p140 = pnand %p138, %p139
    %p141 = pneg %p140
    // Predicated region
    $region9: #{_lambda_.3} parent=5 // pred_check
      _
    $region10: #{_lambda_.3} parent=5 // pred_check_branch
      %143 = sbr.rel (%p140) target = $region12
    $region11: #{_lambda_.3} parent=5 // pred_region
      %s144 = ssub.s32 %s9, 1
      // Predicated region
      $region13: #{_lambda_.3} parent=11 // pred_check
        %p145 = pneg %p102
      $region14: #{_lambda_.3} parent=11 // pred_check_branch
        %147 = sbr.rel (%p145) target = $region16
      $region15: #{_lambda_.3} parent=11 // pred_region
        _
      $region16: #{_lambda_.3} parent=11 // pred_fallthru
        _
    $region12: #{_lambda_.3} parent=5 // pred_fallthru
      _
    %p148 = scmp.lt.s32.totalorder %s9, 2
    // Predicated region
    $region17: #{_lambda_.3} parent=5 // pred_check
      %p149 = pneg %p148
    $region18: #{_lambda_.3} parent=5 // pred_check_branch
      %151 = sbr.rel (%p149) target = $region20
    $region19: #{_lambda_.3} parent=5 // pred_region
      // Predicated region
      $region21: #{_lambda_.3} parent=19 // pred_check
        %p152 = pneg %p43
      $region22: #{_lambda_.3} parent=19 // pred_check_branch
        %154 = sbr.rel (%p152) target = $region24
      $region23: #{_lambda_.3} parent=19 // pred_region
        %s155 = smul.u32 8, %s17
        %s156 = ssub.s32 9, %s155
        %p157 = scmp.lt.s32.totalorder %s156, 8
        %s158 = scalar_select %p157, %s156, 8
        %s159 = smul.u32 128, %s158
        %s160 = smul.u32 %s159, 2
        %p161 = scmp.lt.s32.totalorder %s16, 1
        %s162 = scalar_select %p161, %s16, 1
        %p163 = scmp.lt.s32.totalorder %s155, 8
        %s164 = scalar_select %p163, %s155, 8
        %s165 = smul.addr %s164, 2
        %s166 = smul.addr %s162, 18
        %s167 = sadd.s32 %s165, %s166
        %s168 = smul.addr %s167, 8
        %s169 = scalar_lea.vmem %s0, %s168
        %s170 = smul.u32 8, %s17
        %s171 = ssub.s32 9, %s170
        %p172 = scmp.lt.s32.totalorder %s171, 8
        %s173 = scalar_select %p172, %s171, 8
        %s174 = smul.u32 128, %s173
        %s175 = smul.u32 %s174, 2
      $region24: #{_lambda_.3} parent=19 // pred_fallthru
        _
      // Predicated region
      $region25: #{_lambda_.3} parent=19 // pred_check
        %p176 = pneg %p75
      $region26: #{_lambda_.3} parent=19 // pred_check_branch
        %178 = sbr.rel (%p176) target = $region28
      $region27: #{_lambda_.3} parent=19 // pred_region
        %s179 = smul.u32 %s17, 8
        %s180 = sadd.s32 %s179, 8
        %p181 = scmp.lt.s32.totalorder %s16, 1
        %s182 = scalar_select %p181, %s16, 1
        %p183 = scmp.lt.s32.totalorder %s180, 8
        %s184 = scalar_select %p183, %s180, 8
        %s185 = smul.addr %s184, 2
        %s186 = smul.addr %s182, 18
        %s187 = sadd.s32 %s185, %s186
        %s188 = smul.addr %s187, 8
        %s189 = scalar_lea.vmem %s1, %s188
        %s190 = smul.u32 %s17, 8
        %s191 = sadd.s32 %s190, 8
      $region28: #{_lambda_.3} parent=19 // pred_fallthru
        _
    $region20: #{_lambda_.3} parent=5 // pred_fallthru
      _
    %p192 = scmp.le.s32.totalorder 1, %s9
    %p193 = scmp.lt.s32.totalorder %s9, 3
    %p194 = pnand %p192, %p193
    %p195 = pneg %p194
    // Predicated region
    $region29: #{_lambda_.3} parent=5 // pred_check
      _
    $region30: #{_lambda_.3} parent=5 // pred_check_branch
      %197 = sbr.rel (%p194) target = $region32
    $region31: #{_lambda_.3} parent=5 // pred_region
      %s198 = ssub.s32 %s9, 1
      %s199 = smul.u32 8, %s19
      %s200 = ssub.s32 9, %s199
      %p201 = scmp.lt.s32.totalorder %s200, 8
      %s202 = scalar_select %p201, %s200, 8
      %s203 = smul.u32 128, %s202
      %s204 = smul.u32 %s203, 2
      %p205 = scmp.lt.s32.totalorder %s18, 1
      %s206 = scalar_select %p205, %s18, 1
      %p207 = scmp.lt.s32.totalorder %s199, 8
      %s208 = scalar_select %p207, %s199, 8
      %s209 = smul.addr %s208, 2
      %s210 = smul.addr %s206, 18
      %s211 = sadd.s32 %s209, %s210
      %s212 = smul.addr %s211, 8
      %s213 = scalar_lea.vmem %s0, %s212
      %p214 = pneg %p49
      %p215 = pneg %p46
      %s216 = smul.u32 %s19, 8
      %s217 = sadd.s32 %s216, 8
      %p218 = scmp.lt.s32.totalorder %s18, 1
      %s219 = scalar_select %p218, %s18, 1
      %p220 = scmp.lt.s32.totalorder %s217, 8
      %s221 = scalar_select %p220, %s217, 8
      %s222 = smul.addr %s221, 2
      %s223 = smul.addr %s219, 18
      %s224 = sadd.s32 %s222, %s223
      %s225 = smul.addr %s224, 8
      %s226 = scalar_lea.vmem %s1, %s225
      %p227 = pneg %p81
      %p228 = pneg %p78
      %p229 = pneg %p102
      %p230 = pneg %p99
      %p231 = pneg %p130
      %p232 = pneg %p127
      %s233 = smul.u32 8, %s19
      %p234 = scmp.lt.s32.totalorder %s18, 1
      %s235 = scalar_select %p234, %s18, 1
      %p236 = scmp.lt.s32.totalorder %s233, 7
      %s237 = scalar_select %p236, %s233, 7
      %s238 = smul.addr %s235, 8
      %s239 = sadd.s32 %s237, %s238
      %s240 = smul.addr %s239, 8
      %s241 = scalar_lea.vmem %s3, %s240
      %s242 = smul.u32 8, %s19
      %s243 = ssub.s32 9, %s242
      %p244 = scmp.lt.s32.totalorder %s243, 8
      %s245 = scalar_select %p244, %s243, 8
      %s246 = smul.u32 128, %s245
      %s247 = smul.u32 %s246, 2
      %p248 = scmp.lt.s32.totalorder %s18, 1
      %s249 = scalar_select %p248, %s18, 1
      %p250 = scmp.lt.s32.totalorder %s242, 8
      %s251 = scalar_select %p250, %s242, 8
      %s252 = smul.addr %s251, 2
      %s253 = smul.addr %s249, 18
      %s254 = sadd.s32 %s252, %s253
      %s255 = smul.addr %s254, 8
      %s256 = scalar_lea.vmem %s0, %s255
      %s257 = smul.u32 8, %s19
      %s258 = ssub.s32 9, %s257
      %p259 = scmp.lt.s32.totalorder %s258, 8
      %s260 = scalar_select %p259, %s258, 8
      %s261 = smul.u32 128, %s260
      %s262 = smul.u32 %s261, 2
      %s263 = smul.u32 %s19, 8
      %s264 = sadd.s32 %s263, 8
      %p265 = scmp.lt.s32.totalorder %s18, 1
      %s266 = scalar_select %p265, %s18, 1
      %p267 = scmp.lt.s32.totalorder %s264, 8
      %s268 = scalar_select %p267, %s264, 8
      %s269 = smul.addr %s268, 2
      %s270 = smul.addr %s266, 18
      %s271 = sadd.s32 %s269, %s270
      %s272 = smul.addr %s271, 8
      %s273 = scalar_lea.vmem %s1, %s272
      %s274 = smul.u32 %s19, 8
      %s275 = sadd.s32 %s274, 8
      %s276 = smul.u32 8, %s19
      %p277 = scmp.lt.s32.totalorder %s18, 1
      %s278 = scalar_select %p277, %s18, 1
      %p279 = scmp.lt.s32.totalorder %s276, 7
      %s280 = scalar_select %p279, %s276, 7
      %s281 = smul.addr %s278, 8
      %s282 = sadd.s32 %s280, %s281
      %s283 = smul.addr %s282, 8
      %s284 = scalar_lea.vmem %s3, %s283
      %s285 = smul.u32 8, %s19
      %v287 = vld [vmem:[%s256] sm:$0xff]
      %v288 = vld [vmem:[%s256 + $0x8] sm:$0x1]
      %v289 = vld [vmem:[%s256 + $0x10] sm:$0xff]
      %v290 = vld [vmem:[%s256 + $0x18] sm:$0x1]
      %v291 = vld [vmem:[%s256 + $0x20] sm:$0xff]
      %v292 = vld [vmem:[%s256 + $0x28] sm:$0x1]
      %v293 = vld [vmem:[%s256 + $0x30] sm:$0xff]
      %v294 = vld [vmem:[%s256 + $0x38] sm:$0x1]
      %v295 = vld [vmem:[%s256 + $0x40] sm:$0xff]
      %v296 = vld [vmem:[%s256 + $0x48] sm:$0x1]
      %v297 = vld [vmem:[%s256 + $0x50] sm:$0xff]
      %v298 = vld [vmem:[%s256 + $0x58] sm:$0x1]
      %v299 = vld [vmem:[%s256 + $0x60] sm:$0xff]
      %v300 = vld [vmem:[%s256 + $0x68] sm:$0x1]
      %v301 = vld [vmem:[%s256 + $0x70] sm:$0xff]
      %v302 = vld [vmem:[%s256 + $0x78] sm:$0x1]
      %v303 = vld [vmem:[%s273] sm:$0xff]
      %v304 = vld [vmem:[%s273 + $0x8] sm:$0x1]
      %vm305 = vcmp.ge.f32.partialorder %v287, 0.0
      %vm306 = vcmp.ge.f32.partialorder %v288, 0.0
      %vm307 = vcmp.ge.f32.partialorder %v289, 0.0
      %vm308 = vcmp.ge.f32.partialorder %v290, 0.0
      %vm309 = vcmp.ge.f32.partialorder %v291, 0.0
      %vm310 = vcmp.ge.f32.partialorder %v292, 0.0
      %vm311 = vcmp.ge.f32.partialorder %v293, 0.0
      %vm312 = vcmp.ge.f32.partialorder %v294, 0.0
      %vm313 = vcmp.ge.f32.partialorder %v295, 0.0
      %vm314 = vcmp.ge.f32.partialorder %v296, 0.0
      %vm315 = vcmp.ge.f32.partialorder %v297, 0.0
      %vm316 = vcmp.ge.f32.partialorder %v298, 0.0
      %vm317 = vcmp.ge.f32.partialorder %v299, 0.0
      %vm318 = vcmp.ge.f32.partialorder %v300, 0.0
      %vm319 = vcmp.ge.f32.partialorder %v301, 0.0
      %vm320 = vcmp.ge.f32.partialorder %v302, 0.0
      %vm321 = vcmp.ge.f32.partialorder %v303, 0.0
      %vm322 = vcmp.ge.f32.partialorder %v304, 0.0
      %v323 = vmul.f32 %v287, 0.2
      %v324 = vmul.f32 %v288, 0.2
      %v325 = vmul.f32 %v289, 0.2
      %v326 = vmul.f32 %v290, 0.2
      %v327 = vmul.f32 %v291, 0.2
      %v328 = vmul.f32 %v292, 0.2
      %v329 = vmul.f32 %v293, 0.2
      %v330 = vmul.f32 %v294, 0.2
      %v331 = vmul.f32 %v295, 0.2
      %v332 = vmul.f32 %v296, 0.2
      %v333 = vmul.f32 %v297, 0.2
      %v334 = vmul.f32 %v298, 0.2
      %v335 = vmul.f32 %v299, 0.2
      %v336 = vmul.f32 %v300, 0.2
      %v337 = vmul.f32 %v301, 0.2
      %v338 = vmul.f32 %v302, 0.2
      %v339 = vmul.f32 %v303, 0.2
      %v340 = vmul.f32 %v304, 0.2
      %v341 = vsel %vm305, %v287, %v323
      %v342 = vsel %vm306, %v288, %v324
      %v343 = vsel %vm307, %v289, %v325
      %v344 = vsel %vm308, %v290, %v326
      %v345 = vsel %vm309, %v291, %v327
      %v346 = vsel %vm310, %v292, %v328
      %v347 = vsel %vm311, %v293, %v329
      %v348 = vsel %vm312, %v294, %v330
      %v349 = vsel %vm313, %v295, %v331
      %v350 = vsel %vm314, %v296, %v332
      %v351 = vsel %vm315, %v297, %v333
      %v352 = vsel %vm316, %v298, %v334
      %v353 = vsel %vm317, %v299, %v335
      %v354 = vsel %vm318, %v300, %v336
      %v355 = vsel %vm319, %v301, %v337
      %v356 = vsel %vm320, %v302, %v338
      %v357 = vsel %vm321, %v303, %v339
      %v358 = vsel %vm322, %v304, %v340
      %v359 = vpack.c.bf16 %v342, %v341
      %v360 = vpack.c.bf16 %v344, %v343
      %v361 = vpack.c.bf16 %v346, %v345
      %v362 = vpack.c.bf16 %v348, %v347
      %v363 = vpack.c.bf16 %v350, %v349
      %v364 = vpack.c.bf16 %v352, %v351
      %v365 = vpack.c.bf16 %v354, %v353
      %v366 = vpack.c.bf16 %v356, %v355
      %v367 = vpack.c.bf16 %v358, %v357
      %v368 = vld [vmem:[%s2] sm:$0xf]
      %v369 = vld [vmem:[%s2 + $0x4] sm:$0xf]
      %v378 = vunpack.c.l.b16 %v359
      %v379 = vunpack.c.h.b16 %v359
      %v380 = vunpack.c.l.b16 %v360
      %v381 = vunpack.c.h.b16 %v360
      %v382 = vunpack.c.l.b16 %v361
      %v383 = vunpack.c.h.b16 %v361
      %v384 = vunpack.c.l.b16 %v362
      %v385 = vunpack.c.h.b16 %v362
      %v386 = vunpack.c.l.b16 %v363
      %v387 = vunpack.c.h.b16 %v363
      %v388 = vunpack.c.l.b16 %v364
      %v389 = vunpack.c.h.b16 %v364
      %v390 = vunpack.c.l.b16 %v365
      %v391 = vunpack.c.h.b16 %v365
      %v392 = vunpack.c.l.b16 %v366
      %v393 = vunpack.c.h.b16 %v366
      %v394 = vpack.c.b16 %v378, %v378
      %v395 = vpack.c.b16 %v379, %v379
      %v396 = vpack.c.b16 %v380, %v380
      %v397 = vpack.c.b16 %v381, %v381
      %v398 = vpack.c.b16 %v382, %v382
      %v399 = vpack.c.b16 %v383, %v383
      %v400 = vpack.c.b16 %v384, %v384
      %v401 = vpack.c.b16 %v385, %v385
      %v402 = vpack.c.b16 %v386, %v386
      %v403 = vpack.c.b16 %v387, %v387
      %v404 = vpack.c.b16 %v388, %v388
      %v405 = vpack.c.b16 %v389, %v389
      %v406 = vpack.c.b16 %v390, %v390
      %v407 = vpack.c.b16 %v391, %v391
      %v408 = vpack.c.b16 %v392, %v392
      %v409 = vpack.c.b16 %v393, %v393
      %vm410 = vsmask.f32 3328
      %vm411 = vsmask.f32 7440
      %vm412 = vmor %vm410, %vm411
      %v414 = vshrl.u32 %v394, 16
      %v416 = vrot.slane %v414, 4
      %v417 = vshll.u32 %v394, 16
      %v419 = vrot.slane %v417, 5
      %v420 = vor.u32 %v416, %v419
      %v421 = vrot.slane %v420, 4
      %v423 = vshll.u32 %v395, 16
      %v425 = vrot.slane %v423, 5
      %v426 = vsel %vm412, %v421, %v425
      %v428 = vshrl.u32 %v396, 16
      %v430 = vrot.slane %v428, 4
      %v431 = vshll.u32 %v396, 16
      %v433 = vrot.slane %v431, 5
      %v434 = vor.u32 %v430, %v433
      %v435 = vrot.slane %v434, 4
      %v437 = vshll.u32 %v397, 16
      %v439 = vrot.slane %v437, 5
      %v440 = vsel %vm412, %v435, %v439
      %v442 = vshrl.u32 %v398, 16
      %v444 = vrot.slane %v442, 4
      %v445 = vshll.u32 %v398, 16
      %v447 = vrot.slane %v445, 5
      %v448 = vor.u32 %v444, %v447
      %v449 = vrot.slane %v448, 4
      %v451 = vshll.u32 %v399, 16
      %v453 = vrot.slane %v451, 5
      %v454 = vsel %vm412, %v449, %v453
      %v456 = vshrl.u32 %v400, 16
      %v458 = vrot.slane %v456, 4
      %v459 = vshll.u32 %v400, 16
      %v461 = vrot.slane %v459, 5
      %v462 = vor.u32 %v458, %v461
      %v463 = vrot.slane %v462, 4
      %v465 = vshll.u32 %v401, 16
      %v467 = vrot.slane %v465, 5
      %v468 = vsel %vm412, %v463, %v467
      %v470 = vshrl.u32 %v402, 16
      %v472 = vrot.slane %v470, 4
      %v473 = vshll.u32 %v402, 16
      %v475 = vrot.slane %v473, 5
      %v476 = vor.u32 %v472, %v475
      %v477 = vrot.slane %v476, 4
      %v479 = vshll.u32 %v403, 16
      %v481 = vrot.slane %v479, 5
      %v482 = vsel %vm412, %v477, %v481
      %v484 = vshrl.u32 %v404, 16
      %v486 = vrot.slane %v484, 4
      %v487 = vshll.u32 %v404, 16
      %v489 = vrot.slane %v487, 5
      %v490 = vor.u32 %v486, %v489
      %v491 = vrot.slane %v490, 4
      %v493 = vshll.u32 %v405, 16
      %v495 = vrot.slane %v493, 5
      %v496 = vsel %vm412, %v491, %v495
      %v498 = vshrl.u32 %v406, 16
      %v500 = vrot.slane %v498, 4
      %v501 = vshll.u32 %v406, 16
      %v503 = vrot.slane %v501, 5
      %v504 = vor.u32 %v500, %v503
      %v505 = vrot.slane %v504, 4
      %v507 = vshll.u32 %v407, 16
      %v509 = vrot.slane %v507, 5
      %v510 = vsel %vm412, %v505, %v509
      %v512 = vshrl.u32 %v408, 16
      %v514 = vrot.slane %v512, 4
      %v515 = vshll.u32 %v408, 16
      %v517 = vrot.slane %v515, 5
      %v518 = vor.u32 %v514, %v517
      %v519 = vrot.slane %v518, 4
      %v521 = vshll.u32 %v409, 16
      %v523 = vrot.slane %v521, 5
      %v524 = vsel %vm412, %v519, %v523
      %s525 = scalar_lea.vmem %s2, 8
      %v526 = vld [vmem:[%s525] sm:$0xf]
      %v527 = vld [vmem:[%s525 + $0x4] sm:$0xf]
      %v528 = vunpack.c.l.b16 %v426
      %v529 = vunpack.c.l.b16 %v440
      %v530 = vunpack.c.l.b16 %v454
      %v531 = vunpack.c.l.b16 %v468
      %v532 = vunpack.c.l.b16 %v482
      %v533 = vunpack.c.l.b16 %v496
      %v534 = vunpack.c.l.b16 %v510
      %v535 = vunpack.c.l.b16 %v524
      %v536 = vpack.c.b16 %v529, %v528
      %v537 = vpack.c.b16 %v531, %v530
      %v538 = vpack.c.b16 %v533, %v532
      %v539 = vpack.c.b16 %v535, %v534
      %v542 = vunpack.c.l.b16 %v526
      %v543 = vunpack.c.l.b16 %v527
      %v544 = vpack.c.b16 %v543, %v542
      %vm546 = vcmask 130048
      %v548 = vsel %vm546, %v536, 0
      %v551 = vsel %vm546, %v537, 0
      %v554 = vsel %vm546, %v538, 0
      %v557 = vsel %vm546, %v539, 0
      %559 = vmatprep.subr.bf16.mxu0 0
      %560 = vmatpush1.bf16.msra.mxu0 %v544
      %561 = vmatprep.subr.bf16.mxu0 0
      %562 = vmatpush1.bf16.msra.mxu0 0
      %563 = vmatprep.subr.bf16.mxu0 0
      %564 = vmatpush1.bf16.msra.mxu0 0
      %565 = vmatprep.subr.bf16.mxu0 0
      %566 = vmatpush1.bf16.msra.mxu0 0
      %567 = vmatprep.subr.bf16.mxu0 0
      %568 = vmatpush1.bf16.msra.mxu0 0
      %569 = vmatprep.subr.bf16.mxu0 0
      %570 = vmatpush1.bf16.msra.mxu0 0
      %571 = vmatprep.subr.bf16.mxu0 0
      %572 = vmatpush1.bf16.msra.mxu0 0
      %573 = vmatprep.subr.bf16.mxu0 0
      %574 = vmatpush1.bf16.msra.mxu0 0
      %575 = vmatprep.subr.bf16.mxu0 0
      %576 = vmatpush1.bf16.msra.mxu0 0
      %577 = vmatprep.subr.bf16.mxu0 0
      %578 = vmatpush1.bf16.msra.mxu0 0
      %579 = vmatprep.subr.bf16.mxu0 0
      %580 = vmatpush1.bf16.msra.mxu0 0
      %581 = vmatprep.subr.bf16.mxu0 0
      %582 = vmatpush1.bf16.msra.mxu0 0
      %583 = vmatprep.subr.bf16.mxu0 0
      %584 = vmatpush1.bf16.msra.mxu0 0
      %585 = vmatprep.subr.bf16.mxu0 0
      %586 = vmatpush1.bf16.msra.mxu0 0
      %587 = vmatprep.subr.bf16.mxu0 0
      %588 = vmatpush1.bf16.msra.mxu0 0
      %589 = vmatprep.subr.bf16.mxu0 0
      %590 = vmatpush1.bf16.msra.mxu0 0
      %591 = vmatprep.mubr.bf16.mxu0 0
      %592 = vmatmul.mubr.bf16.gmra.mrb[0].mxu0 %v548
      %v593 = vpop.f32.mrb[0].mxu0
      %v594 = vadd.f32 0.0, %v593
      %v595 = vpop.f32.mrb[0].mxu0
      %v596 = vpop.f32.mrb[0].mxu0
      %v597 = vadd.f32 0.0, %v596
      %v598 = vpop.f32.mrb[0].mxu0
      %599 = vmatprep.mubr.bf16.mxu0 0
      %600 = vmatmul.mubr.bf16.gmra.mrb[0].mxu0 %v551
      %v601 = vpop.f32.mrb[0].mxu0
      %v602 = vadd.f32 0.0, %v601
      %v603 = vpop.f32.mrb[0].mxu0
      %v604 = vpop.f32.mrb[0].mxu0
      %v605 = vadd.f32 0.0, %v604
      %v606 = vpop.f32.mrb[0].mxu0
      %607 = vmatprep.mubr.bf16.mxu0 0
      %608 = vmatmul.mubr.bf16.gmra.mrb[0].mxu0 %v554
      %v609 = vpop.f32.mrb[0].mxu0
      %v610 = vadd.f32 0.0, %v609
      %v611 = vpop.f32.mrb[0].mxu0
      %v612 = vpop.f32.mrb[0].mxu0
      %v613 = vadd.f32 0.0, %v612
      %v614 = vpop.f32.mrb[0].mxu0
      %615 = vmatprep.mubr.bf16.mxu0 0
      %616 = vmatmul.mubr.bf16.gmra.mrb[0].mxu0 %v557
      %v617 = vpop.f32.mrb[0].mxu0
      %v618 = vadd.f32 0.0, %v617
      %v619 = vpop.f32.mrb[0].mxu0
      %v620 = vpop.f32.mrb[0].mxu0
      %v621 = vadd.f32 0.0, %v620
      %v622 = vpop.f32.mrb[0].mxu0
      %623 = vdwg.mxu0
      %v624 = vpack.c.b16 %v380, %v378
      %v625 = vpack.c.b16 %v384, %v382
      %v626 = vpack.c.b16 %v388, %v386
      %v627 = vpack.c.b16 %v392, %v390
      %v630 = vunpack.c.l.b16 %v368
      %v631 = vunpack.c.l.b16 %v369
      %v632 = vpack.c.b16 %v631, %v630
      %v635 = vsel %vm546, %v624, 0
      %v638 = vsel %vm546, %v625, 0
      %v641 = vsel %vm546, %v626, 0
      %v644 = vsel %vm546, %v627, 0
      %646 = vmatprep.subr.bf16.mxu0 0
      %647 = vmatpush1.bf16.msra.mxu0 %v632
      %648 = vmatprep.subr.bf16.mxu0 0
      %649 = vmatpush1.bf16.msra.mxu0 0
      %650 = vmatprep.subr.bf16.mxu0 0
      %651 = vmatpush1.bf16.msra.mxu0 0
      %652 = vmatprep.subr.bf16.mxu0 0
      %653 = vmatpush1.bf16.msra.mxu0 0
      %654 = vmatprep.subr.bf16.mxu0 0
      %655 = vmatpush1.bf16.msra.mxu0 0
      %656 = vmatprep.subr.bf16.mxu0 0
      %657 = vmatpush1.bf16.msra.mxu0 0
      %658 = vmatprep.subr.bf16.mxu0 0
      %659 = vmatpush1.bf16.msra.mxu0 0
      %660 = vmatprep.subr.bf16.mxu0 0
      %661 = vmatpush1.bf16.msra.mxu0 0
      %662 = vmatprep.subr.bf16.mxu0 0
      %663 = vmatpush1.bf16.msra.mxu0 0
      %664 = vmatprep.subr.bf16.mxu0 0
      %665 = vmatpush1.bf16.msra.mxu0 0
      %666 = vmatprep.subr.bf16.mxu0 0
      %667 = vmatpush1.bf16.msra.mxu0 0
      %668 = vmatprep.subr.bf16.mxu0 0
      %669 = vmatpush1.bf16.msra.mxu0 0
      %670 = vmatprep.subr.bf16.mxu0 0
      %671 = vmatpush1.bf16.msra.mxu0 0
      %672 = vmatprep.subr.bf16.mxu0 0
      %673 = vmatpush1.bf16.msra.mxu0 0
      %674 = vmatprep.subr.bf16.mxu0 0
      %675 = vmatpush1.bf16.msra.mxu0 0
      %676 = vmatprep.subr.bf16.mxu0 0
      %677 = vmatpush1.bf16.msra.mxu0 0
      %678 = vmatprep.mubr.bf16.mxu0 0
      %679 = vmatmul.mubr.bf16.gmra.mrb[0].mxu0 %v635
      %v680 = vpop.f32.mrb[0].mxu0
      %v681 = vadd.f32 %v594, %v680
      %v682 = vpop.f32.mrb[0].mxu0
      %v683 = vpop.f32.mrb[0].mxu0
      %v684 = vadd.f32 %v597, %v683
      %v685 = vpop.f32.mrb[0].mxu0
      %686 = vmatprep.mubr.bf16.mxu0 0
      %687 = vmatmul.mubr.bf16.gmra.mrb[0].mxu0 %v638
      %v688 = vpop.f32.mrb[0].mxu0
      %v689 = vadd.f32 %v602, %v688
      %v690 = vpop.f32.mrb[0].mxu0
      %v691 = vpop.f32.mrb[0].mxu0
      %v692 = vadd.f32 %v605, %v691
      %v693 = vpop.f32.mrb[0].mxu0
      %694 = vmatprep.mubr.bf16.mxu0 0
      %695 = vmatmul.mubr.bf16.gmra.mrb[0].mxu0 %v641
      %v696 = vpop.f32.mrb[0].mxu0
      %v697 = vadd.f32 %v610, %v696
      %v698 = vpop.f32.mrb[0].mxu0
      %v699 = vpop.f32.mrb[0].mxu0
      %v700 = vadd.f32 %v613, %v699
      %v701 = vpop.f32.mrb[0].mxu0
      %702 = vmatprep.mubr.bf16.mxu0 0
      %703 = vmatmul.mubr.bf16.gmra.mrb[0].mxu0 %v644
      %v704 = vpop.f32.mrb[0].mxu0
      %v705 = vadd.f32 %v618, %v704
      %v706 = vpop.f32.mrb[0].mxu0
      %v707 = vpop.f32.mrb[0].mxu0
      %v708 = vadd.f32 %v621, %v707
      %v709 = vpop.f32.mrb[0].mxu0
      %710 = vdwg.mxu0
      %s711 = scalar_lea.vmem %s2, 16
      %v712 = vld [vmem:[%s711] sm:$0xf]
      %v713 = vld [vmem:[%s711 + $0x4] sm:$0xf]
      %v715 = vunpack.c.l.b16 %v367
      %v716 = vpack.c.b16 %v382, %v380
      %v717 = vpack.c.b16 %v386, %v384
      %v718 = vpack.c.b16 %v390, %v388
      %v719 = vpack.c.b16 %v715, %v392
      %v722 = vunpack.c.l.b16 %v712
      %v723 = vunpack.c.l.b16 %v713
      %v724 = vpack.c.b16 %v723, %v722
      %v727 = vsel %vm546, %v716, 0
      %v730 = vsel %vm546, %v717, 0
      %v733 = vsel %vm546, %v718, 0
      %v736 = vsel %vm546, %v719, 0
      %738 = vmatprep.subr.bf16.mxu0 0
      %739 = vmatpush1.bf16.msra.mxu0 %v724
      %740 = vmatprep.subr.bf16.mxu0 0
      %741 = vmatpush1.bf16.msra.mxu0 0
      %742 = vmatprep.subr.bf16.mxu0 0
      %743 = vmatpush1.bf16.msra.mxu0 0
      %744 = vmatprep.subr.bf16.mxu0 0
      %745 = vmatpush1.bf16.msra.mxu0 0
      %746 = vmatprep.subr.bf16.mxu0 0
      %747 = vmatpush1.bf16.msra.mxu0 0
      %748 = vmatprep.subr.bf16.mxu0 0
      %749 = vmatpush1.bf16.msra.mxu0 0
      %750 = vmatprep.subr.bf16.mxu0 0
      %751 = vmatpush1.bf16.msra.mxu0 0
      %752 = vmatprep.subr.bf16.mxu0 0
      %753 = vmatpush1.bf16.msra.mxu0 0
      %754 = vmatprep.subr.bf16.mxu0 0
      %755 = vmatpush1.bf16.msra.mxu0 0
      %756 = vmatprep.subr.bf16.mxu0 0
      %757 = vmatpush1.bf16.msra.mxu0 0
      %758 = vmatprep.subr.bf16.mxu0 0
      %759 = vmatpush1.bf16.msra.mxu0 0
      %760 = vmatprep.subr.bf16.mxu0 0
      %761 = vmatpush1.bf16.msra.mxu0 0
      %762 = vmatprep.subr.bf16.mxu0 0
      %763 = vmatpush1.bf16.msra.mxu0 0
      %764 = vmatprep.subr.bf16.mxu0 0
      %765 = vmatpush1.bf16.msra.mxu0 0
      %766 = vmatprep.subr.bf16.mxu0 0
      %767 = vmatpush1.bf16.msra.mxu0 0
      %768 = vmatprep.subr.bf16.mxu0 0
      %769 = vmatpush1.bf16.msra.mxu0 0
      %770 = vmatprep.mubr.bf16.mxu0 0
      %771 = vmatmul.mubr.bf16.gmra.mrb[0].mxu0 %v727
      %v772 = vpop.f32.mrb[0].mxu0
      %v773 = vadd.f32 0.0, %v772
      %v774 = vpop.f32.mrb[0].mxu0
      %v775 = vpop.f32.mrb[0].mxu0
      %v776 = vadd.f32 0.0, %v775
      %v777 = vpop.f32.mrb[0].mxu0
      %778 = vmatprep.mubr.bf16.mxu0 0
      %779 = vmatmul.mubr.bf16.gmra.mrb[0].mxu0 %v730
      %v780 = vpop.f32.mrb[0].mxu0
      %v781 = vadd.f32 0.0, %v780
      %v782 = vpop.f32.mrb[0].mxu0
      %v783 = vpop.f32.mrb[0].mxu0
      %v784 = vadd.f32 0.0, %v783
      %v785 = vpop.f32.mrb[0].mxu0
      %786 = vmatprep.mubr.bf16.mxu0 0
      %787 = vmatmul.mubr.bf16.gmra.mrb[0].mxu0 %v733
      %v788 = vpop.f32.mrb[0].mxu0
      %v789 = vadd.f32 0.0, %v788
      %v790 = vpop.f32.mrb[0].mxu0
      %v791 = vpop.f32.mrb[0].mxu0
      %v792 = vadd.f32 0.0, %v791
      %v793 = vpop.f32.mrb[0].mxu0
      %794 = vmatprep.mubr.bf16.mxu0 0
      %795 = vmatmul.mubr.bf16.gmra.mrb[0].mxu0 %v736
      %v796 = vpop.f32.mrb[0].mxu0
      %v797 = vadd.f32 0.0, %v796
      %v798 = vpop.f32.mrb[0].mxu0
      %v799 = vpop.f32.mrb[0].mxu0
      %v800 = vadd.f32 0.0, %v799
      %v801 = vpop.f32.mrb[0].mxu0
      %802 = vdwg.mxu0
      %v803 = vadd.f32 %v681, %v773
      %v804 = vadd.f32 %v684, %v776
      %v805 = vadd.f32 %v689, %v781
      %v806 = vadd.f32 %v692, %v784
      %v807 = vadd.f32 %v697, %v789
      %v808 = vadd.f32 %v700, %v792
      %v809 = vadd.f32 %v705, %v797
      %v810 = vadd.f32 %v708, %v800
      %v811 = vunpack.c.h.b16 %v367
      %v812 = vpack.c.b16 %v715, %v715
      %v813 = vpack.c.b16 %v811, %v811
      %v815 = vshrl.u32 %v812, 16
      %v817 = vrot.slane %v815, 4
      %v818 = vshll.u32 %v812, 16
      %v820 = vrot.slane %v818, 5
      %v821 = vor.u32 %v817, %v820
      %v822 = vrot.slane %v821, 4
      %v824 = vshll.u32 %v813, 16
      %v826 = vrot.slane %v824, 5
      %v827 = vsel %vm412, %v822, %v826
      %s828 = scalar_lea.vmem %s2, 24
      %v829 = vld [vmem:[%s828] sm:$0xf]
      %v830 = vld [vmem:[%s828 + $0x4] sm:$0xf]
      %v831 = vunpack.c.l.b16 %v827
      %v832 = vpack.c.b16 %v530, %v529
      %v833 = vpack.c.b16 %v532, %v531
      %v834 = vpack.c.b16 %v534, %v533
      %v835 = vpack.c.b16 %v831, %v535
      %v838 = vunpack.c.l.b16 %v829
      %v839 = vunpack.c.l.b16 %v830
      %v840 = vpack.c.b16 %v839, %v838
      %v843 = vsel %vm546, %v832, 0
      %v846 = vsel %vm546, %v833, 0
      %v849 = vsel %vm546, %v834, 0
      %v852 = vsel %vm546, %v835, 0
      %854 = vmatprep.subr.bf16.mxu0 0
      %855 = vmatpush1.bf16.msra.mxu0 %v840
      %856 = vmatprep.subr.bf16.mxu0 0
      %857 = vmatpush1.bf16.msra.mxu0 0
      %858 = vmatprep.subr.bf16.mxu0 0
      %859 = vmatpush1.bf16.msra.mxu0 0
      %860 = vmatprep.subr.bf16.mxu0 0
      %861 = vmatpush1.bf16.msra.mxu0 0
      %862 = vmatprep.subr.bf16.mxu0 0
      %863 = vmatpush1.bf16.msra.mxu0 0
      %864 = vmatprep.subr.bf16.mxu0 0
      %865 = vmatpush1.bf16.msra.mxu0 0
      %866 = vmatprep.subr.bf16.mxu0 0
      %867 = vmatpush1.bf16.msra.mxu0 0
      %868 = vmatprep.subr.bf16.mxu0 0
      %869 = vmatpush1.bf16.msra.mxu0 0
      %870 = vmatprep.subr.bf16.mxu0 0
      %871 = vmatpush1.bf16.msra.mxu0 0
      %872 = vmatprep.subr.bf16.mxu0 0
      %873 = vmatpush1.bf16.msra.mxu0 0
      %874 = vmatprep.subr.bf16.mxu0 0
      %875 = vmatpush1.bf16.msra.mxu0 0
      %876 = vmatprep.subr.bf16.mxu0 0
      %877 = vmatpush1.bf16.msra.mxu0 0
      %878 = vmatprep.subr.bf16.mxu0 0
      %879 = vmatpush1.bf16.msra.mxu0 0
      %880 = vmatprep.subr.bf16.mxu0 0
      %881 = vmatpush1.bf16.msra.mxu0 0
      %882 = vmatprep.subr.bf16.mxu0 0
      %883 = vmatpush1.bf16.msra.mxu0 0
      %884 = vmatprep.subr.bf16.mxu0 0
      %885 = vmatpush1.bf16.msra.mxu0 0
      %886 = vmatprep.mubr.bf16.mxu0 0
      %887 = vmatmul.mubr.bf16.gmra.mrb[0].mxu0 %v843
      %v888 = vpop.f32.mrb[0].mxu0
      %v889 = vadd.f32 0.0, %v888
      %v890 = vpop.f32.mrb[0].mxu0
      %v891 = vpop.f32.mrb[0].mxu0
      %v892 = vadd.f32 0.0, %v891
      %v893 = vpop.f32.mrb[0].mxu0
      %894 = vmatprep.mubr.bf16.mxu0 0
      %895 = vmatmul.mubr.bf16.gmra.mrb[0].mxu0 %v846
      %v896 = vpop.f32.mrb[0].mxu0
      %v897 = vadd.f32 0.0, %v896
      %v898 = vpop.f32.mrb[0].mxu0
      %v899 = vpop.f32.mrb[0].mxu0
      %v900 = vadd.f32 0.0, %v899
      %v901 = vpop.f32.mrb[0].mxu0
      %902 = vmatprep.mubr.bf16.mxu0 0
      %903 = vmatmul.mubr.bf16.gmra.mrb[0].mxu0 %v849
      %v904 = vpop.f32.mrb[0].mxu0
      %v905 = vadd.f32 0.0, %v904
      %v906 = vpop.f32.mrb[0].mxu0
      %v907 = vpop.f32.mrb[0].mxu0
      %v908 = vadd.f32 0.0, %v907
      %v909 = vpop.f32.mrb[0].mxu0
      %910 = vmatprep.mubr.bf16.mxu0 0
      %911 = vmatmul.mubr.bf16.gmra.mrb[0].mxu0 %v852
      %v912 = vpop.f32.mrb[0].mxu0
      %v913 = vadd.f32 0.0, %v912
      %v914 = vpop.f32.mrb[0].mxu0
      %v915 = vpop.f32.mrb[0].mxu0
      %v916 = vadd.f32 0.0, %v915
      %v917 = vpop.f32.mrb[0].mxu0
      %918 = vdwg.mxu0
      %v919 = vadd.f32 %v803, %v889
      %v920 = vadd.f32 %v804, %v892
      %v921 = vadd.f32 %v805, %v897
      %v922 = vadd.f32 %v806, %v900
      %v923 = vadd.f32 %v807, %v905
      %v924 = vadd.f32 %v808, %v908
      %v925 = vadd.f32 %v809, %v913
      %v926 = vadd.f32 %v810, %v916
      %v927 = vmax.f32 %v919, 0.0
      %v928 = vmax.f32 %v920, 0.0
      %v929 = vmax.f32 %v921, 0.0
      %v930 = vmax.f32 %v922, 0.0
      %v931 = vmax.f32 %v923, 0.0
      %v932 = vmax.f32 %v924, 0.0
      %v933 = vmax.f32 %v925, 0.0
      %v934 = vmax.f32 %v926, 0.0
      %vm935 = vcmask 64512
      %936 = vst.msk [vmem:[%s284] sm:$0xff] %vm935, %v927
      %937 = vst.msk [vmem:[%s284 + $0x8] sm:$0xff] %vm935, %v928
      %938 = vst.msk [vmem:[%s284 + $0x10] sm:$0xff] %vm935, %v929
      %939 = vst.msk [vmem:[%s284 + $0x18] sm:$0xff] %vm935, %v930
      %940 = vst.msk [vmem:[%s284 + $0x20] sm:$0xff] %vm935, %v931
      %941 = vst.msk [vmem:[%s284 + $0x28] sm:$0xff] %vm935, %v932
      %942 = vst.msk [vmem:[%s284 + $0x30] sm:$0xff] %vm935, %v933
      %943 = vst.msk [vmem:[%s284 + $0x38] sm:$0xff] %vm935, %v934
      %s944 = smul.u32 8, %s19
      %p945 = scmp.lt.s32.totalorder %s18, 1
      %s946 = scalar_select %p945, %s18, 1
      %p947 = scmp.lt.s32.totalorder %s944, 7
      %s948 = scalar_select %p947, %s944, 7
      %s949 = smul.addr %s946, 8
      %s950 = sadd.s32 %s948, %s949
      %s951 = smul.addr %s950, 8
      %s952 = scalar_lea.vmem %s3, %s951
      // Predicated region
      $region33: #{_lambda_.3} parent=31 // pred_check
        %p953 = pneg %p127
      $region34: #{_lambda_.3} parent=31 // pred_check_branch
        %955 = sbr.rel (%p953) target = $region36
      $region35: #{_lambda_.3} parent=31 // pred_region
        %s956 = smul.u32 8, %s19
      $region36: #{_lambda_.3} parent=31 // pred_fallthru
        _
    $region32: #{_lambda_.3} parent=5 // pred_fallthru
      _
    %p957 = scmp.le.s32.totalorder 2, %s9
    // Predicated region
    $region37: #{_lambda_.3} parent=5 // pred_check
      %p958 = pneg %p957
    $region38: #{_lambda_.3} parent=5 // pred_check_branch
      %960 = sbr.rel (%p958) target = $region40
    $region39: #{_lambda_.3} parent=5 // pred_region
      %s961 = ssub.s32 %s9, 2
      // Predicated region
      $region41: #{_lambda_.3} parent=39 // pred_check
        %p962 = pneg %p133
      $region42: #{_lambda_.3} parent=39 // pred_check_branch
        %964 = sbr.rel (%p962) target = $region44
      $region43: #{_lambda_.3} parent=39 // pred_region
        %s965 = smul.u32 8, %s21
        %p966 = scmp.lt.s32.totalorder %s20, 1
        %s967 = scalar_select %p966, %s20, 1
        %p968 = scmp.lt.s32.totalorder %s965, 7
        %s969 = scalar_select %p968, %s965, 7
        %s970 = smul.addr %s967, 8
        %s971 = sadd.s32 %s969, %s970
        %s972 = smul.addr %s971, 8
        %s973 = scalar_lea.vmem %s3, %s972
      $region44: #{_lambda_.3} parent=39 // pred_fallthru
        _
    $region40: #{_lambda_.3} parent=5 // pred_fallthru
      _
  $region6: #{_lambda_.3} parent=0 // loop_footer
    %s13 = sadd.s32 1, %s9
  $region7: #{_lambda_.3} parent=0 // loop_footer_branch
    %8 = sbr.rel target = $region3
  $region8: #{_lambda_.3} parent=0 // loop_exit
    _

// kernel: _lambda_.5
$region0: #{_lambda_.5}
  #allocation0 [shape = 'u32[]', space=smem, size = 0x4, offset = 0x4, fixed_abs, tag = 'smem constant byte address 0x4 - core index']
  #allocation1 [shape = 'u32[144,128]{1,0:T(1,128)}', space=vmem, size = 0x12000, scoped, tag = 'internal scratch']
  %s0 = inlined_call_operand.vmem [shape: f32[2,16,16,4], index: 0, kind: input, shape index: {}]
  %s1 = inlined_call_operand.vmem [shape: f32[2,16,16,4], index: 1, kind: input, shape index: {}]
  %s2 = inlined_call_operand.vmem [shape: f32[1,4], index: 2, kind: input, shape index: {}]
  %s3 = inlined_call_operand.vmem [shape: f32[1,4], index: 3, kind: input, shape index: {}]
  %s4 = inlined_call_operand.vmem [shape: f32[2,16,16,8], index: 4, kind: output, shape index: {}]
  %s5 = sld [smem:[#allocation0]]
  $region49: #{_lambda_.5} parent=0
    _
  %s7 = ssub.s32 1, %s5
  %s8 = scalar_select 0, %s7, %s5
  loop: start=0, step=1, limit=4
  $region2: #{_lambda_.5} parent=0 // loop_pre_header
    _
  $region3: #{_lambda_.5} parent=0 // loop_header
    %s10 = sphi 0, %s14
    %p11 = scmp.ge.s32.totalorder %s10, 4
    %s17 = sphi 0, %s29
    %s18 = sphi 0, %s25
    %s19 = sphi 0, %s17
    %s20 = sphi 0, %s18
    %s21 = sphi 0, %s19
    %s22 = sphi 0, %s20
    %s34 = sphi 0, %s36
    %s37 = sphi 0, %s34
    %s38 = sphi 0, %s37
    %s54 = sphi 0, %s38
    %s62 = sphi 0, %s64
    %s65 = sphi 0, %s62
    %s66 = sphi 0, %s65
    %s82 = sphi 0, %s66
    %s86 = sphi 0, %s86
    %s88 = sphi 0, %s86
    %s89 = sphi 0, %s88
    %s103 = sphi 0, %s89
    %s107 = sphi 0, %s107
    %s109 = sphi 0, %s107
    %s110 = sphi 0, %s109
    %s124 = sphi 0, %s110
    %s132 = sphi 0, %s134
    %s135 = sphi 0, %s132
    %s136 = sphi 0, %s135
    %s152 = sphi 0, %s136
  $region4: #{_lambda_.5} parent=0 // loop_header_branch
    %13 = sbr.rel (%p11) target = $region8
  $region5: #{_lambda_.5} parent=0 // loop_body
    %s15 = ssub.s32 %s10, 1
    %s16 = ssub.s32 %s10, 2
    %s23 = sadd.s32 1, %s18
    %p24 = scmp.ge.s32.totalorder %s23, 1
    %s25 = scalar_select %p24, 0, %s23
    %s26 = sadd.s32 1, %s17
    %s27 = scalar_select %p24, %s26, %s17
    %p28 = scmp.ge.s32.totalorder %s27, 2
    %s29 = scalar_select %p28, 0, %s27
    %s30 = ssub.s32 %s17, %s29
    %s31 = ssub.s32 %s18, %s25
    %s32 = sor.u32 %s30, %s31
    %p33 = scmp.eq.s32.totalorder %s32, 0
    %s35 = sadd.s32 %s34, 1
    %s36 = scalar_select %p33, %s34, %s35
    %p39 = pneg %p33
    %p40 = scmp.eq.s32.totalorder %s10, 1
    %p41 = por %p39, %p40
    %p42 = scmp.ne.s32.totalorder %s34, %s37
    %p43 = scmp.eq.s32.totalorder %s10, 0
    %p44 = por %p42, %p43
    %p45 = scmp.ne.s32.totalorder %s34, %s37
    %p46 = scmp.eq.s32.totalorder %s15, 1
    %p47 = por %p45, %p46
    %p48 = scmp.ne.s32.totalorder %s37, %s38
    %p49 = scmp.eq.s32.totalorder %s15, 0
    %p50 = por %p48, %p49
    %p51 = scmp.ne.s32.totalorder %s37, %s38
    %p52 = scmp.eq.s32.totalorder %s16, 1
    %p53 = por %p51, %p52
    %p55 = scmp.ne.s32.totalorder %s38, %s54
    %p56 = scmp.eq.s32.totalorder %s16, 0
    %p57 = por %p55, %p56
    %s58 = ssub.s32 %s17, %s29
    %s59 = ssub.s32 %s18, %s25
    %s60 = sor.u32 %s58, %s59
    %p61 = scmp.eq.s32.totalorder %s60, 0
    %s63 = sadd.s32 %s62, 1
    %s64 = scalar_select %p61, %s62, %s63
    %p67 = pneg %p61
    %p68 = scmp.eq.s32.totalorder %s10, 1
    %p69 = por %p67, %p68
    %p70 = scmp.ne.s32.totalorder %s62, %s65
    %p71 = scmp.eq.s32.totalorder %s10, 0
    %p72 = por %p70, %p71
    %p73 = scmp.ne.s32.totalorder %s62, %s65
    %p74 = scmp.eq.s32.totalorder %s15, 1
    %p75 = por %p73, %p74
    %p76 = scmp.ne.s32.totalorder %s65, %s66
    %p77 = scmp.eq.s32.totalorder %s15, 0
    %p78 = por %p76, %p77
    %p79 = scmp.ne.s32.totalorder %s65, %s66
    %p80 = scmp.eq.s32.totalorder %s16, 1
    %p81 = por %p79, %p80
    %p83 = scmp.ne.s32.totalorder %s66, %s82
    %p84 = scmp.eq.s32.totalorder %s16, 0
    %p85 = por %p83, %p84
    %s87 = sadd.s32 %s86, 1
    %p90 = scmp.eq.s32.totalorder %s10, 1
    %p91 = scmp.ne.s32.totalorder %s86, %s88
    %p92 = scmp.eq.s32.totalorder %s10, 0
    %p93 = por %p91, %p92
    %p94 = scmp.ne.s32.totalorder %s86, %s88
    %p95 = scmp.eq.s32.totalorder %s15, 1
    %p96 = por %p94, %p95
    %p97 = scmp.ne.s32.totalorder %s88, %s89
    %p98 = scmp.eq.s32.totalorder %s15, 0
    %p99 = por %p97, %p98
    %p100 = scmp.ne.s32.totalorder %s88, %s89
    %p101 = scmp.eq.s32.totalorder %s16, 1
    %p102 = por %p100, %p101
    %p104 = scmp.ne.s32.totalorder %s89, %s103
    %p105 = scmp.eq.s32.totalorder %s16, 0
    %p106 = por %p104, %p105
    %s108 = sadd.s32 %s107, 1
    %p111 = scmp.eq.s32.totalorder %s10, 1
    %p112 = scmp.ne.s32.totalorder %s107, %s109
    %p113 = scmp.eq.s32.totalorder %s10, 0
    %p114 = por %p112, %p113
    %p115 = scmp.ne.s32.totalorder %s107, %s109
    %p116 = scmp.eq.s32.totalorder %s15, 1
    %p117 = por %p115, %p116
    %p118 = scmp.ne.s32.totalorder %s109, %s110
    %p119 = scmp.eq.s32.totalorder %s15, 0
    %p120 = por %p118, %p119
    %p121 = scmp.ne.s32.totalorder %s109, %s110
    %p122 = scmp.eq.s32.totalorder %s16, 1
    %p123 = por %p121, %p122
    %p125 = scmp.ne.s32.totalorder %s110, %s124
    %p126 = scmp.eq.s32.totalorder %s16, 0
    %p127 = por %p125, %p126
    %s128 = ssub.s32 %s17, %s29
    %s129 = ssub.s32 %s18, %s25
    %s130 = sor.u32 %s128, %s129
    %p131 = scmp.eq.s32.totalorder %s130, 0
    %s133 = sadd.s32 %s132, 1
    %s134 = scalar_select %p131, %s132, %s133
    %p137 = pneg %p131
    %p138 = scmp.eq.s32.totalorder %s10, 1
    %p139 = por %p137, %p138
    %p140 = scmp.ne.s32.totalorder %s132, %s135
    %p141 = scmp.eq.s32.totalorder %s10, 0
    %p142 = por %p140, %p141
    %p143 = scmp.ne.s32.totalorder %s132, %s135
    %p144 = scmp.eq.s32.totalorder %s15, 1
    %p145 = por %p143, %p144
    %p146 = scmp.ne.s32.totalorder %s135, %s136
    %p147 = scmp.eq.s32.totalorder %s15, 0
    %p148 = por %p146, %p147
    %p149 = scmp.ne.s32.totalorder %s135, %s136
    %p150 = scmp.eq.s32.totalorder %s16, 1
    %p151 = por %p149, %p150
    %p153 = scmp.ne.s32.totalorder %s136, %s152
    %p154 = scmp.eq.s32.totalorder %s16, 0
    %p155 = por %p153, %p154
    %p156 = scmp.le.s32.totalorder 1, %s10
    %p157 = scmp.lt.s32.totalorder %s10, 3
    %p158 = pnand %p156, %p157
    %p159 = pneg %p158
    // Predicated region
    $region9: #{_lambda_.5} parent=5 // pred_check
      _
    $region10: #{_lambda_.5} parent=5 // pred_check_branch
      %161 = sbr.rel (%p158) target = $region12
    $region11: #{_lambda_.5} parent=5 // pred_region
      %s162 = ssub.s32 %s10, 1
      // Predicated region
      $region13: #{_lambda_.5} parent=11 // pred_check
        %p163 = pneg %p99
      $region14: #{_lambda_.5} parent=11 // pred_check_branch
        %165 = sbr.rel (%p163) target = $region16
      $region15: #{_lambda_.5} parent=11 // pred_region
        _
      $region16: #{_lambda_.5} parent=11 // pred_fallthru
        _
      // Predicated region
      $region17: #{_lambda_.5} parent=11 // pred_check
        %p166 = pneg %p120
      $region18: #{_lambda_.5} parent=11 // pred_check_branch
        %168 = sbr.rel (%p166) target = $region20
      $region19: #{_lambda_.5} parent=11 // pred_region
        _
      $region20: #{_lambda_.5} parent=11 // pred_fallthru
        _
    $region12: #{_lambda_.5} parent=5 // pred_fallthru
      _
    %p169 = scmp.lt.s32.totalorder %s10, 2
    // Predicated region
    $region21: #{_lambda_.5} parent=5 // pred_check
      %p170 = pneg %p169
    $region22: #{_lambda_.5} parent=5 // pred_check_branch
      %172 = sbr.rel (%p170) target = $region24
    $region23: #{_lambda_.5} parent=5 // pred_region
      // Predicated region
      $region25: #{_lambda_.5} parent=23 // pred_check
        %p173 = pneg %p44
      $region26: #{_lambda_.5} parent=23 // pred_check_branch
        %175 = sbr.rel (%p173) target = $region28
      $region27: #{_lambda_.5} parent=23 // pred_region
        %s176 = smul.u32 16, %s18
        %p177 = scmp.lt.s32.totalorder %s17, 1
        %s178 = scalar_select %p177, %s17, 1
        %p179 = scmp.lt.s32.totalorder %s176, 15
        %s180 = scalar_select %p179, %s176, 15
        %s181 = smul.addr %s180, 2
        %s182 = smul.addr %s178, 32
        %s183 = sadd.s32 %s181, %s182
        %s184 = smul.addr %s183, 8
        %s185 = scalar_lea.vmem %s0, %s184
        %s186 = smul.u32 16, %s18
      $region28: #{_lambda_.5} parent=23 // pred_fallthru
        _
      // Predicated region
      $region29: #{_lambda_.5} parent=23 // pred_check
        %p187 = pneg %p72
      $region30: #{_lambda_.5} parent=23 // pred_check_branch
        %189 = sbr.rel (%p187) target = $region32
      $region31: #{_lambda_.5} parent=23 // pred_region
        %s190 = smul.u32 16, %s18
        %p191 = scmp.lt.s32.totalorder %s17, 1
        %s192 = scalar_select %p191, %s17, 1
        %p193 = scmp.lt.s32.totalorder %s190, 15
        %s194 = scalar_select %p193, %s190, 15
        %s195 = smul.addr %s194, 2
        %s196 = smul.addr %s192, 32
        %s197 = sadd.s32 %s195, %s196
        %s198 = smul.addr %s197, 8
        %s199 = scalar_lea.vmem %s1, %s198
        %s200 = smul.u32 16, %s18
      $region32: #{_lambda_.5} parent=23 // pred_fallthru
        _
    $region24: #{_lambda_.5} parent=5 // pred_fallthru
      _
    %p201 = scmp.le.s32.totalorder 1, %s10
    %p202 = scmp.lt.s32.totalorder %s10, 3
    %p203 = pnand %p201, %p202
    %p204 = pneg %p203
    // Predicated region
    $region33: #{_lambda_.5} parent=5 // pred_check
      _
    $region34: #{_lambda_.5} parent=5 // pred_check_branch
      %206 = sbr.rel (%p203) target = $region36
    $region35: #{_lambda_.5} parent=5 // pred_region
      %s207 = ssub.s32 %s10, 1
      %s208 = smul.u32 16, %s20
      %p209 = scmp.lt.s32.totalorder %s19, 1
      %s210 = scalar_select %p209, %s19, 1
      %p211 = scmp.lt.s32.totalorder %s208, 15
      %s212 = scalar_select %p211, %s208, 15
      %s213 = smul.addr %s212, 2
      %s214 = smul.addr %s210, 32
      %s215 = sadd.s32 %s213, %s214
      %s216 = smul.addr %s215, 8
      %s217 = scalar_lea.vmem %s0, %s216
      %p218 = pneg %p50
      %p219 = pneg %p47
      %s220 = smul.u32 16, %s20
      %p221 = scmp.lt.s32.totalorder %s19, 1
      %s222 = scalar_select %p221, %s19, 1
      %p223 = scmp.lt.s32.totalorder %s220, 15
      %s224 = scalar_select %p223, %s220, 15
      %s225 = smul.addr %s224, 2
      %s226 = smul.addr %s222, 32
      %s227 = sadd.s32 %s225, %s226
      %s228 = smul.addr %s227, 8
      %s229 = scalar_lea.vmem %s1, %s228
      %p230 = pneg %p78
      %p231 = pneg %p75
      %p232 = pneg %p99
      %p233 = pneg %p96
      %p234 = pneg %p120
      %p235 = pneg %p117
      %p236 = pneg %p148
      %p237 = pneg %p145
      %s238 = smul.u32 16, %s20
      %p239 = scmp.lt.s32.totalorder %s19, 1
      %s240 = scalar_select %p239, %s19, 1
      %p241 = scmp.lt.s32.totalorder %s238, 15
      %s242 = scalar_select %p241, %s238, 15
      %s243 = smul.addr %s242, 2
      %s244 = smul.addr %s240, 32
      %s245 = sadd.s32 %s243, %s244
      %s246 = smul.addr %s245, 8
      %s247 = scalar_lea.vmem %s4, %s246
      %s248 = smul.u32 16, %s20
      %p249 = scmp.lt.s32.totalorder %s19, 1
      %s250 = scalar_select %p249, %s19, 1
      %p251 = scmp.lt.s32.totalorder %s248, 15
      %s252 = scalar_select %p251, %s248, 15
      %s253 = smul.addr %s252, 2
      %s254 = smul.addr %s250, 32
      %s255 = sadd.s32 %s253, %s254
      %s256 = smul.addr %s255, 8
      %s257 = scalar_lea.vmem %s0, %s256
      %s258 = smul.u32 16, %s20
      %s259 = smul.u32 16, %s20
      %p260 = scmp.lt.s32.totalorder %s19, 1
      %s261 = scalar_select %p260, %s19, 1
      %p262 = scmp.lt.s32.totalorder %s259, 15
      %s263 = scalar_select %p262, %s259, 15
      %s264 = smul.addr %s263, 2
      %s265 = smul.addr %s261, 32
      %s266 = sadd.s32 %s264, %s265
      %s267 = smul.addr %s266, 8
      %s268 = scalar_lea.vmem %s1, %s267
      %s269 = smul.u32 16, %s20
      %s270 = smul.u32 16, %s20
      %p271 = scmp.lt.s32.totalorder %s19, 1
      %s272 = scalar_select %p271, %s19, 1
      %p273 = scmp.lt.s32.totalorder %s270, 15
      %s274 = scalar_select %p273, %s270, 15
      %s275 = smul.addr %s274, 2
      %s276 = smul.addr %s272, 32
      %s277 = sadd.s32 %s275, %s276
      %s278 = smul.addr %s277, 8
      %s279 = scalar_lea.vmem %s4, %s278
      %s280 = smul.u32 16, %s20
      %v281 = vld [vmem:[%s268] sm:$0xff]
      %v282 = vld [vmem:[%s268 + $0x8] sm:$0xff]
      %v283 = vld [vmem:[%s268 + $0x10] sm:$0xff]
      %v284 = vld [vmem:[%s268 + $0x18] sm:$0xff]
      %v285 = vld [vmem:[%s268 + $0x20] sm:$0xff]
      %v286 = vld [vmem:[%s268 + $0x28] sm:$0xff]
      %v287 = vld [vmem:[%s268 + $0x30] sm:$0xff]
      %v288 = vld [vmem:[%s268 + $0x38] sm:$0xff]
      %v289 = vld [vmem:[%s268 + $0x40] sm:$0xff]
      %v290 = vld [vmem:[%s268 + $0x48] sm:$0xff]
      %v291 = vld [vmem:[%s268 + $0x50] sm:$0xff]
      %v292 = vld [vmem:[%s268 + $0x58] sm:$0xff]
      %v293 = vld [vmem:[%s268 + $0x60] sm:$0xff]
      %v294 = vld [vmem:[%s268 + $0x68] sm:$0xff]
      %v295 = vld [vmem:[%s268 + $0x70] sm:$0xff]
      %v296 = vld [vmem:[%s268 + $0x78] sm:$0xff]
      %v297 = vld [vmem:[%s268 + $0x80] sm:$0xff]
      %v298 = vld [vmem:[%s268 + $0x88] sm:$0xff]
      %v299 = vld [vmem:[%s268 + $0x90] sm:$0xff]
      %v300 = vld [vmem:[%s268 + $0x98] sm:$0xff]
      %v301 = vld [vmem:[%s268 + $0xa0] sm:$0xff]
      %v302 = vld [vmem:[%s268 + $0xa8] sm:$0xff]
      %v303 = vld [vmem:[%s268 + $0xb0] sm:$0xff]
      %v304 = vld [vmem:[%s268 + $0xb8] sm:$0xff]
      %v305 = vld [vmem:[%s268 + $0xc0] sm:$0xff]
      %v306 = vld [vmem:[%s268 + $0xc8] sm:$0xff]
      %v307 = vld [vmem:[%s268 + $0xd0] sm:$0xff]
      %v308 = vld [vmem:[%s268 + $0xd8] sm:$0xff]
      %v309 = vld [vmem:[%s268 + $0xe0] sm:$0xff]
      %v310 = vld [vmem:[%s268 + $0xe8] sm:$0xff]
      %v311 = vld [vmem:[%s268 + $0xf0] sm:$0xff]
      %v312 = vld [vmem:[%s268 + $0xf8] sm:$0xff]
      %v313 = vld [vmem:[%s2] sm:$0x1]
      %v315 = vlaneseq
      %v316 = vshrl.u32 %v315, 7
      %v317 = vsub.s32 0, %v316
      %v318 = vrot.slane %v313, %v317
      %v320 = vmul.f32 %v281, %v318
      %v321 = vmul.f32 %v282, %v318
      %v322 = vmul.f32 %v283, %v318
      %v323 = vmul.f32 %v284, %v318
      %v324 = vmul.f32 %v285, %v318
      %v325 = vmul.f32 %v286, %v318
      %v326 = vmul.f32 %v287, %v318
      %v327 = vmul.f32 %v288, %v318
      %v328 = vmul.f32 %v289, %v318
      %v329 = vmul.f32 %v290, %v318
      %v330 = vmul.f32 %v291, %v318
      %v331 = vmul.f32 %v292, %v318
      %v332 = vmul.f32 %v293, %v318
      %v333 = vmul.f32 %v294, %v318
      %v334 = vmul.f32 %v295, %v318
      %v335 = vmul.f32 %v296, %v318
      %v336 = vmul.f32 %v297, %v318
      %v337 = vmul.f32 %v298, %v318
      %v338 = vmul.f32 %v299, %v318
      %v339 = vmul.f32 %v300, %v318
      %v340 = vmul.f32 %v301, %v318
      %v341 = vmul.f32 %v302, %v318
      %v342 = vmul.f32 %v303, %v318
      %v343 = vmul.f32 %v304, %v318
      %v344 = vmul.f32 %v305, %v318
      %v345 = vmul.f32 %v306, %v318
      %v346 = vmul.f32 %v307, %v318
      %v347 = vmul.f32 %v308, %v318
      %v348 = vmul.f32 %v309, %v318
      %v349 = vmul.f32 %v310, %v318
      %v350 = vmul.f32 %v311, %v318
      %v351 = vmul.f32 %v312, %v318
      %v352 = vld [vmem:[%s3] sm:$0x1]
      %v354 = vlaneseq
      %v355 = vshrl.u32 %v354, 7
      %v356 = vsub.s32 0, %v355
      %v357 = vrot.slane %v352, %v356
      %v359 = vadd.f32 %v320, %v357
      %v360 = vadd.f32 %v321, %v357
      %v361 = vadd.f32 %v322, %v357
      %v362 = vadd.f32 %v323, %v357
      %v363 = vadd.f32 %v324, %v357
      %v364 = vadd.f32 %v325, %v357
      %v365 = vadd.f32 %v326, %v357
      %v366 = vadd.f32 %v327, %v357
      %v367 = vadd.f32 %v328, %v357
      %v368 = vadd.f32 %v329, %v357
      %v369 = vadd.f32 %v330, %v357
      %v370 = vadd.f32 %v331, %v357
      %v371 = vadd.f32 %v332, %v357
      %v372 = vadd.f32 %v333, %v357
      %v373 = vadd.f32 %v334, %v357
      %v374 = vadd.f32 %v335, %v357
      %v375 = vadd.f32 %v336, %v357
      %v376 = vadd.f32 %v337, %v357
      %v377 = vadd.f32 %v338, %v357
      %v378 = vadd.f32 %v339, %v357
      %v379 = vadd.f32 %v340, %v357
      %v380 = vadd.f32 %v341, %v357
      %v381 = vadd.f32 %v342, %v357
      %v382 = vadd.f32 %v343, %v357
      %v383 = vadd.f32 %v344, %v357
      %v384 = vadd.f32 %v345, %v357
      %v385 = vadd.f32 %v346, %v357
      %v386 = vadd.f32 %v347, %v357
      %v387 = vadd.f32 %v348, %v357
      %v388 = vadd.f32 %v349, %v357
      %v389 = vadd.f32 %v350, %v357
      %v390 = vadd.f32 %v351, %v357
      %v391 = vld [vmem:[%s257] sm:$0xff]
      %v392 = vld [vmem:[%s257 + $0x8] sm:$0xff]
      %v393 = vld [vmem:[%s257 + $0x10] sm:$0xff]
      %v394 = vld [vmem:[%s257 + $0x18] sm:$0xff]
      %v395 = vld [vmem:[%s257 + $0x20] sm:$0xff]
      %v396 = vld [vmem:[%s257 + $0x28] sm:$0xff]
      %v397 = vld [vmem:[%s257 + $0x30] sm:$0xff]
      %v398 = vld [vmem:[%s257 + $0x38] sm:$0xff]
      %v399 = vld [vmem:[%s257 + $0x40] sm:$0xff]
      %v400 = vld [vmem:[%s257 + $0x48] sm:$0xff]
      %v401 = vld [vmem:[%s257 + $0x50] sm:$0xff]
      %v402 = vld [vmem:[%s257 + $0x58] sm:$0xff]
      %v403 = vld [vmem:[%s257 + $0x60] sm:$0xff]
      %v404 = vld [vmem:[%s257 + $0x68] sm:$0xff]
      %v405 = vld [vmem:[%s257 + $0x70] sm:$0xff]
      %v406 = vld [vmem:[%s257 + $0x78] sm:$0xff]
      %v407 = vld [vmem:[%s257 + $0x80] sm:$0xff]
      %v408 = vld [vmem:[%s257 + $0x88] sm:$0xff]
      %v409 = vld [vmem:[%s257 + $0x90] sm:$0xff]
      %v410 = vld [vmem:[%s257 + $0x98] sm:$0xff]
      %v411 = vld [vmem:[%s257 + $0xa0] sm:$0xff]
      %v412 = vld [vmem:[%s257 + $0xa8] sm:$0xff]
      %v413 = vld [vmem:[%s257 + $0xb0] sm:$0xff]
      %v414 = vld [vmem:[%s257 + $0xb8] sm:$0xff]
      %v415 = vld [vmem:[%s257 + $0xc0] sm:$0xff]
      %v416 = vld [vmem:[%s257 + $0xc8] sm:$0xff]
      %v417 = vld [vmem:[%s257 + $0xd0] sm:$0xff]
      %v418 = vld [vmem:[%s257 + $0xd8] sm:$0xff]
      %v419 = vld [vmem:[%s257 + $0xe0] sm:$0xff]
      %v420 = vld [vmem:[%s257 + $0xe8] sm:$0xff]
      %v421 = vld [vmem:[%s257 + $0xf0] sm:$0xff]
      %v422 = vld [vmem:[%s257 + $0xf8] sm:$0xff]
      %455 = vrot.lane.b32.xlu0 %v359, 4
      %v456 = vpop.permute.xlu0 %455
      %457 = vrot.lane.b32.xlu0 %v360, 4
      %v458 = vpop.permute.xlu0 %457
      %459 = vrot.lane.b32.xlu0 %v361, 4
      %v460 = vpop.permute.xlu0 %459
      %461 = vrot.lane.b32.xlu0 %v362, 4
      %v462 = vpop.permute.xlu0 %461
      %463 = vrot.lane.b32.xlu0 %v363, 4
      %v464 = vpop.permute.xlu0 %463
      %465 = vrot.lane.b32.xlu0 %v364, 4
      %v466 = vpop.permute.xlu0 %465
      %467 = vrot.lane.b32.xlu0 %v365, 4
      %v468 = vpop.permute.xlu0 %467
      %469 = vrot.lane.b32.xlu0 %v366, 4
      %v470 = vpop.permute.xlu0 %469
      %471 = vrot.lane.b32.xlu0 %v367, 4
      %v472 = vpop.permute.xlu0 %471
      %473 = vrot.lane.b32.xlu0 %v368, 4
      %v474 = vpop.permute.xlu0 %473
      %475 = vrot.lane.b32.xlu0 %v369, 4
      %v476 = vpop.permute.xlu0 %475
      %477 = vrot.lane.b32.xlu0 %v370, 4
      %v478 = vpop.permute.xlu0 %477
      %479 = vrot.lane.b32.xlu0 %v371, 4
      %v480 = vpop.permute.xlu0 %479
      %481 = vrot.lane.b32.xlu0 %v372, 4
      %v482 = vpop.permute.xlu0 %481
      %483 = vrot.lane.b32.xlu0 %v373, 4
      %v484 = vpop.permute.xlu0 %483
      %485 = vrot.lane.b32.xlu0 %v374, 4
      %v486 = vpop.permute.xlu0 %485
      %487 = vrot.lane.b32.xlu0 %v375, 4
      %v488 = vpop.permute.xlu0 %487
      %489 = vrot.lane.b32.xlu0 %v376, 4
      %v490 = vpop.permute.xlu0 %489
      %491 = vrot.lane.b32.xlu0 %v377, 4
      %v492 = vpop.permute.xlu0 %491
      %493 = vrot.lane.b32.xlu0 %v378, 4
      %v494 = vpop.permute.xlu0 %493
      %495 = vrot.lane.b32.xlu0 %v379, 4
      %v496 = vpop.permute.xlu0 %495
      %497 = vrot.lane.b32.xlu0 %v380, 4
      %v498 = vpop.permute.xlu0 %497
      %499 = vrot.lane.b32.xlu0 %v381, 4
      %v500 = vpop.permute.xlu0 %499
      %501 = vrot.lane.b32.xlu0 %v382, 4
      %v502 = vpop.permute.xlu0 %501
      %503 = vrot.lane.b32.xlu0 %v383, 4
      %v504 = vpop.permute.xlu0 %503
      %505 = vrot.lane.b32.xlu0 %v384, 4
      %v506 = vpop.permute.xlu0 %505
      %507 = vrot.lane.b32.xlu0 %v385, 4
      %v508 = vpop.permute.xlu0 %507
      %509 = vrot.lane.b32.xlu0 %v386, 4
      %v510 = vpop.permute.xlu0 %509
      %511 = vrot.lane.b32.xlu0 %v387, 4
      %v512 = vpop.permute.xlu0 %511
      %513 = vrot.lane.b32.xlu0 %v388, 4
      %v514 = vpop.permute.xlu0 %513
      %515 = vrot.lane.b32.xlu0 %v389, 4
      %v516 = vpop.permute.xlu0 %515
      %517 = vrot.lane.b32.xlu0 %v390, 4
      %v518 = vpop.permute.xlu0 %517
      %vm551 = vcmask 31744
      %v552 = vsel %vm551, %v391, %v456
      %v553 = vsel %vm551, %v392, %v458
      %v554 = vsel %vm551, %v393, %v460
      %v555 = vsel %vm551, %v394, %v462
      %v556 = vsel %vm551, %v395, %v464
      %v557 = vsel %vm551, %v396, %v466
      %v558 = vsel %vm551, %v397, %v468
      %v559 = vsel %vm551, %v398, %v470
      %v560 = vsel %vm551, %v399, %v472
      %v561 = vsel %vm551, %v400, %v474
      %v562 = vsel %vm551, %v401, %v476
      %v563 = vsel %vm551, %v402, %v478
      %v564 = vsel %vm551, %v403, %v480
      %v565 = vsel %vm551, %v404, %v482
      %v566 = vsel %vm551, %v405, %v484
      %v567 = vsel %vm551, %v406, %v486
      %v568 = vsel %vm551, %v407, %v488
      %v569 = vsel %vm551, %v408, %v490
      %v570 = vsel %vm551, %v409, %v492
      %v571 = vsel %vm551, %v410, %v494
      %v572 = vsel %vm551, %v411, %v496
      %v573 = vsel %vm551, %v412, %v498
      %v574 = vsel %vm551, %v413, %v500
      %v575 = vsel %vm551, %v414, %v502
      %v576 = vsel %vm551, %v415, %v504
      %v577 = vsel %vm551, %v416, %v506
      %v578 = vsel %vm551, %v417, %v508
      %v579 = vsel %vm551, %v418, %v510
      %v580 = vsel %vm551, %v419, %v512
      %v581 = vsel %vm551, %v420, %v514
      %v582 = vsel %vm551, %v421, %v516
      %v583 = vsel %vm551, %v422, %v518
      %vm584 = vcmask 64512
      %585 = vst.msk [vmem:[%s279] sm:$0xff] %vm584, %v552
      %586 = vst.msk [vmem:[%s279 + $0x8] sm:$0xff] %vm584, %v553
      %587 = vst.msk [vmem:[%s279 + $0x10] sm:$0xff] %vm584, %v554
      %588 = vst.msk [vmem:[%s279 + $0x18] sm:$0xff] %vm584, %v555
      %589 = vst.msk [vmem:[%s279 + $0x20] sm:$0xff] %vm584, %v556
      %590 = vst.msk [vmem:[%s279 + $0x28] sm:$0xff] %vm584, %v557
      %591 = vst.msk [vmem:[%s279 + $0x30] sm:$0xff] %vm584, %v558
      %592 = vst.msk [vmem:[%s279 + $0x38] sm:$0xff] %vm584, %v559
      %593 = vst.msk [vmem:[%s279 + $0x40] sm:$0xff] %vm584, %v560
      %594 = vst.msk [vmem:[%s279 + $0x48] sm:$0xff] %vm584, %v561
      %595 = vst.msk [vmem:[%s279 + $0x50] sm:$0xff] %vm584, %v562
      %596 = vst.msk [vmem:[%s279 + $0x58] sm:$0xff] %vm584, %v563
      %597 = vst.msk [vmem:[%s279 + $0x60] sm:$0xff] %vm584, %v564
      %598 = vst.msk [vmem:[%s279 + $0x68] sm:$0xff] %vm584, %v565
      %599 = vst.msk [vmem:[%s279 + $0x70] sm:$0xff] %vm584, %v566
      %600 = vst.msk [vmem:[%s279 + $0x78] sm:$0xff] %vm584, %v567
      %601 = vst.msk [vmem:[%s279 + $0x80] sm:$0xff] %vm584, %v568
      %602 = vst.msk [vmem:[%s279 + $0x88] sm:$0xff] %vm584, %v569
      %603 = vst.msk [vmem:[%s279 + $0x90] sm:$0xff] %vm584, %v570
      %604 = vst.msk [vmem:[%s279 + $0x98] sm:$0xff] %vm584, %v571
      %605 = vst.msk [vmem:[%s279 + $0xa0] sm:$0xff] %vm584, %v572
      %606 = vst.msk [vmem:[%s279 + $0xa8] sm:$0xff] %vm584, %v573
      %607 = vst.msk [vmem:[%s279 + $0xb0] sm:$0xff] %vm584, %v574
      %608 = vst.msk [vmem:[%s279 + $0xb8] sm:$0xff] %vm584, %v575
      %609 = vst.msk [vmem:[%s279 + $0xc0] sm:$0xff] %vm584, %v576
      %610 = vst.msk [vmem:[%s279 + $0xc8] sm:$0xff] %vm584, %v577
      %611 = vst.msk [vmem:[%s279 + $0xd0] sm:$0xff] %vm584, %v578
      %612 = vst.msk [vmem:[%s279 + $0xd8] sm:$0xff] %vm584, %v579
      %613 = vst.msk [vmem:[%s279 + $0xe0] sm:$0xff] %vm584, %v580
      %614 = vst.msk [vmem:[%s279 + $0xe8] sm:$0xff] %vm584, %v581
      %615 = vst.msk [vmem:[%s279 + $0xf0] sm:$0xff] %vm584, %v582
      %616 = vst.msk [vmem:[%s279 + $0xf8] sm:$0xff] %vm584, %v583
      %s617 = smul.u32 16, %s20
      %p618 = scmp.lt.s32.totalorder %s19, 1
      %s619 = scalar_select %p618, %s19, 1
      %p620 = scmp.lt.s32.totalorder %s617, 15
      %s621 = scalar_select %p620, %s617, 15
      %s622 = smul.addr %s621, 2
      %s623 = smul.addr %s619, 32
      %s624 = sadd.s32 %s622, %s623
      %s625 = smul.addr %s624, 8
      %s626 = scalar_lea.vmem %s4, %s625
      // Predicated region
      $region37: #{_lambda_.5} parent=35 // pred_check
        %p627 = pneg %p145
      $region38: #{_lambda_.5} parent=35 // pred_check_branch
        %629 = sbr.rel (%p627) target = $region40
      $region39: #{_lambda_.5} parent=35 // pred_region
        %s630 = smul.u32 16, %s20
      $region40: #{_lambda_.5} parent=35 // pred_fallthru
        _
    $region36: #{_lambda_.5} parent=5 // pred_fallthru
      _
    %p631 = scmp.le.s32.totalorder 2, %s10
    // Predicated region
    $region41: #{_lambda_.5} parent=5 // pred_check
      %p632 = pneg %p631
    $region42: #{_lambda_.5} parent=5 // pred_check_branch
      %634 = sbr.rel (%p632) target = $region44
    $region43: #{_lambda_.5} parent=5 // pred_region
      %s635 = ssub.s32 %s10, 2
      // Predicated region
      $region45: #{_lambda_.5} parent=43 // pred_check
        %p636 = pneg %p151
      $region46: #{_lambda_.5} parent=43 // pred_check_branch
        %638 = sbr.rel (%p636) target = $region48
      $region47: #{_lambda_.5} parent=43 // pred_region
        %s639 = smul.u32 16, %s22
        %p640 = scmp.lt.s32.totalorder %s21, 1
        %s641 = scalar_select %p640, %s21, 1
        %p642 = scmp.lt.s32.totalorder %s639, 15
        %s643 = scalar_select %p642, %s639, 15
        %s644 = smul.addr %s643, 2
        %s645 = smul.addr %s641, 32
        %s646 = sadd.s32 %s644, %s645
        %s647 = smul.addr %s646, 8
        %s648 = scalar_lea.vmem %s4, %s647
      $region48: #{_lambda_.5} parent=43 // pred_fallthru
        _
    $region44: #{_lambda_.5} parent=5 // pred_fallthru
      _
  $region6: #{_lambda_.5} parent=0 // loop_footer
    %s14 = sadd.s32 1, %s10
  $region7: #{_lambda_.5} parent=0 // loop_footer_branch
    %9 = sbr.rel target = $region3
  $region8: #{_lambda_.5} parent=0 // loop_exit
    _

// kernel: _lambda_.4
$region0: #{_lambda_.4}
  #allocation0 [shape = 'u32[]', space=smem, size = 0x4, offset = 0x4, fixed_abs, tag = 'smem constant byte address 0x4 - core index']
  #allocation1 [shape = 'u32[144,128]{1,0:T(1,128)}', space=vmem, size = 0x12000, scoped, tag = 'internal scratch']
  %s0 = inlined_call_operand.vmem [shape: f32[2,10,10,8], index: 0, kind: input, shape index: {}, may-alias: {0,1,2}]
  %s1 = inlined_call_operand.vmem [shape: f32[2,10,10,8], index: 1, kind: input, shape index: {}, may-alias: {0,1,2}]
  %s2 = inlined_call_operand.vmem [shape: f32[2,10,10,8], index: 2, kind: input, shape index: {}, may-alias: {0,1,2}]
  %s3 = inlined_call_operand.vmem [shape: bf16[16,8,4], index: 3, kind: input, shape index: {}]
  %s4 = inlined_call_operand.vmem [shape: f32[2,8,2,8,8], index: 4, kind: output, shape index: {0}]
  %s5 = inlined_call_operand.vmem [shape: f32[2,1,4], index: 5, kind: output, shape index: {1}]
  %s6 = inlined_call_operand.vmem [shape: f32[2,1,4], index: 6, kind: output, shape index: {2}]
  %7 = xla_tuple %s4, %s5, %s6
  %s8 = sld [smem:[#allocation0]]
  $region69: #{_lambda_.4} parent=0
    _
  %s10 = ssub.s32 1, %s8
  %s11 = scalar_select 0, %s10, %s8
  loop: start=0, step=1, limit=4
  $region2: #{_lambda_.4} parent=0 // loop_pre_header
    _
  $region3: #{_lambda_.4} parent=0 // loop_header
    %s13 = sphi 0, %s17
    %p14 = scmp.ge.s32.totalorder %s13, 4
    %s20 = sphi 0, %s32
    %s21 = sphi 0, %s28
    %s22 = sphi 0, %s20
    %s23 = sphi 0, %s21
    %s24 = sphi 0, %s22
    %s25 = sphi 0, %s23
    %s37 = sphi 0, %s39
    %s40 = sphi 0, %s37
    %s41 = sphi 0, %s40
    %s57 = sphi 0, %s41
    %s69 = sphi 0, %s71
    %s72 = sphi 0, %s69
    %s73 = sphi 0, %s72
    %s89 = sphi 0, %s73
    %s101 = sphi 0, %s103
    %s104 = sphi 0, %s101
    %s105 = sphi 0, %s104
    %s121 = sphi 0, %s105
    %s125 = sphi 0, %s125
    %s127 = sphi 0, %s125
    %s128 = sphi 0, %s127
    %s142 = sphi 0, %s128
    %s150 = sphi 0, %s152
    %s153 = sphi 0, %s150
    %s154 = sphi 0, %s153
    %s170 = sphi 0, %s154
    %s176 = sphi 0, %s178
    %s179 = sphi 0, %s176
    %s180 = sphi 0, %s179
    %s196 = sphi 0, %s180
    %s202 = sphi 0, %s204
    %s205 = sphi 0, %s202
    %s206 = sphi 0, %s205
    %s222 = sphi 0, %s206
  $region4: #{_lambda_.4} parent=0 // loop_header_branch
    %16 = sbr.rel (%p14) target = $region8
  $region5: #{_lambda_.4} parent=0 // loop_body
    %s18 = ssub.s32 %s13, 1
    %s19 = ssub.s32 %s13, 2
    %s26 = sadd.s32 1, %s21
    %p27 = scmp.ge.s32.totalorder %s26, 1
    %s28 = scalar_select %p27, 0, %s26
    %s29 = sadd.s32 1, %s20
    %s30 = scalar_select %p27, %s29, %s20
    %p31 = scmp.ge.s32.totalorder %s30, 2
    %s32 = scalar_select %p31, 0, %s30
    %s33 = ssub.s32 %s20, %s32
    %s34 = ssub.s32 %s21, %s28
    %s35 = sor.u32 %s33, %s34
    %p36 = scmp.eq.s32.totalorder %s35, 0
    %s38 = sadd.s32 %s37, 1
    %s39 = scalar_select %p36, %s37, %s38
    %p42 = pneg %p36
    %p43 = scmp.eq.s32.totalorder %s13, 1
    %p44 = por %p42, %p43
    %p45 = scmp.ne.s32.totalorder %s37, %s40
    %p46 = scmp.eq.s32.totalorder %s13, 0
    %p47 = por %p45, %p46
    %p48 = scmp.ne.s32.totalorder %s37, %s40
    %p49 = scmp.eq.s32.totalorder %s18, 1
    %p50 = por %p48, %p49
    %p51 = scmp.ne.s32.totalorder %s40, %s41
    %p52 = scmp.eq.s32.totalorder %s18, 0
    %p53 = por %p51, %p52
    %p54 = scmp.ne.s32.totalorder %s40, %s41
    %p55 = scmp.eq.s32.totalorder %s19, 1
    %p56 = por %p54, %p55
    %p58 = scmp.ne.s32.totalorder %s41, %s57
    %p59 = scmp.eq.s32.totalorder %s19, 0
    %p60 = por %p58, %p59
    %s61 = smul.u32 %s21, 8
    %s62 = sadd.s32 %s61, 8
    %s63 = smul.u32 %s28, 8
    %s64 = sadd.s32 %s63, 8
    %s65 = ssub.s32 %s20, %s32
    %s66 = ssub.s32 %s62, %s64
    %s67 = sor.u32 %s65, %s66
    %p68 = scmp.eq.s32.totalorder %s67, 0
    %s70 = sadd.s32 %s69, 1
    %s71 = scalar_select %p68, %s69, %s70
    %p74 = pneg %p68
    %p75 = scmp.eq.s32.totalorder %s13, 1
    %p76 = por %p74, %p75
    %p77 = scmp.ne.s32.totalorder %s69, %s72
    %p78 = scmp.eq.s32.totalorder %s13, 0
    %p79 = por %p77, %p78
    %p80 = scmp.ne.s32.totalorder %s69, %s72
    %p81 = scmp.eq.s32.totalorder %s18, 1
    %p82 = por %p80, %p81
    %p83 = scmp.ne.s32.totalorder %s72, %s73
    %p84 = scmp.eq.s32.totalorder %s18, 0
    %p85 = por %p83, %p84
    %p86 = scmp.ne.s32.totalorder %s72, %s73
    %p87 = scmp.eq.s32.totalorder %s19, 1
    %p88 = por %p86, %p87
    %p90 = scmp.ne.s32.totalorder %s73, %s89
    %p91 = scmp.eq.s32.totalorder %s19, 0
    %p92 = por %p90, %p91
    %s93 = smul.u32 %s21, 8
    %s94 = sadd.s32 %s93, 9
    %s95 = smul.u32 %s28, 8
    %s96 = sadd.s32 %s95, 9
    %s97 = ssub.s32 %s20, %s32
    %s98 = ssub.s32 %s94, %s96
    %s99 = sor.u32 %s97, %s98
    %p100 = scmp.eq.s32.totalorder %s99, 0
    %s102 = sadd.s32 %s101, 1
    %s103 = scalar_select %p100, %s101, %s102
    %p106 = pneg %p100
    %p107 = scmp.eq.s32.totalorder %s13, 1
    %p108 = por %p106, %p107
    %p109 = scmp.ne.s32.totalorder %s101, %s104
    %p110 = scmp.eq.s32.totalorder %s13, 0
    %p111 = por %p109, %p110
    %p112 = scmp.ne.s32.totalorder %s101, %s104
    %p113 = scmp.eq.s32.totalorder %s18, 1
    %p114 = por %p112, %p113
    %p115 = scmp.ne.s32.totalorder %s104, %s105
    %p116 = scmp.eq.s32.totalorder %s18, 0
    %p117 = por %p115, %p116
    %p118 = scmp.ne.s32.totalorder %s104, %s105
    %p119 = scmp.eq.s32.totalorder %s19, 1
    %p120 = por %p118, %p119
    %p122 = scmp.ne.s32.totalorder %s105, %s121
    %p123 = scmp.eq.s32.totalorder %s19, 0
    %p124 = por %p122, %p123
    %s126 = sadd.s32 %s125, 1
    %p129 = scmp.eq.s32.totalorder %s13, 1
    %p130 = scmp.ne.s32.totalorder %s125, %s127
    %p131 = scmp.eq.s32.totalorder %s13, 0
    %p132 = por %p130, %p131
    %p133 = scmp.ne.s32.totalorder %s125, %s127
    %p134 = scmp.eq.s32.totalorder %s18, 1
    %p135 = por %p133, %p134
    %p136 = scmp.ne.s32.totalorder %s127, %s128
    %p137 = scmp.eq.s32.totalorder %s18, 0
    %p138 = por %p136, %p137
    %p139 = scmp.ne.s32.totalorder %s127, %s128
    %p140 = scmp.eq.s32.totalorder %s19, 1
    %p141 = por %p139, %p140
    %p143 = scmp.ne.s32.totalorder %s128, %s142
    %p144 = scmp.eq.s32.totalorder %s19, 0
    %p145 = por %p143, %p144
    %s146 = ssub.s32 %s20, %s32
    %s147 = ssub.s32 %s21, %s28
    %s148 = sor.u32 %s146, %s147
    %p149 = scmp.eq.s32.totalorder %s148, 0
    %s151 = sadd.s32 %s150, 1
    %s152 = scalar_select %p149, %s150, %s151
    %p155 = pneg %p149
    %p156 = scmp.eq.s32.totalorder %s13, 1
    %p157 = por %p155, %p156
    %p158 = scmp.ne.s32.totalorder %s150, %s153
    %p159 = scmp.eq.s32.totalorder %s13, 0
    %p160 = por %p158, %p159
    %p161 = scmp.ne.s32.totalorder %s150, %s153
    %p162 = scmp.eq.s32.totalorder %s18, 1
    %p163 = por %p161, %p162
    %p164 = scmp.ne.s32.totalorder %s153, %s154
    %p165 = scmp.eq.s32.totalorder %s18, 0
    %p166 = por %p164, %p165
    %p167 = scmp.ne.s32.totalorder %s153, %s154
    %p168 = scmp.eq.s32.totalorder %s19, 1
    %p169 = por %p167, %p168
    %p171 = scmp.ne.s32.totalorder %s154, %s170
    %p172 = scmp.eq.s32.totalorder %s19, 0
    %p173 = por %p171, %p172
    %s174 = ssub.s32 %s20, %s32
    %p175 = scmp.eq.s32.totalorder %s174, 0
    %s177 = sadd.s32 %s176, 1
    %s178 = scalar_select %p175, %s176, %s177
    %p181 = pneg %p175
    %p182 = scmp.eq.s32.totalorder %s13, 1
    %p183 = por %p181, %p182
    %p184 = scmp.ne.s32.totalorder %s176, %s179
    %p185 = scmp.eq.s32.totalorder %s13, 0
    %p186 = por %p184, %p185
    %p187 = scmp.ne.s32.totalorder %s176, %s179
    %p188 = scmp.eq.s32.totalorder %s18, 1
    %p189 = por %p187, %p188
    %p190 = scmp.ne.s32.totalorder %s179, %s180
    %p191 = scmp.eq.s32.totalorder %s18, 0
    %p192 = por %p190, %p191
    %p193 = scmp.ne.s32.totalorder %s179, %s180
    %p194 = scmp.eq.s32.totalorder %s19, 1
    %p195 = por %p193, %p194
    %p197 = scmp.ne.s32.totalorder %s180, %s196
    %p198 = scmp.eq.s32.totalorder %s19, 0
    %p199 = por %p197, %p198
    %s200 = ssub.s32 %s20, %s32
    %p201 = scmp.eq.s32.totalorder %s200, 0
    %s203 = sadd.s32 %s202, 1
    %s204 = scalar_select %p201, %s202, %s203
    %p207 = pneg %p201
    %p208 = scmp.eq.s32.totalorder %s13, 1
    %p209 = por %p207, %p208
    %p210 = scmp.ne.s32.totalorder %s202, %s205
    %p211 = scmp.eq.s32.totalorder %s13, 0
    %p212 = por %p210, %p211
    %p213 = scmp.ne.s32.totalorder %s202, %s205
    %p214 = scmp.eq.s32.totalorder %s18, 1
    %p215 = por %p213, %p214
    %p216 = scmp.ne.s32.totalorder %s205, %s206
    %p217 = scmp.eq.s32.totalorder %s18, 0
    %p218 = por %p216, %p217
    %p219 = scmp.ne.s32.totalorder %s205, %s206
    %p220 = scmp.eq.s32.totalorder %s19, 1
    %p221 = por %p219, %p220
    %p223 = scmp.ne.s32.totalorder %s206, %s222
    %p224 = scmp.eq.s32.totalorder %s19, 0
    %p225 = por %p223, %p224
    %p226 = scmp.le.s32.totalorder 1, %s13
    %p227 = scmp.lt.s32.totalorder %s13, 3
    %p228 = pnand %p226, %p227
    %p229 = pneg %p228
    // Predicated region
    $region9: #{_lambda_.4} parent=5 // pred_check
      _
    $region10: #{_lambda_.4} parent=5 // pred_check_branch
      %231 = sbr.rel (%p228) target = $region12
    $region11: #{_lambda_.4} parent=5 // pred_region
      %s232 = ssub.s32 %s13, 1
      // Predicated region
      $region13: #{_lambda_.4} parent=11 // pred_check
        %p233 = pneg %p138
      $region14: #{_lambda_.4} parent=11 // pred_check_branch
        %235 = sbr.rel (%p233) target = $region16
      $region15: #{_lambda_.4} parent=11 // pred_region
        _
      $region16: #{_lambda_.4} parent=11 // pred_fallthru
        _
    $region12: #{_lambda_.4} parent=5 // pred_fallthru
      _
    %p236 = scmp.lt.s32.totalorder %s13, 2
    // Predicated region
    $region17: #{_lambda_.4} parent=5 // pred_check
      %p237 = pneg %p236
    $region18: #{_lambda_.4} parent=5 // pred_check_branch
      %239 = sbr.rel (%p237) target = $region20
    $region19: #{_lambda_.4} parent=5 // pred_region
      // Predicated region
      $region21: #{_lambda_.4} parent=19 // pred_check
        %p240 = pneg %p47
      $region22: #{_lambda_.4} parent=19 // pred_check_branch
        %242 = sbr.rel (%p240) target = $region24
      $region23: #{_lambda_.4} parent=19 // pred_region
        %s243 = smul.u32 8, %s21
        %s244 = ssub.s32 10, %s243
        %p245 = scmp.lt.s32.totalorder %s244, 8
        %s246 = scalar_select %p245, %s244, 8
        %s247 = smul.u32 128, %s246
        %s248 = smul.u32 %s247, 2
        %p249 = scmp.lt.s32.totalorder %s20, 1
        %s250 = scalar_select %p249, %s20, 1
        %p251 = scmp.lt.s32.totalorder %s243, 9
        %s252 = scalar_select %p251, %s243, 9
        %s253 = smul.addr %s252, 2
        %s254 = smul.addr %s250, 20
        %s255 = sadd.s32 %s253, %s254
        %s256 = smul.addr %s255, 8
        %s257 = scalar_lea.vmem %s0, %s256
        %s258 = smul.u32 8, %s21
        %s259 = ssub.s32 10, %s258
        %p260 = scmp.lt.s32.totalorder %s259, 8
        %s261 = scalar_select %p260, %s259, 8
        %s262 = smul.u32 128, %s261
        %s263 = smul.u32 %s262, 2
      $region24: #{_lambda_.4} parent=19 // pred_fallthru
        _
      // Predicated region
      $region25: #{_lambda_.4} parent=19 // pred_check
        %p264 = pneg %p79
      $region26: #{_lambda_.4} parent=19 // pred_check_branch
        %266 = sbr.rel (%p264) target = $region28
      $region27: #{_lambda_.4} parent=19 // pred_region
        %s267 = smul.u32 %s21, 8
        %s268 = sadd.s32 %s267, 8
        %p269 = scmp.lt.s32.totalorder %s20, 1
        %s270 = scalar_select %p269, %s20, 1
        %p271 = scmp.lt.s32.totalorder %s268, 9
        %s272 = scalar_select %p271, %s268, 9
        %s273 = smul.addr %s272, 2
        %s274 = smul.addr %s270, 20
        %s275 = sadd.s32 %s273, %s274
        %s276 = smul.addr %s275, 8
        %s277 = scalar_lea.vmem %s1, %s276
        %s278 = smul.u32 %s21, 8
        %s279 = sadd.s32 %s278, 8
      $region28: #{_lambda_.4} parent=19 // pred_fallthru
        _
      // Predicated region
      $region29: #{_lambda_.4} parent=19 // pred_check
        %p280 = pneg %p111
      $region30: #{_lambda_.4} parent=19 // pred_check_branch
        %282 = sbr.rel (%p280) target = $region32
      $region31: #{_lambda_.4} parent=19 // pred_region
        %s283 = smul.u32 %s21, 8
        %s284 = sadd.s32 %s283, 9
        %p285 = scmp.lt.s32.totalorder %s20, 1
        %s286 = scalar_select %p285, %s20, 1
        %p287 = scmp.lt.s32.totalorder %s284, 9
        %s288 = scalar_select %p287, %s284, 9
        %s289 = smul.addr %s288, 2
        %s290 = smul.addr %s286, 20
        %s291 = sadd.s32 %s289, %s290
        %s292 = smul.addr %s291, 8
        %s293 = scalar_lea.vmem %s2, %s292
        %s294 = smul.u32 %s21, 8
        %s295 = sadd.s32 %s294, 9
      $region32: #{_lambda_.4} parent=19 // pred_fallthru
        _
    $region20: #{_lambda_.4} parent=5 // pred_fallthru
      _
    %p296 = scmp.le.s32.totalorder 1, %s13
    %p297 = scmp.lt.s32.totalorder %s13, 3
    %p298 = pnand %p296, %p297
    %p299 = pneg %p298
    // Predicated region
    $region33: #{_lambda_.4} parent=5 // pred_check
      _
    $region34: #{_lambda_.4} parent=5 // pred_check_branch
      %301 = sbr.rel (%p298) target = $region36
    $region35: #{_lambda_.4} parent=5 // pred_region
      %s302 = ssub.s32 %s13, 1
      %s303 = smul.u32 8, %s23
      %s304 = ssub.s32 10, %s303
      %p305 = scmp.lt.s32.totalorder %s304, 8
      %s306 = scalar_select %p305, %s304, 8
      %s307 = smul.u32 128, %s306
      %s308 = smul.u32 %s307, 2
      %p309 = scmp.lt.s32.totalorder %s22, 1
      %s310 = scalar_select %p309, %s22, 1
      %p311 = scmp.lt.s32.totalorder %s303, 9
      %s312 = scalar_select %p311, %s303, 9
      %s313 = smul.addr %s312, 2
      %s314 = smul.addr %s310, 20
      %s315 = sadd.s32 %s313, %s314
      %s316 = smul.addr %s315, 8
      %s317 = scalar_lea.vmem %s0, %s316
      %p318 = pneg %p53
      %p319 = pneg %p50
      %s320 = smul.u32 %s23, 8
      %s321 = sadd.s32 %s320, 8
      %p322 = scmp.lt.s32.totalorder %s22, 1
      %s323 = scalar_select %p322, %s22, 1
      %p324 = scmp.lt.s32.totalorder %s321, 9
      %s325 = scalar_select %p324, %s321, 9
      %s326 = smul.addr %s325, 2
      %s327 = smul.addr %s323, 20
      %s328 = sadd.s32 %s326, %s327
      %s329 = smul.addr %s328, 8
      %s330 = scalar_lea.vmem %s1, %s329
      %p331 = pneg %p85
      %p332 = pneg %p82
      %s333 = smul.u32 %s23, 8
      %s334 = sadd.s32 %s333, 9
      %p335 = scmp.lt.s32.totalorder %s22, 1
      %s336 = scalar_select %p335, %s22, 1
      %p337 = scmp.lt.s32.totalorder %s334, 9
      %s338 = scalar_select %p337, %s334, 9
      %s339 = smul.addr %s338, 2
      %s340 = smul.addr %s336, 20
      %s341 = sadd.s32 %s339, %s340
      %s342 = smul.addr %s341, 8
      %s343 = scalar_lea.vmem %s2, %s342
      %p344 = pneg %p117
      %p345 = pneg %p114
      %p346 = pneg %p138
      %p347 = pneg %p135
      %p348 = pneg %p166
      %p349 = pneg %p163
      %s350 = smul.u32 8, %s23
      %p351 = scmp.lt.s32.totalorder %s22, 1
      %s352 = scalar_select %p351, %s22, 1
      %p353 = scmp.lt.s32.totalorder %s350, 7
      %s354 = scalar_select %p353, %s350, 7
      %s355 = smul.addr %s354, 2
      %s356 = smul.addr %s352, 16
      %s357 = sadd.s32 %s355, %s356
      %s358 = smul.addr %s357, 8
      %s359 = scalar_lea.vmem %s4, %s358
      %p360 = pneg %p192
      %p361 = pneg %p189
      %p362 = scmp.lt.s32.totalorder %s22, 1
      %s363 = scalar_select %p362, %s22, 1
      %s364 = scalar_lea.vmem %s5, %s363
      %p365 = pneg %p218
      %p366 = pneg %p215
      %p367 = scmp.lt.s32.totalorder %s22, 1
      %s368 = scalar_select %p367, %s22, 1
      %s369 = scalar_lea.vmem %s6, %s368
      %s370 = smul.u32 8, %s23
      %s371 = ssub.s32 10, %s370
      %p372 = scmp.lt.s32.totalorder %s371, 8
      %s373 = scalar_select %p372, %s371, 8
      %s374 = smul.u32 128, %s373
      %s375 = smul.u32 %s374, 2
      %p376 = scmp.lt.s32.totalorder %s22, 1
      %s377 = scalar_select %p376, %s22, 1
      %p378 = scmp.lt.s32.totalorder %s370, 9
      %s379 = scalar_select %p378, %s370, 9
      %s380 = smul.addr %s379, 2
      %s381 = smul.addr %s377, 20
      %s382 = sadd.s32 %s380, %s381
      %s383 = smul.addr %s382, 8
      %s384 = scalar_lea.vmem %s0, %s383
      %s385 = smul.u32 8, %s23
      %s386 = ssub.s32 10, %s385
      %p387 = scmp.lt.s32.totalorder %s386, 8
      %s388 = scalar_select %p387, %s386, 8
      %s389 = smul.u32 128, %s388
      %s390 = smul.u32 %s389, 2
      %s391 = smul.u32 %s23, 8
      %s392 = sadd.s32 %s391, 8
      %p393 = scmp.lt.s32.totalorder %s22, 1
      %s394 = scalar_select %p393, %s22, 1
      %p395 = scmp.lt.s32.totalorder %s392, 9
      %s396 = scalar_select %p395, %s392, 9
      %s397 = smul.addr %s396, 2
      %s398 = smul.addr %s394, 20
      %s399 = sadd.s32 %s397, %s398
      %s400 = smul.addr %s399, 8
      %s401 = scalar_lea.vmem %s1, %s400
      %s402 = smul.u32 %s23, 8
      %s403 = sadd.s32 %s402, 8
      %s404 = smul.u32 %s23, 8
      %s405 = sadd.s32 %s404, 9
      %p406 = scmp.lt.s32.totalorder %s22, 1
      %s407 = scalar_select %p406, %s22, 1
      %p408 = scmp.lt.s32.totalorder %s405, 9
      %s409 = scalar_select %p408, %s405, 9
      %s410 = smul.addr %s409, 2
      %s411 = smul.addr %s407, 20
      %s412 = sadd.s32 %s410, %s411
      %s413 = smul.addr %s412, 8
      %s414 = scalar_lea.vmem %s2, %s413
      %s415 = smul.u32 %s23, 8
      %s416 = sadd.s32 %s415, 9
      %s417 = smul.u32 8, %s23
      %p418 = scmp.lt.s32.totalorder %s22, 1
      %s419 = scalar_select %p418, %s22, 1
      %p420 = scmp.lt.s32.totalorder %s417, 7
      %s421 = scalar_select %p420, %s417, 7
      %s422 = smul.addr %s421, 2
      %s423 = smul.addr %s419, 16
      %s424 = sadd.s32 %s422, %s423
      %s425 = smul.addr %s424, 8
      %s426 = scalar_lea.vmem %s4, %s425
      %s427 = smul.u32 8, %s23
      %p428 = scmp.lt.s32.totalorder %s22, 1
      %s429 = scalar_select %p428, %s22, 1
      %s430 = scalar_lea.vmem %s5, %s429
      %p431 = scmp.lt.s32.totalorder %s22, 1
      %s432 = scalar_select %p431, %s22, 1
      %s433 = scalar_lea.vmem %s6, %s432
      %p435 = scmp.eq.s32.totalorder %s23, 0
      // Predicated region
      $region37: #{_lambda_.4} parent=35 // pred_check
        %p436 = pneg %p435
      $region38: #{_lambda_.4} parent=35 // pred_check_branch
        %438 = sbr.rel (%p436) target = $region40
      $region39: #{_lambda_.4} parent=35 // pred_region
        %vm439 = vcmask 24576
        %440 = vst.msk [vmem:[%s430] sm:$0x1] %vm439, 0.0
        %441 = vst.msk [vmem:[%s433] sm:$0x1] %vm439, 0.0
      $region40: #{_lambda_.4} parent=35 // pred_fallthru
        _
      %v442 = vld [vmem:[%s384] sm:$0xff]
      %v443 = vld [vmem:[%s384 + $0x8] sm:$0x3]
      %v444 = vld [vmem:[%s384 + $0x10] sm:$0xff]
      %v445 = vld [vmem:[%s384 + $0x18] sm:$0x3]
      %v446 = vld [vmem:[%s384 + $0x20] sm:$0xff]
      %v447 = vld [vmem:[%s384 + $0x28] sm:$0x3]
      %v448 = vld [vmem:[%s384 + $0x30] sm:$0xff]
      %v449 = vld [vmem:[%s384 + $0x38] sm:$0x3]
      %v450 = vld [vmem:[%s384 + $0x40] sm:$0xff]
      %v451 = vld [vmem:[%s384 + $0x48] sm:$0x3]
      %v452 = vld [vmem:[%s384 + $0x50] sm:$0xff]
      %v453 = vld [vmem:[%s384 + $0x58] sm:$0x3]
      %v454 = vld [vmem:[%s384 + $0x60] sm:$0xff]
      %v455 = vld [vmem:[%s384 + $0x68] sm:$0x3]
      %v456 = vld [vmem:[%s384 + $0x70] sm:$0xff]
      %v457 = vld [vmem:[%s384 + $0x78] sm:$0x3]
      %v458 = vld [vmem:[%s401] sm:$0xff]
      %v459 = vld [vmem:[%s401 + $0x8] sm:$0x3]
      %v460 = vld [vmem:[%s414] sm:$0xff]
      %v461 = vld [vmem:[%s414 + $0x8] sm:$0x3]
      %v462 = vpack.c.bf16 %v443, %v442
      %v463 = vpack.c.bf16 %v445, %v444
      %v464 = vpack.c.bf16 %v447, %v446
      %v465 = vpack.c.bf16 %v449, %v448
      %v466 = vpack.c.bf16 %v451, %v450
      %v467 = vpack.c.bf16 %v453, %v452
      %v468 = vpack.c.bf16 %v455, %v454
      %v469 = vpack.c.bf16 %v457, %v456
      %v470 = vpack.c.bf16 %v459, %v458
      %v471 = vpack.c.bf16 %v461, %v460
      %v472 = vld [vmem:[%s3] sm:$0xf]
      %v481 = vunpack.c.l.b16 %v462
      %v482 = vunpack.c.h.b16 %v462
      %v483 = vunpack.c.l.b16 %v463
      %v484 = vunpack.c.h.b16 %v463
      %v485 = vunpack.c.l.b16 %v464
      %v486 = vunpack.c.h.b16 %v464
      %v487 = vunpack.c.l.b16 %v465
      %v488 = vunpack.c.h.b16 %v465
      %v489 = vunpack.c.l.b16 %v466
      %v490 = vunpack.c.h.b16 %v466
      %v491 = vunpack.c.l.b16 %v467
      %v492 = vunpack.c.h.b16 %v467
      %v493 = vunpack.c.l.b16 %v468
      %v494 = vunpack.c.h.b16 %v468
      %v495 = vunpack.c.l.b16 %v469
      %v496 = vunpack.c.h.b16 %v469
      %v497 = vpack.c.b16 %v481, %v481
      %v498 = vpack.c.b16 %v482, %v482
      %v499 = vpack.c.b16 %v483, %v483
      %v500 = vpack.c.b16 %v484, %v484
      %v501 = vpack.c.b16 %v485, %v485
      %v502 = vpack.c.b16 %v486, %v486
      %v503 = vpack.c.b16 %v487, %v487
      %v504 = vpack.c.b16 %v488, %v488
      %v505 = vpack.c.b16 %v489, %v489
      %v506 = vpack.c.b16 %v490, %v490
      %v507 = vpack.c.b16 %v491, %v491
      %v508 = vpack.c.b16 %v492, %v492
      %v509 = vpack.c.b16 %v493, %v493
      %v510 = vpack.c.b16 %v494, %v494
      %v511 = vpack.c.b16 %v495, %v495
      %v512 = vpack.c.b16 %v496, %v496
      %vm513 = vsmask.f32 3328
      %vm514 = vsmask.f32 7440
      %vm515 = vmor %vm513, %vm514
      %v517 = vshrl.u32 %v497, 16
      %v519 = vrot.slane %v517, 4
      %v520 = vshll.u32 %v497, 16
      %v522 = vrot.slane %v520, 5
      %v523 = vor.u32 %v519, %v522
      %v524 = vrot.slane %v523, 4
      %v526 = vshll.u32 %v498, 16
      %v528 = vrot.slane %v526, 5
      %v529 = vsel %vm515, %v524, %v528
      %v531 = vshrl.u32 %v499, 16
      %v533 = vrot.slane %v531, 4
      %v534 = vshll.u32 %v499, 16
      %v536 = vrot.slane %v534, 5
      %v537 = vor.u32 %v533, %v536
      %v538 = vrot.slane %v537, 4
      %v540 = vshll.u32 %v500, 16
      %v542 = vrot.slane %v540, 5
      %v543 = vsel %vm515, %v538, %v542
      %v545 = vshrl.u32 %v501, 16
      %v547 = vrot.slane %v545, 4
      %v548 = vshll.u32 %v501, 16
      %v550 = vrot.slane %v548, 5
      %v551 = vor.u32 %v547, %v550
      %v552 = vrot.slane %v551, 4
      %v554 = vshll.u32 %v502, 16
      %v556 = vrot.slane %v554, 5
      %v557 = vsel %vm515, %v552, %v556
      %v559 = vshrl.u32 %v503, 16
      %v561 = vrot.slane %v559, 4
      %v562 = vshll.u32 %v503, 16
      %v564 = vrot.slane %v562, 5
      %v565 = vor.u32 %v561, %v564
      %v566 = vrot.slane %v565, 4
      %v568 = vshll.u32 %v504, 16
      %v570 = vrot.slane %v568, 5
      %v571 = vsel %vm515, %v566, %v570
      %v573 = vshrl.u32 %v505, 16
      %v575 = vrot.slane %v573, 4
      %v576 = vshll.u32 %v505, 16
      %v578 = vrot.slane %v576, 5
      %v579 = vor.u32 %v575, %v578
      %v580 = vrot.slane %v579, 4
      %v582 = vshll.u32 %v506, 16
      %v584 = vrot.slane %v582, 5
      %v585 = vsel %vm515, %v580, %v584
      %v587 = vshrl.u32 %v507, 16
      %v589 = vrot.slane %v587, 4
      %v590 = vshll.u32 %v507, 16
      %v592 = vrot.slane %v590, 5
      %v593 = vor.u32 %v589, %v592
      %v594 = vrot.slane %v593, 4
      %v596 = vshll.u32 %v508, 16
      %v598 = vrot.slane %v596, 5
      %v599 = vsel %vm515, %v594, %v598
      %v601 = vshrl.u32 %v509, 16
      %v603 = vrot.slane %v601, 4
      %v604 = vshll.u32 %v509, 16
      %v606 = vrot.slane %v604, 5
      %v607 = vor.u32 %v603, %v606
      %v608 = vrot.slane %v607, 4
      %v610 = vshll.u32 %v510, 16
      %v612 = vrot.slane %v610, 5
      %v613 = vsel %vm515, %v608, %v612
      %v615 = vshrl.u32 %v511, 16
      %v617 = vrot.slane %v615, 4
      %v618 = vshll.u32 %v511, 16
      %v620 = vrot.slane %v618, 5
      %v621 = vor.u32 %v617, %v620
      %v622 = vrot.slane %v621, 4
      %v624 = vshll.u32 %v512, 16
      %v626 = vrot.slane %v624, 5
      %v627 = vsel %vm515, %v622, %v626
      %s628 = scalar_lea.vmem %s3, 4
      %v629 = vld [vmem:[%s628] sm:$0xf]
      %v630 = vunpack.c.l.b16 %v529
      %v631 = vunpack.c.l.b16 %v543
      %v632 = vunpack.c.l.b16 %v557
      %v633 = vunpack.c.l.b16 %v571
      %v634 = vunpack.c.l.b16 %v585
      %v635 = vunpack.c.l.b16 %v599
      %v636 = vunpack.c.l.b16 %v613
      %v637 = vunpack.c.l.b16 %v627
      %v638 = vpack.c.b16 %v631, %v630
      %v639 = vpack.c.b16 %v633, %v632
      %v640 = vpack.c.b16 %v635, %v634
      %v641 = vpack.c.b16 %v637, %v636
      %vm642 = vcmask 64512
      %v644 = vsel %vm642, %v638, 0
      %v647 = vsel %vm642, %v639, 0
      %v650 = vsel %vm642, %v640, 0
      %v653 = vsel %vm642, %v641, 0
      %vm655 = vcmask 1043456
      %v657 = vsel %vm655, %v629, 0
      %659 = vmatprep.subr.bf16.mxu0 0
      %660 = vmatpush1.bf16.msra.mxu0 %v657
      %661 = vmatprep.subr.bf16.mxu0 0
      %662 = vmatpush1.bf16.msra.mxu0 0
      %663 = vmatprep.subr.bf16.mxu0 0
      %664 = vmatpush1.bf16.msra.mxu0 0
      %665 = vmatprep.subr.bf16.mxu0 0
      %666 = vmatpush1.bf16.msra.mxu0 0
      %667 = vmatprep.subr.bf16.mxu0 0
      %668 = vmatpush1.bf16.msra.mxu0 0
      %669 = vmatprep.subr.bf16.mxu0 0
      %670 = vmatpush1.bf16.msra.mxu0 0
      %671 = vmatprep.subr.bf16.mxu0 0
      %672 = vmatpush1.bf16.msra.mxu0 0
      %673 = vmatprep.subr.bf16.mxu0 0
      %674 = vmatpush1.bf16.msra.mxu0 0
      %675 = vmatprep.subr.bf16.mxu0 0
      %676 = vmatpush1.bf16.msra.mxu0 0
      %677 = vmatprep.subr.bf16.mxu0 0
      %678 = vmatpush1.bf16.msra.mxu0 0
      %679 = vmatprep.subr.bf16.mxu0 0
      %680 = vmatpush1.bf16.msra.mxu0 0
      %681 = vmatprep.subr.bf16.mxu0 0
      %682 = vmatpush1.bf16.msra.mxu0 0
      %683 = vmatprep.subr.bf16.mxu0 0
      %684 = vmatpush1.bf16.msra.mxu0 0
      %685 = vmatprep.subr.bf16.mxu0 0
      %686 = vmatpush1.bf16.msra.mxu0 0
      %687 = vmatprep.subr.bf16.mxu0 0
      %688 = vmatpush1.bf16.msra.mxu0 0
      %689 = vmatprep.subr.bf16.mxu0 0
      %690 = vmatpush1.bf16.msra.mxu0 0
      %691 = vmatprep.mubr.bf16.mxu0 0
      %692 = vmatmul.mubr.bf16.gmra.mrb[0].mxu0 %v644
      %v693 = vpop.f32.mrb[0].mxu0
      %v694 = vadd.f32 0.0, %v693
      %v695 = vpop.f32.mrb[0].mxu0
      %v696 = vpop.f32.mrb[0].mxu0
      %v697 = vadd.f32 0.0, %v696
      %v698 = vpop.f32.mrb[0].mxu0
      %699 = vmatprep.mubr.bf16.mxu0 0
      %700 = vmatmul.mubr.bf16.gmra.mrb[0].mxu0 %v647
      %v701 = vpop.f32.mrb[0].mxu0
      %v702 = vadd.f32 0.0, %v701
      %v703 = vpop.f32.mrb[0].mxu0
      %v704 = vpop.f32.mrb[0].mxu0
      %v705 = vadd.f32 0.0, %v704
      %v706 = vpop.f32.mrb[0].mxu0
      %707 = vmatprep.mubr.bf16.mxu0 0
      %708 = vmatmul.mubr.bf16.gmra.mrb[0].mxu0 %v650
      %v709 = vpop.f32.mrb[0].mxu0
      %v710 = vadd.f32 0.0, %v709
      %v711 = vpop.f32.mrb[0].mxu0
      %v712 = vpop.f32.mrb[0].mxu0
      %v713 = vadd.f32 0.0, %v712
      %v714 = vpop.f32.mrb[0].mxu0
      %715 = vmatprep.mubr.bf16.mxu0 0
      %716 = vmatmul.mubr.bf16.gmra.mrb[0].mxu0 %v653
      %v717 = vpop.f32.mrb[0].mxu0
      %v718 = vadd.f32 0.0, %v717
      %v719 = vpop.f32.mrb[0].mxu0
      %v720 = vpop.f32.mrb[0].mxu0
      %v721 = vadd.f32 0.0, %v720
      %v722 = vpop.f32.mrb[0].mxu0
      %723 = vdwg.mxu0
      %v724 = vpack.c.b16 %v483, %v481
      %v725 = vpack.c.b16 %v487, %v485
      %v726 = vpack.c.b16 %v491, %v489
      %v727 = vpack.c.b16 %v495, %v493
      %v729 = vsel %vm642, %v724, 0
      %v732 = vsel %vm642, %v725, 0
      %v735 = vsel %vm642, %v726, 0
      %v738 = vsel %vm642, %v727, 0
      %v741 = vsel %vm655, %v472, 0
      %743 = vmatprep.subr.bf16.mxu0 0
      %744 = vmatpush1.bf16.msra.mxu0 %v741
      %745 = vmatprep.subr.bf16.mxu0 0
      %746 = vmatpush1.bf16.msra.mxu0 0
      %747 = vmatprep.subr.bf16.mxu0 0
      %748 = vmatpush1.bf16.msra.mxu0 0
      %749 = vmatprep.subr.bf16.mxu0 0
      %750 = vmatpush1.bf16.msra.mxu0 0
      %751 = vmatprep.subr.bf16.mxu0 0
      %752 = vmatpush1.bf16.msra.mxu0 0
      %753 = vmatprep.subr.bf16.mxu0 0
      %754 = vmatpush1.bf16.msra.mxu0 0
      %755 = vmatprep.subr.bf16.mxu0 0
      %756 = vmatpush1.bf16.msra.mxu0 0
      %757 = vmatprep.subr.bf16.mxu0 0
      %758 = vmatpush1.bf16.msra.mxu0 0
      %759 = vmatprep.subr.bf16.mxu0 0
      %760 = vmatpush1.bf16.msra.mxu0 0
      %761 = vmatprep.subr.bf16.mxu0 0
      %762 = vmatpush1.bf16.msra.mxu0 0
      %763 = vmatprep.subr.bf16.mxu0 0
      %764 = vmatpush1.bf16.msra.mxu0 0
      %765 = vmatprep.subr.bf16.mxu0 0
      %766 = vmatpush1.bf16.msra.mxu0 0
      %767 = vmatprep.subr.bf16.mxu0 0
      %768 = vmatpush1.bf16.msra.mxu0 0
      %769 = vmatprep.subr.bf16.mxu0 0
      %770 = vmatpush1.bf16.msra.mxu0 0
      %771 = vmatprep.subr.bf16.mxu0 0
      %772 = vmatpush1.bf16.msra.mxu0 0
      %773 = vmatprep.subr.bf16.mxu0 0
      %774 = vmatpush1.bf16.msra.mxu0 0
      %775 = vmatprep.mubr.bf16.mxu0 0
      %776 = vmatmul.mubr.bf16.gmra.mrb[0].mxu0 %v729
      %v777 = vpop.f32.mrb[0].mxu0
      %v778 = vadd.f32 %v694, %v777
      %v779 = vpop.f32.mrb[0].mxu0
      %v780 = vpop.f32.mrb[0].mxu0
      %v781 = vadd.f32 %v697, %v780
      %v782 = vpop.f32.mrb[0].mxu0
      %783 = vmatprep.mubr.bf16.mxu0 0
      %784 = vmatmul.mubr.bf16.gmra.mrb[0].mxu0 %v732
      %v785 = vpop.f32.mrb[0].mxu0
      %v786 = vadd.f32 %v702, %v785
      %v787 = vpop.f32.mrb[0].mxu0
      %v788 = vpop.f32.mrb[0].mxu0
      %v789 = vadd.f32 %v705, %v788
      %v790 = vpop.f32.mrb[0].mxu0
      %791 = vmatprep.mubr.bf16.mxu0 0
      %792 = vmatmul.mubr.bf16.gmra.mrb[0].mxu0 %v735
      %v793 = vpop.f32.mrb[0].mxu0
      %v794 = vadd.f32 %v710, %v793
      %v795 = vpop.f32.mrb[0].mxu0
      %v796 = vpop.f32.mrb[0].mxu0
      %v797 = vadd.f32 %v713, %v796
      %v798 = vpop.f32.mrb[0].mxu0
      %799 = vmatprep.mubr.bf16.mxu0 0
      %800 = vmatmul.mubr.bf16.gmra.mrb[0].mxu0 %v738
      %v801 = vpop.f32.mrb[0].mxu0
      %v802 = vadd.f32 %v718, %v801
      %v803 = vpop.f32.mrb[0].mxu0
      %v804 = vpop.f32.mrb[0].mxu0
      %v805 = vadd.f32 %v721, %v804
      %v806 = vpop.f32.mrb[0].mxu0
      %807 = vdwg.mxu0
      %s808 = scalar_lea.vmem %s3, 8
      %v809 = vld [vmem:[%s808] sm:$0xf]
      %v811 = vunpack.c.l.b16 %v470
      %v812 = vpack.c.b16 %v485, %v483
      %v813 = vpack.c.b16 %v489, %v487
      %v814 = vpack.c.b16 %v493, %v491
      %v815 = vpack.c.b16 %v811, %v495
      %v817 = vsel %vm642, %v812, 0
      %v820 = vsel %vm642, %v813, 0
      %v823 = vsel %vm642, %v814, 0
      %v826 = vsel %vm642, %v815, 0
      %v829 = vsel %vm655, %v809, 0
      %831 = vmatprep.subr.bf16.mxu0 0
      %832 = vmatpush1.bf16.msra.mxu0 %v829
      %833 = vmatprep.subr.bf16.mxu0 0
      %834 = vmatpush1.bf16.msra.mxu0 0
      %835 = vmatprep.subr.bf16.mxu0 0
      %836 = vmatpush1.bf16.msra.mxu0 0
      %837 = vmatprep.subr.bf16.mxu0 0
      %838 = vmatpush1.bf16.msra.mxu0 0
      %839 = vmatprep.subr.bf16.mxu0 0
      %840 = vmatpush1.bf16.msra.mxu0 0
      %841 = vmatprep.subr.bf16.mxu0 0
      %842 = vmatpush1.bf16.msra.mxu0 0
      %843 = vmatprep.subr.bf16.mxu0 0
      %844 = vmatpush1.bf16.msra.mxu0 0
      %845 = vmatprep.subr.bf16.mxu0 0
      %846 = vmatpush1.bf16.msra.mxu0 0
      %847 = vmatprep.subr.bf16.mxu0 0
      %848 = vmatpush1.bf16.msra.mxu0 0
      %849 = vmatprep.subr.bf16.mxu0 0
      %850 = vmatpush1.bf16.msra.mxu0 0
      %851 = vmatprep.subr.bf16.mxu0 0
      %852 = vmatpush1.bf16.msra.mxu0 0
      %853 = vmatprep.subr.bf16.mxu0 0
      %854 = vmatpush1.bf16.msra.mxu0 0
      %855 = vmatprep.subr.bf16.mxu0 0
      %856 = vmatpush1.bf16.msra.mxu0 0
      %857 = vmatprep.subr.bf16.mxu0 0
      %858 = vmatpush1.bf16.msra.mxu0 0
      %859 = vmatprep.subr.bf16.mxu0 0
      %860 = vmatpush1.bf16.msra.mxu0 0
      %861 = vmatprep.subr.bf16.mxu0 0
      %862 = vmatpush1.bf16.msra.mxu0 0
      %863 = vmatprep.mubr.bf16.mxu0 0
      %864 = vmatmul.mubr.bf16.gmra.mrb[0].mxu0 %v817
      %v865 = vpop.f32.mrb[0].mxu0
      %v866 = vadd.f32 0.0, %v865
      %v867 = vpop.f32.mrb[0].mxu0
      %v868 = vpop.f32.mrb[0].mxu0
      %v869 = vadd.f32 0.0, %v868
      %v870 = vpop.f32.mrb[0].mxu0
      %871 = vmatprep.mubr.bf16.mxu0 0
      %872 = vmatmul.mubr.bf16.gmra.mrb[0].mxu0 %v820
      %v873 = vpop.f32.mrb[0].mxu0
      %v874 = vadd.f32 0.0, %v873
      %v875 = vpop.f32.mrb[0].mxu0
      %v876 = vpop.f32.mrb[0].mxu0
      %v877 = vadd.f32 0.0, %v876
      %v878 = vpop.f32.mrb[0].mxu0
      %879 = vmatprep.mubr.bf16.mxu0 0
      %880 = vmatmul.mubr.bf16.gmra.mrb[0].mxu0 %v823
      %v881 = vpop.f32.mrb[0].mxu0
      %v882 = vadd.f32 0.0, %v881
      %v883 = vpop.f32.mrb[0].mxu0
      %v884 = vpop.f32.mrb[0].mxu0
      %v885 = vadd.f32 0.0, %v884
      %v886 = vpop.f32.mrb[0].mxu0
      %887 = vmatprep.mubr.bf16.mxu0 0
      %888 = vmatmul.mubr.bf16.gmra.mrb[0].mxu0 %v826
      %v889 = vpop.f32.mrb[0].mxu0
      %v890 = vadd.f32 0.0, %v889
      %v891 = vpop.f32.mrb[0].mxu0
      %v892 = vpop.f32.mrb[0].mxu0
      %v893 = vadd.f32 0.0, %v892
      %v894 = vpop.f32.mrb[0].mxu0
      %895 = vdwg.mxu0
      %v896 = vadd.f32 %v778, %v866
      %v897 = vadd.f32 %v781, %v869
      %v898 = vadd.f32 %v786, %v874
      %v899 = vadd.f32 %v789, %v877
      %v900 = vadd.f32 %v794, %v882
      %v901 = vadd.f32 %v797, %v885
      %v902 = vadd.f32 %v802, %v890
      %v903 = vadd.f32 %v805, %v893
      %v904 = vunpack.c.h.b16 %v470
      %v905 = vpack.c.b16 %v811, %v811
      %v906 = vpack.c.b16 %v904, %v904
      %v908 = vshrl.u32 %v905, 16
      %v910 = vrot.slane %v908, 4
      %v911 = vshll.u32 %v905, 16
      %v913 = vrot.slane %v911, 5
      %v914 = vor.u32 %v910, %v913
      %v915 = vrot.slane %v914, 4
      %v917 = vshll.u32 %v906, 16
      %v919 = vrot.slane %v917, 5
      %v920 = vsel %vm515, %v915, %v919
      %s921 = scalar_lea.vmem %s3, 12
      %v922 = vld [vmem:[%s921] sm:$0xf]
      %v923 = vunpack.c.l.b16 %v920
      %v924 = vpack.c.b16 %v632, %v631
      %v925 = vpack.c.b16 %v634, %v633
      %v926 = vpack.c.b16 %v636, %v635
      %v927 = vpack.c.b16 %v923, %v637
      %v929 = vsel %vm642, %v924, 0
      %v932 = vsel %vm642, %v925, 0
      %v935 = vsel %vm642, %v926, 0
      %v938 = vsel %vm642, %v927, 0
      %v941 = vsel %vm655, %v922, 0
      %943 = vmatprep.subr.bf16.mxu0 0
      %944 = vmatpush1.bf16.msra.mxu0 %v941
      %945 = vmatprep.subr.bf16.mxu0 0
      %946 = vmatpush1.bf16.msra.mxu0 0
      %947 = vmatprep.subr.bf16.mxu0 0
      %948 = vmatpush1.bf16.msra.mxu0 0
      %949 = vmatprep.subr.bf16.mxu0 0
      %950 = vmatpush1.bf16.msra.mxu0 0
      %951 = vmatprep.subr.bf16.mxu0 0
      %952 = vmatpush1.bf16.msra.mxu0 0
      %953 = vmatprep.subr.bf16.mxu0 0
      %954 = vmatpush1.bf16.msra.mxu0 0
      %955 = vmatprep.subr.bf16.mxu0 0
      %956 = vmatpush1.bf16.msra.mxu0 0
      %957 = vmatprep.subr.bf16.mxu0 0
      %958 = vmatpush1.bf16.msra.mxu0 0
      %959 = vmatprep.subr.bf16.mxu0 0
      %960 = vmatpush1.bf16.msra.mxu0 0
      %961 = vmatprep.subr.bf16.mxu0 0
      %962 = vmatpush1.bf16.msra.mxu0 0
      %963 = vmatprep.subr.bf16.mxu0 0
      %964 = vmatpush1.bf16.msra.mxu0 0
      %965 = vmatprep.subr.bf16.mxu0 0
      %966 = vmatpush1.bf16.msra.mxu0 0
      %967 = vmatprep.subr.bf16.mxu0 0
      %968 = vmatpush1.bf16.msra.mxu0 0
      %969 = vmatprep.subr.bf16.mxu0 0
      %970 = vmatpush1.bf16.msra.mxu0 0
      %971 = vmatprep.subr.bf16.mxu0 0
      %972 = vmatpush1.bf16.msra.mxu0 0
      %973 = vmatprep.subr.bf16.mxu0 0
      %974 = vmatpush1.bf16.msra.mxu0 0
      %975 = vmatprep.mubr.bf16.mxu0 0
      %976 = vmatmul.mubr.bf16.gmra.mrb[0].mxu0 %v929
      %v977 = vpop.f32.mrb[0].mxu0
      %v978 = vadd.f32 0.0, %v977
      %v979 = vpop.f32.mrb[0].mxu0
      %v980 = vpop.f32.mrb[0].mxu0
      %v981 = vadd.f32 0.0, %v980
      %v982 = vpop.f32.mrb[0].mxu0
      %983 = vmatprep.mubr.bf16.mxu0 0
      %984 = vmatmul.mubr.bf16.gmra.mrb[0].mxu0 %v932
      %v985 = vpop.f32.mrb[0].mxu0
      %v986 = vadd.f32 0.0, %v985
      %v987 = vpop.f32.mrb[0].mxu0
      %v988 = vpop.f32.mrb[0].mxu0
      %v989 = vadd.f32 0.0, %v988
      %v990 = vpop.f32.mrb[0].mxu0
      %991 = vmatprep.mubr.bf16.mxu0 0
      %992 = vmatmul.mubr.bf16.gmra.mrb[0].mxu0 %v935
      %v993 = vpop.f32.mrb[0].mxu0
      %v994 = vadd.f32 0.0, %v993
      %v995 = vpop.f32.mrb[0].mxu0
      %v996 = vpop.f32.mrb[0].mxu0
      %v997 = vadd.f32 0.0, %v996
      %v998 = vpop.f32.mrb[0].mxu0
      %999 = vmatprep.mubr.bf16.mxu0 0
      %1000 = vmatmul.mubr.bf16.gmra.mrb[0].mxu0 %v938
      %v1001 = vpop.f32.mrb[0].mxu0
      %v1002 = vadd.f32 0.0, %v1001
      %v1003 = vpop.f32.mrb[0].mxu0
      %v1004 = vpop.f32.mrb[0].mxu0
      %v1005 = vadd.f32 0.0, %v1004
      %v1006 = vpop.f32.mrb[0].mxu0
      %1007 = vdwg.mxu0
      %v1008 = vadd.f32 %v896, %v978
      %v1009 = vadd.f32 %v897, %v981
      %v1010 = vadd.f32 %v898, %v986
      %v1011 = vadd.f32 %v899, %v989
      %v1012 = vadd.f32 %v900, %v994
      %v1013 = vadd.f32 %v901, %v997
      %v1014 = vadd.f32 %v902, %v1002
      %v1015 = vadd.f32 %v903, %v1005
      %vm1016 = vcmask 31744
      %v1017 = vsel %vm1016, %v1008, 0.0
      %v1018 = vsel %vm1016, %v1009, 0.0
      %v1019 = vadd.f32 %v1017, %v1018
      %v1020 = vsel %vm1016, %v1010, 0.0
      %v1021 = vadd.f32 %v1019, %v1020
      %v1022 = vsel %vm1016, %v1011, 0.0
      %v1023 = vadd.f32 %v1021, %v1022
      %v1024 = vsel %vm1016, %v1012, 0.0
      %v1025 = vadd.f32 %v1023, %v1024
      %v1026 = vsel %vm1016, %v1013, 0.0
      %v1027 = vadd.f32 %v1025, %v1026
      %v1028 = vsel %vm1016, %v1014, 0.0
      %v1029 = vadd.f32 %v1027, %v1028
      %v1030 = vsel %vm1016, %v1015, 0.0
      %v1031 = vadd.f32 %v1029, %v1030
      %v1032 = vrot.slane %v1031, 4
      %v1033 = vadd.f32 %v1031, %v1032
      %v1034 = vrot.slane %v1033, 2
      %v1035 = vadd.f32 %v1033, %v1034
      %v1036 = vrot.slane %v1035, 1
      %v1037 = vadd.f32 %v1035, %v1036
      %v1038 = vadd.f32 %v1037, 0.0
      %v1039 = vmul.f32 %v1008, %v1008
      %v1040 = vmul.f32 %v1009, %v1009
      %v1041 = vmul.f32 %v1010, %v1010
      %v1042 = vmul.f32 %v1011, %v1011
      %v1043 = vmul.f32 %v1012, %v1012
      %v1044 = vmul.f32 %v1013, %v1013
      %v1045 = vmul.f32 %v1014, %v1014
      %v1046 = vmul.f32 %v1015, %v1015
      %v1047 = vsel %vm1016, %v1039, 0.0
      %v1048 = vsel %vm1016, %v1040, 0.0
      %v1049 = vadd.f32 %v1047, %v1048
      %v1050 = vsel %vm1016, %v1041, 0.0
      %v1051 = vadd.f32 %v1049, %v1050
      %v1052 = vsel %vm1016, %v1042, 0.0
      %v1053 = vadd.f32 %v1051, %v1052
      %v1054 = vsel %vm1016, %v1043, 0.0
      %v1055 = vadd.f32 %v1053, %v1054
      %v1056 = vsel %vm1016, %v1044, 0.0
      %v1057 = vadd.f32 %v1055, %v1056
      %v1058 = vsel %vm1016, %v1045, 0.0
      %v1059 = vadd.f32 %v1057, %v1058
      %v1060 = vsel %vm1016, %v1046, 0.0
      %v1061 = vadd.f32 %v1059, %v1060
      %v1062 = vrot.slane %v1061, 4
      %v1063 = vadd.f32 %v1061, %v1062
      %v1064 = vrot.slane %v1063, 2
      %v1065 = vadd.f32 %v1063, %v1064
      %v1066 = vrot.slane %v1065, 1
      %v1067 = vadd.f32 %v1065, %v1066
      %v1068 = vadd.f32 %v1067, 0.0
      %s1069 = scalar_lea.vmem %s3, 16
      %v1070 = vld [vmem:[%s1069] sm:$0xf]
      %vm1071 = vcmask 1042432
      %vm1072 = vcmask 1046532
      %vm1073 = vmor %vm1071, %vm1072
      %v1074 = vrot.slane %v497, 5
      %v1075 = vrot.slane %v1074, 4
      %v1076 = vrot.slane %v498, 5
      %v1077 = vsel %vm1073, %v1075, %v1076
      %v1078 = vrot.slane %v499, 5
      %v1079 = vrot.slane %v1078, 4
      %v1080 = vrot.slane %v500, 5
      %v1081 = vsel %vm1073, %v1079, %v1080
      %v1082 = vrot.slane %v501, 5
      %v1083 = vrot.slane %v1082, 4
      %v1084 = vrot.slane %v502, 5
      %v1085 = vsel %vm1073, %v1083, %v1084
      %v1086 = vrot.slane %v503, 5
      %v1087 = vrot.slane %v1086, 4
      %v1088 = vrot.slane %v504, 5
      %v1089 = vsel %vm1073, %v1087, %v1088
      %v1090 = vrot.slane %v505, 5
      %v1091 = vrot.slane %v1090, 4
      %v1092 = vrot.slane %v506, 5
      %v1093 = vsel %vm1073, %v1091, %v1092
      %v1094 = vrot.slane %v507, 5
      %v1095 = vrot.slane %v1094, 4
      %v1096 = vrot.slane %v508, 5
      %v1097 = vsel %vm1073, %v1095, %v1096
      %v1098 = vrot.slane %v509, 5
      %v1099 = vrot.slane %v1098, 4
      %v1100 = vrot.slane %v510, 5
      %v1101 = vsel %vm1073, %v1099, %v1100
      %v1102 = vrot.slane %v511, 5
      %v1103 = vrot.slane %v1102, 4
      %v1104 = vrot.slane %v512, 5
      %v1105 = vsel %vm1073, %v1103, %v1104
      %s1106 = scalar_lea.vmem %s3, 20
      %v1107 = vld [vmem:[%s1106] sm:$0xf]
      %v1108 = vunpack.c.l.b16 %v1077
      %v1109 = vunpack.c.l.b16 %v1081
      %v1110 = vunpack.c.l.b16 %v1085
      %v1111 = vunpack.c.l.b16 %v1089
      %v1112 = vunpack.c.l.b16 %v1093
      %v1113 = vunpack.c.l.b16 %v1097
      %v1114 = vunpack.c.l.b16 %v1101
      %v1115 = vunpack.c.l.b16 %v1105
      %v1116 = vpack.c.b16 %v1109, %v1108
      %v1117 = vpack.c.b16 %v1111, %v1110
      %v1118 = vpack.c.b16 %v1113, %v1112
      %v1119 = vpack.c.b16 %v1115, %v1114
      %v1121 = vsel %vm642, %v1116, 0
      %v1124 = vsel %vm642, %v1117, 0
      %v1127 = vsel %vm642, %v1118, 0
      %v1130 = vsel %vm642, %v1119, 0
      %v1133 = vsel %vm655, %v1107, 0
      %1135 = vmatprep.subr.bf16.mxu0 0
      %1136 = vmatpush1.bf16.msra.mxu0 %v1133
      %1137 = vmatprep.subr.bf16.mxu0 0
      %1138 = vmatpush1.bf16.msra.mxu0 0
      %1139 = vmatprep.subr.bf16.mxu0 0
      %1140 = vmatpush1.bf16.msra.mxu0 0
      %1141 = vmatprep.subr.bf16.mxu0 0
      %1142 = vmatpush1.bf16.msra.mxu0 0
      %1143 = vmatprep.subr.bf16.mxu0 0
      %1144 = vmatpush1.bf16.msra.mxu0 0
      %1145 = vmatprep.subr.bf16.mxu0 0
      %1146 = vmatpush1.bf16.msra.mxu0 0
      %1147 = vmatprep.subr.bf16.mxu0 0
      %1148 = vmatpush1.bf16.msra.mxu0 0
      %1149 = vmatprep.subr.bf16.mxu0 0
      %1150 = vmatpush1.bf16.msra.mxu0 0
      %1151 = vmatprep.subr.bf16.mxu0 0
      %1152 = vmatpush1.bf16.msra.mxu0 0
      %1153 = vmatprep.subr.bf16.mxu0 0
      %1154 = vmatpush1.bf16.msra.mxu0 0
      %1155 = vmatprep.subr.bf16.mxu0 0
      %1156 = vmatpush1.bf16.msra.mxu0 0
      %1157 = vmatprep.subr.bf16.mxu0 0
      %1158 = vmatpush1.bf16.msra.mxu0 0
      %1159 = vmatprep.subr.bf16.mxu0 0
      %1160 = vmatpush1.bf16.msra.mxu0 0
      %1161 = vmatprep.subr.bf16.mxu0 0
      %1162 = vmatpush1.bf16.msra.mxu0 0
      %1163 = vmatprep.subr.bf16.mxu0 0
      %1164 = vmatpush1.bf16.msra.mxu0 0
      %1165 = vmatprep.subr.bf16.mxu0 0
      %1166 = vmatpush1.bf16.msra.mxu0 0
      %1167 = vmatprep.mubr.bf16.mxu0 0
      %1168 = vmatmul.mubr.bf16.gmra.mrb[0].mxu0 %v1121
      %v1169 = vpop.f32.mrb[0].mxu0
      %v1170 = vadd.f32 0.0, %v1169
      %v1171 = vpop.f32.mrb[0].mxu0
      %v1172 = vpop.f32.mrb[0].mxu0
      %v1173 = vadd.f32 0.0, %v1172
      %v1174 = vpop.f32.mrb[0].mxu0
      %1175 = vmatprep.mubr.bf16.mxu0 0
      %1176 = vmatmul.mubr.bf16.gmra.mrb[0].mxu0 %v1124
      %v1177 = vpop.f32.mrb[0].mxu0
      %v1178 = vadd.f32 0.0, %v1177
      %v1179 = vpop.f32.mrb[0].mxu0
      %v1180 = vpop.f32.mrb[0].mxu0
      %v1181 = vadd.f32 0.0, %v1180
      %v1182 = vpop.f32.mrb[0].mxu0
      %1183 = vmatprep.mubr.bf16.mxu0 0
      %1184 = vmatmul.mubr.bf16.gmra.mrb[0].mxu0 %v1127
      %v1185 = vpop.f32.mrb[0].mxu0
      %v1186 = vadd.f32 0.0, %v1185
      %v1187 = vpop.f32.mrb[0].mxu0
      %v1188 = vpop.f32.mrb[0].mxu0
      %v1189 = vadd.f32 0.0, %v1188
      %v1190 = vpop.f32.mrb[0].mxu0
      %1191 = vmatprep.mubr.bf16.mxu0 0
      %1192 = vmatmul.mubr.bf16.gmra.mrb[0].mxu0 %v1130
      %v1193 = vpop.f32.mrb[0].mxu0
      %v1194 = vadd.f32 0.0, %v1193
      %v1195 = vpop.f32.mrb[0].mxu0
      %v1196 = vpop.f32.mrb[0].mxu0
      %v1197 = vadd.f32 0.0, %v1196
      %v1198 = vpop.f32.mrb[0].mxu0
      %1199 = vdwg.mxu0
      %v1201 = vsel %vm655, %v1070, 0
      %1203 = vmatprep.subr.bf16.mxu0 0
      %1204 = vmatpush1.bf16.msra.mxu0 %v1201
      %1205 = vmatprep.subr.bf16.mxu0 0
      %1206 = vmatpush1.bf16.msra.mxu0 0
      %1207 = vmatprep.subr.bf16.mxu0 0
      %1208 = vmatpush1.bf16.msra.mxu0 0
      %1209 = vmatprep.subr.bf16.mxu0 0
      %1210 = vmatpush1.bf16.msra.mxu0 0
      %1211 = vmatprep.subr.bf16.mxu0 0
      %1212 = vmatpush1.bf16.msra.mxu0 0
      %1213 = vmatprep.subr.bf16.mxu0 0
      %1214 = vmatpush1.bf16.msra.mxu0 0
      %1215 = vmatprep.subr.bf16.mxu0 0
      %1216 = vmatpush1.bf16.msra.mxu0 0
      %1217 = vmatprep.subr.bf16.mxu0 0
      %1218 = vmatpush1.bf16.msra.mxu0 0
      %1219 = vmatprep.subr.bf16.mxu0 0
      %1220 = vmatpush1.bf16.msra.mxu0 0
      %1221 = vmatprep.subr.bf16.mxu0 0
      %1222 = vmatpush1.bf16.msra.mxu0 0
      %1223 = vmatprep.subr.bf16.mxu0 0
      %1224 = vmatpush1.bf16.msra.mxu0 0
      %1225 = vmatprep.subr.bf16.mxu0 0
      %1226 = vmatpush1.bf16.msra.mxu0 0
      %1227 = vmatprep.subr.bf16.mxu0 0
      %1228 = vmatpush1.bf16.msra.mxu0 0
      %1229 = vmatprep.subr.bf16.mxu0 0
      %1230 = vmatpush1.bf16.msra.mxu0 0
      %1231 = vmatprep.subr.bf16.mxu0 0
      %1232 = vmatpush1.bf16.msra.mxu0 0
      %1233 = vmatprep.subr.bf16.mxu0 0
      %1234 = vmatpush1.bf16.msra.mxu0 0
      %1235 = vmatprep.mubr.bf16.mxu0 0
      %1236 = vmatmul.mubr.bf16.gmra.mrb[0].mxu0 %v644
      %v1237 = vpop.f32.mrb[0].mxu0
      %v1238 = vadd.f32 %v1170, %v1237
      %v1239 = vpop.f32.mrb[0].mxu0
      %v1240 = vpop.f32.mrb[0].mxu0
      %v1241 = vadd.f32 %v1173, %v1240
      %v1242 = vpop.f32.mrb[0].mxu0
      %1243 = vmatprep.mubr.bf16.mxu0 0
      %1244 = vmatmul.mubr.bf16.gmra.mrb[0].mxu0 %v647
      %v1245 = vpop.f32.mrb[0].mxu0
      %v1246 = vadd.f32 %v1178, %v1245
      %v1247 = vpop.f32.mrb[0].mxu0
      %v1248 = vpop.f32.mrb[0].mxu0
      %v1249 = vadd.f32 %v1181, %v1248
      %v1250 = vpop.f32.mrb[0].mxu0
      %1251 = vmatprep.mubr.bf16.mxu0 0
      %1252 = vmatmul.mubr.bf16.gmra.mrb[0].mxu0 %v650
      %v1253 = vpop.f32.mrb[0].mxu0
      %v1254 = vadd.f32 %v1186, %v1253
      %v1255 = vpop.f32.mrb[0].mxu0
      %v1256 = vpop.f32.mrb[0].mxu0
      %v1257 = vadd.f32 %v1189, %v1256
      %v1258 = vpop.f32.mrb[0].mxu0
      %1259 = vmatprep.mubr.bf16.mxu0 0
      %1260 = vmatmul.mubr.bf16.gmra.mrb[0].mxu0 %v653
      %v1261 = vpop.f32.mrb[0].mxu0
      %v1262 = vadd.f32 %v1194, %v1261
      %v1263 = vpop.f32.mrb[0].mxu0
      %v1264 = vpop.f32.mrb[0].mxu0
      %v1265 = vadd.f32 %v1197, %v1264
      %v1266 = vpop.f32.mrb[0].mxu0
      %1267 = vdwg.mxu0
      %s1268 = scalar_lea.vmem %s3, 24
      %v1269 = vld [vmem:[%s1268] sm:$0xf]
      %v1271 = vsel %vm655, %v1269, 0
      %1273 = vmatprep.subr.bf16.mxu0 0
      %1274 = vmatpush1.bf16.msra.mxu0 %v1271
      %1275 = vmatprep.subr.bf16.mxu0 0
      %1276 = vmatpush1.bf16.msra.mxu0 0
      %1277 = vmatprep.subr.bf16.mxu0 0
      %1278 = vmatpush1.bf16.msra.mxu0 0
      %1279 = vmatprep.subr.bf16.mxu0 0
      %1280 = vmatpush1.bf16.msra.mxu0 0
      %1281 = vmatprep.subr.bf16.mxu0 0
      %1282 = vmatpush1.bf16.msra.mxu0 0
      %1283 = vmatprep.subr.bf16.mxu0 0
      %1284 = vmatpush1.bf16.msra.mxu0 0
      %1285 = vmatprep.subr.bf16.mxu0 0
      %1286 = vmatpush1.bf16.msra.mxu0 0
      %1287 = vmatprep.subr.bf16.mxu0 0
      %1288 = vmatpush1.bf16.msra.mxu0 0
      %1289 = vmatprep.subr.bf16.mxu0 0
      %1290 = vmatpush1.bf16.msra.mxu0 0
      %1291 = vmatprep.subr.bf16.mxu0 0
      %1292 = vmatpush1.bf16.msra.mxu0 0
      %1293 = vmatprep.subr.bf16.mxu0 0
      %1294 = vmatpush1.bf16.msra.mxu0 0
      %1295 = vmatprep.subr.bf16.mxu0 0
      %1296 = vmatpush1.bf16.msra.mxu0 0
      %1297 = vmatprep.subr.bf16.mxu0 0
      %1298 = vmatpush1.bf16.msra.mxu0 0
      %1299 = vmatprep.subr.bf16.mxu0 0
      %1300 = vmatpush1.bf16.msra.mxu0 0
      %1301 = vmatprep.subr.bf16.mxu0 0
      %1302 = vmatpush1.bf16.msra.mxu0 0
      %1303 = vmatprep.subr.bf16.mxu0 0
      %1304 = vmatpush1.bf16.msra.mxu0 0
      %1305 = vmatprep.mubr.bf16.mxu0 0
      %1306 = vmatmul.mubr.bf16.gmra.mrb[0].mxu0 %v929
      %v1307 = vpop.f32.mrb[0].mxu0
      %v1308 = vadd.f32 0.0, %v1307
      %v1309 = vpop.f32.mrb[0].mxu0
      %v1310 = vpop.f32.mrb[0].mxu0
      %v1311 = vadd.f32 0.0, %v1310
      %v1312 = vpop.f32.mrb[0].mxu0
      %1313 = vmatprep.mubr.bf16.mxu0 0
      %1314 = vmatmul.mubr.bf16.gmra.mrb[0].mxu0 %v932
      %v1315 = vpop.f32.mrb[0].mxu0
      %v1316 = vadd.f32 0.0, %v1315
      %v1317 = vpop.f32.mrb[0].mxu0
      %v1318 = vpop.f32.mrb[0].mxu0
      %v1319 = vadd.f32 0.0, %v1318
      %v1320 = vpop.f32.mrb[0].mxu0
      %1321 = vmatprep.mubr.bf16.mxu0 0
      %1322 = vmatmul.mubr.bf16.gmra.mrb[0].mxu0 %v935
      %v1323 = vpop.f32.mrb[0].mxu0
      %v1324 = vadd.f32 0.0, %v1323
      %v1325 = vpop.f32.mrb[0].mxu0
      %v1326 = vpop.f32.mrb[0].mxu0
      %v1327 = vadd.f32 0.0, %v1326
      %v1328 = vpop.f32.mrb[0].mxu0
      %1329 = vmatprep.mubr.bf16.mxu0 0
      %1330 = vmatmul.mubr.bf16.gmra.mrb[0].mxu0 %v938
      %v1331 = vpop.f32.mrb[0].mxu0
      %v1332 = vadd.f32 0.0, %v1331
      %v1333 = vpop.f32.mrb[0].mxu0
      %v1334 = vpop.f32.mrb[0].mxu0
      %v1335 = vadd.f32 0.0, %v1334
      %v1336 = vpop.f32.mrb[0].mxu0
      %1337 = vdwg.mxu0
      %v1338 = vadd.f32 %v1238, %v1308
      %v1339 = vadd.f32 %v1241, %v1311
      %v1340 = vadd.f32 %v1246, %v1316
      %v1341 = vadd.f32 %v1249, %v1319
      %v1342 = vadd.f32 %v1254, %v1324
      %v1343 = vadd.f32 %v1257, %v1327
      %v1344 = vadd.f32 %v1262, %v1332
      %v1345 = vadd.f32 %v1265, %v1335
      %v1346 = vrot.slane %v905, 5
      %v1347 = vrot.slane %v1346, 4
      %v1348 = vrot.slane %v906, 5
      %v1349 = vsel %vm1073, %v1347, %v1348
      %s1350 = scalar_lea.vmem %s3, 28
      %v1351 = vld [vmem:[%s1350] sm:$0xf]
      %v1352 = vunpack.c.l.b16 %v1349
      %v1353 = vpack.c.b16 %v1110, %v1109
      %v1354 = vpack.c.b16 %v1112, %v1111
      %v1355 = vpack.c.b16 %v1114, %v1113
      %v1356 = vpack.c.b16 %v1352, %v1115
      %v1358 = vsel %vm642, %v1353, 0
      %v1361 = vsel %vm642, %v1354, 0
      %v1364 = vsel %vm642, %v1355, 0
      %v1367 = vsel %vm642, %v1356, 0
      %v1370 = vsel %vm655, %v1351, 0
      %1372 = vmatprep.subr.bf16.mxu0 0
      %1373 = vmatpush1.bf16.msra.mxu0 %v1370
      %1374 = vmatprep.subr.bf16.mxu0 0
      %1375 = vmatpush1.bf16.msra.mxu0 0
      %1376 = vmatprep.subr.bf16.mxu0 0
      %1377 = vmatpush1.bf16.msra.mxu0 0
      %1378 = vmatprep.subr.bf16.mxu0 0
      %1379 = vmatpush1.bf16.msra.mxu0 0
      %1380 = vmatprep.subr.bf16.mxu0 0
      %1381 = vmatpush1.bf16.msra.mxu0 0
      %1382 = vmatprep.subr.bf16.mxu0 0
      %1383 = vmatpush1.bf16.msra.mxu0 0
      %1384 = vmatprep.subr.bf16.mxu0 0
      %1385 = vmatpush1.bf16.msra.mxu0 0
      %1386 = vmatprep.subr.bf16.mxu0 0
      %1387 = vmatpush1.bf16.msra.mxu0 0
      %1388 = vmatprep.subr.bf16.mxu0 0
      %1389 = vmatpush1.bf16.msra.mxu0 0
      %1390 = vmatprep.subr.bf16.mxu0 0
      %1391 = vmatpush1.bf16.msra.mxu0 0
      %1392 = vmatprep.subr.bf16.mxu0 0
      %1393 = vmatpush1.bf16.msra.mxu0 0
      %1394 = vmatprep.subr.bf16.mxu0 0
      %1395 = vmatpush1.bf16.msra.mxu0 0
      %1396 = vmatprep.subr.bf16.mxu0 0
      %1397 = vmatpush1.bf16.msra.mxu0 0
      %1398 = vmatprep.subr.bf16.mxu0 0
      %1399 = vmatpush1.bf16.msra.mxu0 0
      %1400 = vmatprep.subr.bf16.mxu0 0
      %1401 = vmatpush1.bf16.msra.mxu0 0
      %1402 = vmatprep.subr.bf16.mxu0 0
      %1403 = vmatpush1.bf16.msra.mxu0 0
      %1404 = vmatprep.mubr.bf16.mxu0 0
      %1405 = vmatmul.mubr.bf16.gmra.mrb[0].mxu0 %v1358
      %v1406 = vpop.f32.mrb[0].mxu0
      %v1407 = vadd.f32 0.0, %v1406
      %v1408 = vpop.f32.mrb[0].mxu0
      %v1409 = vpop.f32.mrb[0].mxu0
      %v1410 = vadd.f32 0.0, %v1409
      %v1411 = vpop.f32.mrb[0].mxu0
      %1412 = vmatprep.mubr.bf16.mxu0 0
      %1413 = vmatmul.mubr.bf16.gmra.mrb[0].mxu0 %v1361
      %v1414 = vpop.f32.mrb[0].mxu0
      %v1415 = vadd.f32 0.0, %v1414
      %v1416 = vpop.f32.mrb[0].mxu0
      %v1417 = vpop.f32.mrb[0].mxu0
      %v1418 = vadd.f32 0.0, %v1417
      %v1419 = vpop.f32.mrb[0].mxu0
      %1420 = vmatprep.mubr.bf16.mxu0 0
      %1421 = vmatmul.mubr.bf16.gmra.mrb[0].mxu0 %v1364
      %v1422 = vpop.f32.mrb[0].mxu0
      %v1423 = vadd.f32 0.0, %v1422
      %v1424 = vpop.f32.mrb[0].mxu0
      %v1425 = vpop.f32.mrb[0].mxu0
      %v1426 = vadd.f32 0.0, %v1425
      %v1427 = vpop.f32.mrb[0].mxu0
      %1428 = vmatprep.mubr.bf16.mxu0 0
      %1429 = vmatmul.mubr.bf16.gmra.mrb[0].mxu0 %v1367
      %v1430 = vpop.f32.mrb[0].mxu0
      %v1431 = vadd.f32 0.0, %v1430
      %v1432 = vpop.f32.mrb[0].mxu0
      %v1433 = vpop.f32.mrb[0].mxu0
      %v1434 = vadd.f32 0.0, %v1433
      %v1435 = vpop.f32.mrb[0].mxu0
      %1436 = vdwg.mxu0
      %v1437 = vadd.f32 %v1338, %v1407
      %v1438 = vadd.f32 %v1339, %v1410
      %v1439 = vadd.f32 %v1340, %v1415
      %v1440 = vadd.f32 %v1341, %v1418
      %v1441 = vadd.f32 %v1342, %v1423
      %v1442 = vadd.f32 %v1343, %v1426
      %v1443 = vadd.f32 %v1344, %v1431
      %v1444 = vadd.f32 %v1345, %v1434
      %v1445 = vsel %vm1016, %v1437, 0.0
      %v1446 = vsel %vm1016, %v1438, 0.0
      %v1447 = vadd.f32 %v1445, %v1446
      %v1448 = vsel %vm1016, %v1439, 0.0
      %v1449 = vadd.f32 %v1447, %v1448
      %v1450 = vsel %vm1016, %v1440, 0.0
      %v1451 = vadd.f32 %v1449, %v1450
      %v1452 = vsel %vm1016, %v1441, 0.0
      %v1453 = vadd.f32 %v1451, %v1452
      %v1454 = vsel %vm1016, %v1442, 0.0
      %v1455 = vadd.f32 %v1453, %v1454
      %v1456 = vsel %vm1016, %v1443, 0.0
      %v1457 = vadd.f32 %v1455, %v1456
      %v1458 = vsel %vm1016, %v1444, 0.0
      %v1459 = vadd.f32 %v1457, %v1458
      %v1460 = vrot.slane %v1459, 4
      %v1461 = vadd.f32 %v1459, %v1460
      %v1462 = vrot.slane %v1461, 2
      %v1463 = vadd.f32 %v1461, %v1462
      %v1464 = vrot.slane %v1463, 1
      %v1465 = vadd.f32 %v1463, %v1464
      %v1466 = vadd.f32 %v1038, %v1465
      %v1467 = vmul.f32 %v1437, %v1437
      %v1468 = vmul.f32 %v1438, %v1438
      %v1469 = vmul.f32 %v1439, %v1439
      %v1470 = vmul.f32 %v1440, %v1440
      %v1471 = vmul.f32 %v1441, %v1441
      %v1472 = vmul.f32 %v1442, %v1442
      %v1473 = vmul.f32 %v1443, %v1443
      %v1474 = vmul.f32 %v1444, %v1444
      %v1475 = vsel %vm1016, %v1467, 0.0
      %v1476 = vsel %vm1016, %v1468, 0.0
      %v1477 = vadd.f32 %v1475, %v1476
      %v1478 = vsel %vm1016, %v1469, 0.0
      %v1479 = vadd.f32 %v1477, %v1478
      %v1480 = vsel %vm1016, %v1470, 0.0
      %v1481 = vadd.f32 %v1479, %v1480
      %v1482 = vsel %vm1016, %v1471, 0.0
      %v1483 = vadd.f32 %v1481, %v1482
      %v1484 = vsel %vm1016, %v1472, 0.0
      %v1485 = vadd.f32 %v1483, %v1484
      %v1486 = vsel %vm1016, %v1473, 0.0
      %v1487 = vadd.f32 %v1485, %v1486
      %v1488 = vsel %vm1016, %v1474, 0.0
      %v1489 = vadd.f32 %v1487, %v1488
      %v1490 = vrot.slane %v1489, 4
      %v1491 = vadd.f32 %v1489, %v1490
      %v1492 = vrot.slane %v1491, 2
      %v1493 = vadd.f32 %v1491, %v1492
      %v1494 = vrot.slane %v1493, 1
      %v1495 = vadd.f32 %v1493, %v1494
      %v1496 = vadd.f32 %v1068, %v1495
      %s1497 = scalar_lea.vmem %s3, 32
      %v1498 = vld [vmem:[%s1497] sm:$0xf]
      %s1499 = scalar_lea.vmem %s3, 36
      %v1500 = vld [vmem:[%s1499] sm:$0xf]
      %v1502 = vsel %vm655, %v1500, 0
      %1504 = vmatprep.subr.bf16.mxu0 0
      %1505 = vmatpush1.bf16.msra.mxu0 %v1502
      %1506 = vmatprep.subr.bf16.mxu0 0
      %1507 = vmatpush1.bf16.msra.mxu0 0
      %1508 = vmatprep.subr.bf16.mxu0 0
      %1509 = vmatpush1.bf16.msra.mxu0 0
      %1510 = vmatprep.subr.bf16.mxu0 0
      %1511 = vmatpush1.bf16.msra.mxu0 0
      %1512 = vmatprep.subr.bf16.mxu0 0
      %1513 = vmatpush1.bf16.msra.mxu0 0
      %1514 = vmatprep.subr.bf16.mxu0 0
      %1515 = vmatpush1.bf16.msra.mxu0 0
      %1516 = vmatprep.subr.bf16.mxu0 0
      %1517 = vmatpush1.bf16.msra.mxu0 0
      %1518 = vmatprep.subr.bf16.mxu0 0
      %1519 = vmatpush1.bf16.msra.mxu0 0
      %1520 = vmatprep.subr.bf16.mxu0 0
      %1521 = vmatpush1.bf16.msra.mxu0 0
      %1522 = vmatprep.subr.bf16.mxu0 0
      %1523 = vmatpush1.bf16.msra.mxu0 0
      %1524 = vmatprep.subr.bf16.mxu0 0
      %1525 = vmatpush1.bf16.msra.mxu0 0
      %1526 = vmatprep.subr.bf16.mxu0 0
      %1527 = vmatpush1.bf16.msra.mxu0 0
      %1528 = vmatprep.subr.bf16.mxu0 0
      %1529 = vmatpush1.bf16.msra.mxu0 0
      %1530 = vmatprep.subr.bf16.mxu0 0
      %1531 = vmatpush1.bf16.msra.mxu0 0
      %1532 = vmatprep.subr.bf16.mxu0 0
      %1533 = vmatpush1.bf16.msra.mxu0 0
      %1534 = vmatprep.subr.bf16.mxu0 0
      %1535 = vmatpush1.bf16.msra.mxu0 0
      %1536 = vmatprep.mubr.bf16.mxu0 0
      %1537 = vmatmul.mubr.bf16.gmra.mrb[0].mxu0 %v929
      %v1538 = vpop.f32.mrb[0].mxu0
      %v1539 = vadd.f32 0.0, %v1538
      %v1540 = vpop.f32.mrb[0].mxu0
      %v1541 = vpop.f32.mrb[0].mxu0
      %v1542 = vadd.f32 0.0, %v1541
      %v1543 = vpop.f32.mrb[0].mxu0
      %1544 = vmatprep.mubr.bf16.mxu0 0
      %1545 = vmatmul.mubr.bf16.gmra.mrb[0].mxu0 %v932
      %v1546 = vpop.f32.mrb[0].mxu0
      %v1547 = vadd.f32 0.0, %v1546
      %v1548 = vpop.f32.mrb[0].mxu0
      %v1549 = vpop.f32.mrb[0].mxu0
      %v1550 = vadd.f32 0.0, %v1549
      %v1551 = vpop.f32.mrb[0].mxu0
      %1552 = vmatprep.mubr.bf16.mxu0 0
      %1553 = vmatmul.mubr.bf16.gmra.mrb[0].mxu0 %v935
      %v1554 = vpop.f32.mrb[0].mxu0
      %v1555 = vadd.f32 0.0, %v1554
      %v1556 = vpop.f32.mrb[0].mxu0
      %v1557 = vpop.f32.mrb[0].mxu0
      %v1558 = vadd.f32 0.0, %v1557
      %v1559 = vpop.f32.mrb[0].mxu0
      %1560 = vmatprep.mubr.bf16.mxu0 0
      %1561 = vmatmul.mubr.bf16.gmra.mrb[0].mxu0 %v938
      %v1562 = vpop.f32.mrb[0].mxu0
      %v1563 = vadd.f32 0.0, %v1562
      %v1564 = vpop.f32.mrb[0].mxu0
      %v1565 = vpop.f32.mrb[0].mxu0
      %v1566 = vadd.f32 0.0, %v1565
      %v1567 = vpop.f32.mrb[0].mxu0
      %1568 = vdwg.mxu0
      %v1570 = vsel %vm655, %v1498, 0
      %1572 = vmatprep.subr.bf16.mxu0 0
      %1573 = vmatpush1.bf16.msra.mxu0 %v1570
      %1574 = vmatprep.subr.bf16.mxu0 0
      %1575 = vmatpush1.bf16.msra.mxu0 0
      %1576 = vmatprep.subr.bf16.mxu0 0
      %1577 = vmatpush1.bf16.msra.mxu0 0
      %1578 = vmatprep.subr.bf16.mxu0 0
      %1579 = vmatpush1.bf16.msra.mxu0 0
      %1580 = vmatprep.subr.bf16.mxu0 0
      %1581 = vmatpush1.bf16.msra.mxu0 0
      %1582 = vmatprep.subr.bf16.mxu0 0
      %1583 = vmatpush1.bf16.msra.mxu0 0
      %1584 = vmatprep.subr.bf16.mxu0 0
      %1585 = vmatpush1.bf16.msra.mxu0 0
      %1586 = vmatprep.subr.bf16.mxu0 0
      %1587 = vmatpush1.bf16.msra.mxu0 0
      %1588 = vmatprep.subr.bf16.mxu0 0
      %1589 = vmatpush1.bf16.msra.mxu0 0
      %1590 = vmatprep.subr.bf16.mxu0 0
      %1591 = vmatpush1.bf16.msra.mxu0 0
      %1592 = vmatprep.subr.bf16.mxu0 0
      %1593 = vmatpush1.bf16.msra.mxu0 0
      %1594 = vmatprep.subr.bf16.mxu0 0
      %1595 = vmatpush1.bf16.msra.mxu0 0
      %1596 = vmatprep.subr.bf16.mxu0 0
      %1597 = vmatpush1.bf16.msra.mxu0 0
      %1598 = vmatprep.subr.bf16.mxu0 0
      %1599 = vmatpush1.bf16.msra.mxu0 0
      %1600 = vmatprep.subr.bf16.mxu0 0
      %1601 = vmatpush1.bf16.msra.mxu0 0
      %1602 = vmatprep.subr.bf16.mxu0 0
      %1603 = vmatpush1.bf16.msra.mxu0 0
      %1604 = vmatprep.mubr.bf16.mxu0 0
      %1605 = vmatmul.mubr.bf16.gmra.mrb[0].mxu0 %v817
      %v1606 = vpop.f32.mrb[0].mxu0
      %v1607 = vadd.f32 %v1539, %v1606
      %v1608 = vpop.f32.mrb[0].mxu0
      %v1609 = vpop.f32.mrb[0].mxu0
      %v1610 = vadd.f32 %v1542, %v1609
      %v1611 = vpop.f32.mrb[0].mxu0
      %1612 = vmatprep.mubr.bf16.mxu0 0
      %1613 = vmatmul.mubr.bf16.gmra.mrb[0].mxu0 %v820
      %v1614 = vpop.f32.mrb[0].mxu0
      %v1615 = vadd.f32 %v1547, %v1614
      %v1616 = vpop.f32.mrb[0].mxu0
      %v1617 = vpop.f32.mrb[0].mxu0
      %v1618 = vadd.f32 %v1550, %v1617
      %v1619 = vpop.f32.mrb[0].mxu0
      %1620 = vmatprep.mubr.bf16.mxu0 0
      %1621 = vmatmul.mubr.bf16.gmra.mrb[0].mxu0 %v823
      %v1622 = vpop.f32.mrb[0].mxu0
      %v1623 = vadd.f32 %v1555, %v1622
      %v1624 = vpop.f32.mrb[0].mxu0
      %v1625 = vpop.f32.mrb[0].mxu0
      %v1626 = vadd.f32 %v1558, %v1625
      %v1627 = vpop.f32.mrb[0].mxu0
      %1628 = vmatprep.mubr.bf16.mxu0 0
      %1629 = vmatmul.mubr.bf16.gmra.mrb[0].mxu0 %v826
      %v1630 = vpop.f32.mrb[0].mxu0
      %v1631 = vadd.f32 %v1563, %v1630
      %v1632 = vpop.f32.mrb[0].mxu0
      %v1633 = vpop.f32.mrb[0].mxu0
      %v1634 = vadd.f32 %v1566, %v1633
      %v1635 = vpop.f32.mrb[0].mxu0
      %1636 = vdwg.mxu0
      %s1637 = scalar_lea.vmem %s3, 40
      %v1638 = vld [vmem:[%s1637] sm:$0xf]
      %v1640 = vunpack.c.l.b16 %v471
      %v1641 = vpack.c.b16 %v1640, %v811
      %v1643 = vsel %vm642, %v1641, 0
      %v1646 = vsel %vm655, %v1638, 0
      %1648 = vmatprep.subr.bf16.mxu0 0
      %1649 = vmatpush1.bf16.msra.mxu0 %v1646
      %1650 = vmatprep.subr.bf16.mxu0 0
      %1651 = vmatpush1.bf16.msra.mxu0 0
      %1652 = vmatprep.subr.bf16.mxu0 0
      %1653 = vmatpush1.bf16.msra.mxu0 0
      %1654 = vmatprep.subr.bf16.mxu0 0
      %1655 = vmatpush1.bf16.msra.mxu0 0
      %1656 = vmatprep.subr.bf16.mxu0 0
      %1657 = vmatpush1.bf16.msra.mxu0 0
      %1658 = vmatprep.subr.bf16.mxu0 0
      %1659 = vmatpush1.bf16.msra.mxu0 0
      %1660 = vmatprep.subr.bf16.mxu0 0
      %1661 = vmatpush1.bf16.msra.mxu0 0
      %1662 = vmatprep.subr.bf16.mxu0 0
      %1663 = vmatpush1.bf16.msra.mxu0 0
      %1664 = vmatprep.subr.bf16.mxu0 0
      %1665 = vmatpush1.bf16.msra.mxu0 0
      %1666 = vmatprep.subr.bf16.mxu0 0
      %1667 = vmatpush1.bf16.msra.mxu0 0
      %1668 = vmatprep.subr.bf16.mxu0 0
      %1669 = vmatpush1.bf16.msra.mxu0 0
      %1670 = vmatprep.subr.bf16.mxu0 0
      %1671 = vmatpush1.bf16.msra.mxu0 0
      %1672 = vmatprep.subr.bf16.mxu0 0
      %1673 = vmatpush1.bf16.msra.mxu0 0
      %1674 = vmatprep.subr.bf16.mxu0 0
      %1675 = vmatpush1.bf16.msra.mxu0 0
      %1676 = vmatprep.subr.bf16.mxu0 0
      %1677 = vmatpush1.bf16.msra.mxu0 0
      %1678 = vmatprep.subr.bf16.mxu0 0
      %1679 = vmatpush1.bf16.msra.mxu0 0
      %1680 = vmatprep.mubr.bf16.mxu0 0
      %1681 = vmatmul.mubr.bf16.gmra.mrb[0].mxu0 %v732
      %v1682 = vpop.f32.mrb[0].mxu0
      %v1683 = vadd.f32 0.0, %v1682
      %v1684 = vpop.f32.mrb[0].mxu0
      %v1685 = vpop.f32.mrb[0].mxu0
      %v1686 = vadd.f32 0.0, %v1685
      %v1687 = vpop.f32.mrb[0].mxu0
      %1688 = vmatprep.mubr.bf16.mxu0 0
      %1689 = vmatmul.mubr.bf16.gmra.mrb[0].mxu0 %v735
      %v1690 = vpop.f32.mrb[0].mxu0
      %v1691 = vadd.f32 0.0, %v1690
      %v1692 = vpop.f32.mrb[0].mxu0
      %v1693 = vpop.f32.mrb[0].mxu0
      %v1694 = vadd.f32 0.0, %v1693
      %v1695 = vpop.f32.mrb[0].mxu0
      %1696 = vmatprep.mubr.bf16.mxu0 0
      %1697 = vmatmul.mubr.bf16.gmra.mrb[0].mxu0 %v738
      %v1698 = vpop.f32.mrb[0].mxu0
      %v1699 = vadd.f32 0.0, %v1698
      %v1700 = vpop.f32.mrb[0].mxu0
      %v1701 = vpop.f32.mrb[0].mxu0
      %v1702 = vadd.f32 0.0, %v1701
      %v1703 = vpop.f32.mrb[0].mxu0
      %1704 = vmatprep.mubr.bf16.mxu0 0
      %1705 = vmatmul.mubr.bf16.gmra.mrb[0].mxu0 %v1643
      %v1706 = vpop.f32.mrb[0].mxu0
      %v1707 = vadd.f32 0.0, %v1706
      %v1708 = vpop.f32.mrb[0].mxu0
      %v1709 = vpop.f32.mrb[0].mxu0
      %v1710 = vadd.f32 0.0, %v1709
      %v1711 = vpop.f32.mrb[0].mxu0
      %1712 = vdwg.mxu0
      %v1713 = vadd.f32 %v1607, %v1683
      %v1714 = vadd.f32 %v1610, %v1686
      %v1715 = vadd.f32 %v1615, %v1691
      %v1716 = vadd.f32 %v1618, %v1694
      %v1717 = vadd.f32 %v1623, %v1699
      %v1718 = vadd.f32 %v1626, %v1702
      %v1719 = vadd.f32 %v1631, %v1707
      %v1720 = vadd.f32 %v1634, %v1710
      %v1721 = vunpack.c.h.b16 %v471
      %v1722 = vpack.c.b16 %v1640, %v1640
      %v1723 = vpack.c.b16 %v1721, %v1721
      %v1725 = vshrl.u32 %v1722, 16
      %v1727 = vrot.slane %v1725, 4
      %v1728 = vshll.u32 %v1722, 16
      %v1730 = vrot.slane %v1728, 5
      %v1731 = vor.u32 %v1727, %v1730
      %v1732 = vrot.slane %v1731, 4
      %v1734 = vshll.u32 %v1723, 16
      %v1736 = vrot.slane %v1734, 5
      %v1737 = vsel %vm515, %v1732, %v1736
      %s1738 = scalar_lea.vmem %s3, 44
      %v1739 = vld [vmem:[%s1738] sm:$0xf]
      %v1740 = vunpack.c.l.b16 %v1737
      %v1741 = vpack.c.b16 %v1740, %v923
      %v1743 = vsel %vm642, %v1741, 0
      %v1746 = vsel %vm655, %v1739, 0
      %1748 = vmatprep.subr.bf16.mxu0 0
      %1749 = vmatpush1.bf16.msra.mxu0 %v1746
      %1750 = vmatprep.subr.bf16.mxu0 0
      %1751 = vmatpush1.bf16.msra.mxu0 0
      %1752 = vmatprep.subr.bf16.mxu0 0
      %1753 = vmatpush1.bf16.msra.mxu0 0
      %1754 = vmatprep.subr.bf16.mxu0 0
      %1755 = vmatpush1.bf16.msra.mxu0 0
      %1756 = vmatprep.subr.bf16.mxu0 0
      %1757 = vmatpush1.bf16.msra.mxu0 0
      %1758 = vmatprep.subr.bf16.mxu0 0
      %1759 = vmatpush1.bf16.msra.mxu0 0
      %1760 = vmatprep.subr.bf16.mxu0 0
      %1761 = vmatpush1.bf16.msra.mxu0 0
      %1762 = vmatprep.subr.bf16.mxu0 0
      %1763 = vmatpush1.bf16.msra.mxu0 0
      %1764 = vmatprep.subr.bf16.mxu0 0
      %1765 = vmatpush1.bf16.msra.mxu0 0
      %1766 = vmatprep.subr.bf16.mxu0 0
      %1767 = vmatpush1.bf16.msra.mxu0 0
      %1768 = vmatprep.subr.bf16.mxu0 0
      %1769 = vmatpush1.bf16.msra.mxu0 0
      %1770 = vmatprep.subr.bf16.mxu0 0
      %1771 = vmatpush1.bf16.msra.mxu0 0
      %1772 = vmatprep.subr.bf16.mxu0 0
      %1773 = vmatpush1.bf16.msra.mxu0 0
      %1774 = vmatprep.subr.bf16.mxu0 0
      %1775 = vmatpush1.bf16.msra.mxu0 0
      %1776 = vmatprep.subr.bf16.mxu0 0
      %1777 = vmatpush1.bf16.msra.mxu0 0
      %1778 = vmatprep.subr.bf16.mxu0 0
      %1779 = vmatpush1.bf16.msra.mxu0 0
      %1780 = vmatprep.mubr.bf16.mxu0 0
      %1781 = vmatmul.mubr.bf16.gmra.mrb[0].mxu0 %v647
      %v1782 = vpop.f32.mrb[0].mxu0
      %v1783 = vadd.f32 0.0, %v1782
      %v1784 = vpop.f32.mrb[0].mxu0
      %v1785 = vpop.f32.mrb[0].mxu0
      %v1786 = vadd.f32 0.0, %v1785
      %v1787 = vpop.f32.mrb[0].mxu0
      %1788 = vmatprep.mubr.bf16.mxu0 0
      %1789 = vmatmul.mubr.bf16.gmra.mrb[0].mxu0 %v650
      %v1790 = vpop.f32.mrb[0].mxu0
      %v1791 = vadd.f32 0.0, %v1790
      %v1792 = vpop.f32.mrb[0].mxu0
      %v1793 = vpop.f32.mrb[0].mxu0
      %v1794 = vadd.f32 0.0, %v1793
      %v1795 = vpop.f32.mrb[0].mxu0
      %1796 = vmatprep.mubr.bf16.mxu0 0
      %1797 = vmatmul.mubr.bf16.gmra.mrb[0].mxu0 %v653
      %v1798 = vpop.f32.mrb[0].mxu0
      %v1799 = vadd.f32 0.0, %v1798
      %v1800 = vpop.f32.mrb[0].mxu0
      %v1801 = vpop.f32.mrb[0].mxu0
      %v1802 = vadd.f32 0.0, %v1801
      %v1803 = vpop.f32.mrb[0].mxu0
      %1804 = vmatprep.mubr.bf16.mxu0 0
      %1805 = vmatmul.mubr.bf16.gmra.mrb[0].mxu0 %v1743
      %v1806 = vpop.f32.mrb[0].mxu0
      %v1807 = vadd.f32 0.0, %v1806
      %v1808 = vpop.f32.mrb[0].mxu0
      %v1809 = vpop.f32.mrb[0].mxu0
      %v1810 = vadd.f32 0.0, %v1809
      %v1811 = vpop.f32.mrb[0].mxu0
      %1812 = vdwg.mxu0
      %v1813 = vadd.f32 %v1713, %v1783
      %v1814 = vadd.f32 %v1714, %v1786
      %v1815 = vadd.f32 %v1715, %v1791
      %v1816 = vadd.f32 %v1716, %v1794
      %v1817 = vadd.f32 %v1717, %v1799
      %v1818 = vadd.f32 %v1718, %v1802
      %v1819 = vadd.f32 %v1719, %v1807
      %v1820 = vadd.f32 %v1720, %v1810
      %v1821 = vsel %vm1016, %v1813, 0.0
      %v1822 = vsel %vm1016, %v1814, 0.0
      %v1823 = vadd.f32 %v1821, %v1822
      %v1824 = vsel %vm1016, %v1815, 0.0
      %v1825 = vadd.f32 %v1823, %v1824
      %v1826 = vsel %vm1016, %v1816, 0.0
      %v1827 = vadd.f32 %v1825, %v1826
      %v1828 = vsel %vm1016, %v1817, 0.0
      %v1829 = vadd.f32 %v1827, %v1828
      %v1830 = vsel %vm1016, %v1818, 0.0
      %v1831 = vadd.f32 %v1829, %v1830
      %v1832 = vsel %vm1016, %v1819, 0.0
      %v1833 = vadd.f32 %v1831, %v1832
      %v1834 = vsel %vm1016, %v1820, 0.0
      %v1835 = vadd.f32 %v1833, %v1834
      %v1836 = vrot.slane %v1835, 4
      %v1837 = vadd.f32 %v1835, %v1836
      %v1838 = vrot.slane %v1837, 2
      %v1839 = vadd.f32 %v1837, %v1838
      %v1840 = vrot.slane %v1839, 1
      %v1841 = vadd.f32 %v1839, %v1840
      %v1842 = vadd.f32 %v1466, %v1841
      %v1843 = vmul.f32 %v1813, %v1813
      %v1844 = vmul.f32 %v1814, %v1814
      %v1845 = vmul.f32 %v1815, %v1815
      %v1846 = vmul.f32 %v1816, %v1816
      %v1847 = vmul.f32 %v1817, %v1817
      %v1848 = vmul.f32 %v1818, %v1818
      %v1849 = vmul.f32 %v1819, %v1819
      %v1850 = vmul.f32 %v1820, %v1820
      %v1851 = vsel %vm1016, %v1843, 0.0
      %v1852 = vsel %vm1016, %v1844, 0.0
      %v1853 = vadd.f32 %v1851, %v1852
      %v1854 = vsel %vm1016, %v1845, 0.0
      %v1855 = vadd.f32 %v1853, %v1854
      %v1856 = vsel %vm1016, %v1846, 0.0
      %v1857 = vadd.f32 %v1855, %v1856
      %v1858 = vsel %vm1016, %v1847, 0.0
      %v1859 = vadd.f32 %v1857, %v1858
      %v1860 = vsel %vm1016, %v1848, 0.0
      %v1861 = vadd.f32 %v1859, %v1860
      %v1862 = vsel %vm1016, %v1849, 0.0
      %v1863 = vadd.f32 %v1861, %v1862
      %v1864 = vsel %vm1016, %v1850, 0.0
      %v1865 = vadd.f32 %v1863, %v1864
      %v1866 = vrot.slane %v1865, 4
      %v1867 = vadd.f32 %v1865, %v1866
      %v1868 = vrot.slane %v1867, 2
      %v1869 = vadd.f32 %v1867, %v1868
      %v1870 = vrot.slane %v1869, 1
      %v1871 = vadd.f32 %v1869, %v1870
      %v1872 = vadd.f32 %v1496, %v1871
      %s1873 = scalar_lea.vmem %s3, 48
      %v1874 = vld [vmem:[%s1873] sm:$0xf]
      %s1875 = scalar_lea.vmem %s3, 52
      %v1876 = vld [vmem:[%s1875] sm:$0xf]
      %v1878 = vsel %vm655, %v1876, 0
      %1880 = vmatprep.subr.bf16.mxu0 0
      %1881 = vmatpush1.bf16.msra.mxu0 %v1878
      %1882 = vmatprep.subr.bf16.mxu0 0
      %1883 = vmatpush1.bf16.msra.mxu0 0
      %1884 = vmatprep.subr.bf16.mxu0 0
      %1885 = vmatpush1.bf16.msra.mxu0 0
      %1886 = vmatprep.subr.bf16.mxu0 0
      %1887 = vmatpush1.bf16.msra.mxu0 0
      %1888 = vmatprep.subr.bf16.mxu0 0
      %1889 = vmatpush1.bf16.msra.mxu0 0
      %1890 = vmatprep.subr.bf16.mxu0 0
      %1891 = vmatpush1.bf16.msra.mxu0 0
      %1892 = vmatprep.subr.bf16.mxu0 0
      %1893 = vmatpush1.bf16.msra.mxu0 0
      %1894 = vmatprep.subr.bf16.mxu0 0
      %1895 = vmatpush1.bf16.msra.mxu0 0
      %1896 = vmatprep.subr.bf16.mxu0 0
      %1897 = vmatpush1.bf16.msra.mxu0 0
      %1898 = vmatprep.subr.bf16.mxu0 0
      %1899 = vmatpush1.bf16.msra.mxu0 0
      %1900 = vmatprep.subr.bf16.mxu0 0
      %1901 = vmatpush1.bf16.msra.mxu0 0
      %1902 = vmatprep.subr.bf16.mxu0 0
      %1903 = vmatpush1.bf16.msra.mxu0 0
      %1904 = vmatprep.subr.bf16.mxu0 0
      %1905 = vmatpush1.bf16.msra.mxu0 0
      %1906 = vmatprep.subr.bf16.mxu0 0
      %1907 = vmatpush1.bf16.msra.mxu0 0
      %1908 = vmatprep.subr.bf16.mxu0 0
      %1909 = vmatpush1.bf16.msra.mxu0 0
      %1910 = vmatprep.subr.bf16.mxu0 0
      %1911 = vmatpush1.bf16.msra.mxu0 0
      %1912 = vmatprep.mubr.bf16.mxu0 0
      %1913 = vmatmul.mubr.bf16.gmra.mrb[0].mxu0 %v1358
      %v1914 = vpop.f32.mrb[0].mxu0
      %v1915 = vadd.f32 0.0, %v1914
      %v1916 = vpop.f32.mrb[0].mxu0
      %v1917 = vpop.f32.mrb[0].mxu0
      %v1918 = vadd.f32 0.0, %v1917
      %v1919 = vpop.f32.mrb[0].mxu0
      %1920 = vmatprep.mubr.bf16.mxu0 0
      %1921 = vmatmul.mubr.bf16.gmra.mrb[0].mxu0 %v1361
      %v1922 = vpop.f32.mrb[0].mxu0
      %v1923 = vadd.f32 0.0, %v1922
      %v1924 = vpop.f32.mrb[0].mxu0
      %v1925 = vpop.f32.mrb[0].mxu0
      %v1926 = vadd.f32 0.0, %v1925
      %v1927 = vpop.f32.mrb[0].mxu0
      %1928 = vmatprep.mubr.bf16.mxu0 0
      %1929 = vmatmul.mubr.bf16.gmra.mrb[0].mxu0 %v1364
      %v1930 = vpop.f32.mrb[0].mxu0
      %v1931 = vadd.f32 0.0, %v1930
      %v1932 = vpop.f32.mrb[0].mxu0
      %v1933 = vpop.f32.mrb[0].mxu0
      %v1934 = vadd.f32 0.0, %v1933
      %v1935 = vpop.f32.mrb[0].mxu0
      %1936 = vmatprep.mubr.bf16.mxu0 0
      %1937 = vmatmul.mubr.bf16.gmra.mrb[0].mxu0 %v1367
      %v1938 = vpop.f32.mrb[0].mxu0
      %v1939 = vadd.f32 0.0, %v1938
      %v1940 = vpop.f32.mrb[0].mxu0
      %v1941 = vpop.f32.mrb[0].mxu0
      %v1942 = vadd.f32 0.0, %v1941
      %v1943 = vpop.f32.mrb[0].mxu0
      %1944 = vdwg.mxu0
      %v1946 = vsel %vm655, %v1874, 0
      %1948 = vmatprep.subr.bf16.mxu0 0
      %1949 = vmatpush1.bf16.msra.mxu0 %v1946
      %1950 = vmatprep.subr.bf16.mxu0 0
      %1951 = vmatpush1.bf16.msra.mxu0 0
      %1952 = vmatprep.subr.bf16.mxu0 0
      %1953 = vmatpush1.bf16.msra.mxu0 0
      %1954 = vmatprep.subr.bf16.mxu0 0
      %1955 = vmatpush1.bf16.msra.mxu0 0
      %1956 = vmatprep.subr.bf16.mxu0 0
      %1957 = vmatpush1.bf16.msra.mxu0 0
      %1958 = vmatprep.subr.bf16.mxu0 0
      %1959 = vmatpush1.bf16.msra.mxu0 0
      %1960 = vmatprep.subr.bf16.mxu0 0
      %1961 = vmatpush1.bf16.msra.mxu0 0
      %1962 = vmatprep.subr.bf16.mxu0 0
      %1963 = vmatpush1.bf16.msra.mxu0 0
      %1964 = vmatprep.subr.bf16.mxu0 0
      %1965 = vmatpush1.bf16.msra.mxu0 0
      %1966 = vmatprep.subr.bf16.mxu0 0
      %1967 = vmatpush1.bf16.msra.mxu0 0
      %1968 = vmatprep.subr.bf16.mxu0 0
      %1969 = vmatpush1.bf16.msra.mxu0 0
      %1970 = vmatprep.subr.bf16.mxu0 0
      %1971 = vmatpush1.bf16.msra.mxu0 0
      %1972 = vmatprep.subr.bf16.mxu0 0
      %1973 = vmatpush1.bf16.msra.mxu0 0
      %1974 = vmatprep.subr.bf16.mxu0 0
      %1975 = vmatpush1.bf16.msra.mxu0 0
      %1976 = vmatprep.subr.bf16.mxu0 0
      %1977 = vmatpush1.bf16.msra.mxu0 0
      %1978 = vmatprep.subr.bf16.mxu0 0
      %1979 = vmatpush1.bf16.msra.mxu0 0
      %1980 = vmatprep.mubr.bf16.mxu0 0
      %1981 = vmatmul.mubr.bf16.gmra.mrb[0].mxu0 %v929
      %v1982 = vpop.f32.mrb[0].mxu0
      %v1983 = vadd.f32 %v1915, %v1982
      %v1984 = vpop.f32.mrb[0].mxu0
      %v1985 = vpop.f32.mrb[0].mxu0
      %v1986 = vadd.f32 %v1918, %v1985
      %v1987 = vpop.f32.mrb[0].mxu0
      %1988 = vmatprep.mubr.bf16.mxu0 0
      %1989 = vmatmul.mubr.bf16.gmra.mrb[0].mxu0 %v932
      %v1990 = vpop.f32.mrb[0].mxu0
      %v1991 = vadd.f32 %v1923, %v1990
      %v1992 = vpop.f32.mrb[0].mxu0
      %v1993 = vpop.f32.mrb[0].mxu0
      %v1994 = vadd.f32 %v1926, %v1993
      %v1995 = vpop.f32.mrb[0].mxu0
      %1996 = vmatprep.mubr.bf16.mxu0 0
      %1997 = vmatmul.mubr.bf16.gmra.mrb[0].mxu0 %v935
      %v1998 = vpop.f32.mrb[0].mxu0
      %v1999 = vadd.f32 %v1931, %v1998
      %v2000 = vpop.f32.mrb[0].mxu0
      %v2001 = vpop.f32.mrb[0].mxu0
      %v2002 = vadd.f32 %v1934, %v2001
      %v2003 = vpop.f32.mrb[0].mxu0
      %2004 = vmatprep.mubr.bf16.mxu0 0
      %2005 = vmatmul.mubr.bf16.gmra.mrb[0].mxu0 %v938
      %v2006 = vpop.f32.mrb[0].mxu0
      %v2007 = vadd.f32 %v1939, %v2006
      %v2008 = vpop.f32.mrb[0].mxu0
      %v2009 = vpop.f32.mrb[0].mxu0
      %v2010 = vadd.f32 %v1942, %v2009
      %v2011 = vpop.f32.mrb[0].mxu0
      %2012 = vdwg.mxu0
      %s2013 = scalar_lea.vmem %s3, 56
      %v2014 = vld [vmem:[%s2013] sm:$0xf]
      %v2016 = vsel %vm655, %v2014, 0
      %2018 = vmatprep.subr.bf16.mxu0 0
      %2019 = vmatpush1.bf16.msra.mxu0 %v2016
      %2020 = vmatprep.subr.bf16.mxu0 0
      %2021 = vmatpush1.bf16.msra.mxu0 0
      %2022 = vmatprep.subr.bf16.mxu0 0
      %2023 = vmatpush1.bf16.msra.mxu0 0
      %2024 = vmatprep.subr.bf16.mxu0 0
      %2025 = vmatpush1.bf16.msra.mxu0 0
      %2026 = vmatprep.subr.bf16.mxu0 0
      %2027 = vmatpush1.bf16.msra.mxu0 0
      %2028 = vmatprep.subr.bf16.mxu0 0
      %2029 = vmatpush1.bf16.msra.mxu0 0
      %2030 = vmatprep.subr.bf16.mxu0 0
      %2031 = vmatpush1.bf16.msra.mxu0 0
      %2032 = vmatprep.subr.bf16.mxu0 0
      %2033 = vmatpush1.bf16.msra.mxu0 0
      %2034 = vmatprep.subr.bf16.mxu0 0
      %2035 = vmatpush1.bf16.msra.mxu0 0
      %2036 = vmatprep.subr.bf16.mxu0 0
      %2037 = vmatpush1.bf16.msra.mxu0 0
      %2038 = vmatprep.subr.bf16.mxu0 0
      %2039 = vmatpush1.bf16.msra.mxu0 0
      %2040 = vmatprep.subr.bf16.mxu0 0
      %2041 = vmatpush1.bf16.msra.mxu0 0
      %2042 = vmatprep.subr.bf16.mxu0 0
      %2043 = vmatpush1.bf16.msra.mxu0 0
      %2044 = vmatprep.subr.bf16.mxu0 0
      %2045 = vmatpush1.bf16.msra.mxu0 0
      %2046 = vmatprep.subr.bf16.mxu0 0
      %2047 = vmatpush1.bf16.msra.mxu0 0
      %2048 = vmatprep.subr.bf16.mxu0 0
      %2049 = vmatpush1.bf16.msra.mxu0 0
      %2050 = vmatprep.mubr.bf16.mxu0 0
      %2051 = vmatmul.mubr.bf16.gmra.mrb[0].mxu0 %v647
      %v2052 = vpop.f32.mrb[0].mxu0
      %v2053 = vadd.f32 0.0, %v2052
      %v2054 = vpop.f32.mrb[0].mxu0
      %v2055 = vpop.f32.mrb[0].mxu0
      %v2056 = vadd.f32 0.0, %v2055
      %v2057 = vpop.f32.mrb[0].mxu0
      %2058 = vmatprep.mubr.bf16.mxu0 0
      %2059 = vmatmul.mubr.bf16.gmra.mrb[0].mxu0 %v650
      %v2060 = vpop.f32.mrb[0].mxu0
      %v2061 = vadd.f32 0.0, %v2060
      %v2062 = vpop.f32.mrb[0].mxu0
      %v2063 = vpop.f32.mrb[0].mxu0
      %v2064 = vadd.f32 0.0, %v2063
      %v2065 = vpop.f32.mrb[0].mxu0
      %2066 = vmatprep.mubr.bf16.mxu0 0
      %2067 = vmatmul.mubr.bf16.gmra.mrb[0].mxu0 %v653
      %v2068 = vpop.f32.mrb[0].mxu0
      %v2069 = vadd.f32 0.0, %v2068
      %v2070 = vpop.f32.mrb[0].mxu0
      %v2071 = vpop.f32.mrb[0].mxu0
      %v2072 = vadd.f32 0.0, %v2071
      %v2073 = vpop.f32.mrb[0].mxu0
      %2074 = vmatprep.mubr.bf16.mxu0 0
      %2075 = vmatmul.mubr.bf16.gmra.mrb[0].mxu0 %v1743
      %v2076 = vpop.f32.mrb[0].mxu0
      %v2077 = vadd.f32 0.0, %v2076
      %v2078 = vpop.f32.mrb[0].mxu0
      %v2079 = vpop.f32.mrb[0].mxu0
      %v2080 = vadd.f32 0.0, %v2079
      %v2081 = vpop.f32.mrb[0].mxu0
      %2082 = vdwg.mxu0
      %v2083 = vadd.f32 %v1983, %v2053
      %v2084 = vadd.f32 %v1986, %v2056
      %v2085 = vadd.f32 %v1991, %v2061
      %v2086 = vadd.f32 %v1994, %v2064
      %v2087 = vadd.f32 %v1999, %v2069
      %v2088 = vadd.f32 %v2002, %v2072
      %v2089 = vadd.f32 %v2007, %v2077
      %v2090 = vadd.f32 %v2010, %v2080
      %v2091 = vrot.slane %v1722, 5
      %v2092 = vrot.slane %v2091, 4
      %v2093 = vrot.slane %v1723, 5
      %v2094 = vsel %vm1073, %v2092, %v2093
      %s2095 = scalar_lea.vmem %s3, 60
      %v2096 = vld [vmem:[%s2095] sm:$0xf]
      %v2097 = vunpack.c.l.b16 %v2094
      %v2098 = vpack.c.b16 %v2097, %v1352
      %v2100 = vsel %vm642, %v2098, 0
      %v2103 = vsel %vm655, %v2096, 0
      %2105 = vmatprep.subr.bf16.mxu0 0
      %2106 = vmatpush1.bf16.msra.mxu0 %v2103
      %2107 = vmatprep.subr.bf16.mxu0 0
      %2108 = vmatpush1.bf16.msra.mxu0 0
      %2109 = vmatprep.subr.bf16.mxu0 0
      %2110 = vmatpush1.bf16.msra.mxu0 0
      %2111 = vmatprep.subr.bf16.mxu0 0
      %2112 = vmatpush1.bf16.msra.mxu0 0
      %2113 = vmatprep.subr.bf16.mxu0 0
      %2114 = vmatpush1.bf16.msra.mxu0 0
      %2115 = vmatprep.subr.bf16.mxu0 0
      %2116 = vmatpush1.bf16.msra.mxu0 0
      %2117 = vmatprep.subr.bf16.mxu0 0
      %2118 = vmatpush1.bf16.msra.mxu0 0
      %2119 = vmatprep.subr.bf16.mxu0 0
      %2120 = vmatpush1.bf16.msra.mxu0 0
      %2121 = vmatprep.subr.bf16.mxu0 0
      %2122 = vmatpush1.bf16.msra.mxu0 0
      %2123 = vmatprep.subr.bf16.mxu0 0
      %2124 = vmatpush1.bf16.msra.mxu0 0
      %2125 = vmatprep.subr.bf16.mxu0 0
      %2126 = vmatpush1.bf16.msra.mxu0 0
      %2127 = vmatprep.subr.bf16.mxu0 0
      %2128 = vmatpush1.bf16.msra.mxu0 0
      %2129 = vmatprep.subr.bf16.mxu0 0
      %2130 = vmatpush1.bf16.msra.mxu0 0
      %2131 = vmatprep.subr.bf16.mxu0 0
      %2132 = vmatpush1.bf16.msra.mxu0 0
      %2133 = vmatprep.subr.bf16.mxu0 0
      %2134 = vmatpush1.bf16.msra.mxu0 0
      %2135 = vmatprep.subr.bf16.mxu0 0
      %2136 = vmatpush1.bf16.msra.mxu0 0
      %2137 = vmatprep.mubr.bf16.mxu0 0
      %2138 = vmatmul.mubr.bf16.gmra.mrb[0].mxu0 %v1124
      %v2139 = vpop.f32.mrb[0].mxu0
      %v2140 = vadd.f32 0.0, %v2139
      %v2141 = vpop.f32.mrb[0].mxu0
      %v2142 = vpop.f32.mrb[0].mxu0
      %v2143 = vadd.f32 0.0, %v2142
      %v2144 = vpop.f32.mrb[0].mxu0
      %2145 = vmatprep.mubr.bf16.mxu0 0
      %2146 = vmatmul.mubr.bf16.gmra.mrb[0].mxu0 %v1127
      %v2147 = vpop.f32.mrb[0].mxu0
      %v2148 = vadd.f32 0.0, %v2147
      %v2149 = vpop.f32.mrb[0].mxu0
      %v2150 = vpop.f32.mrb[0].mxu0
      %v2151 = vadd.f32 0.0, %v2150
      %v2152 = vpop.f32.mrb[0].mxu0
      %2153 = vmatprep.mubr.bf16.mxu0 0
      %2154 = vmatmul.mubr.bf16.gmra.mrb[0].mxu0 %v1130
      %v2155 = vpop.f32.mrb[0].mxu0
      %v2156 = vadd.f32 0.0, %v2155
      %v2157 = vpop.f32.mrb[0].mxu0
      %v2158 = vpop.f32.mrb[0].mxu0
      %v2159 = vadd.f32 0.0, %v2158
      %v2160 = vpop.f32.mrb[0].mxu0
      %2161 = vmatprep.mubr.bf16.mxu0 0
      %2162 = vmatmul.mubr.bf16.gmra.mrb[0].mxu0 %v2100
      %v2163 = vpop.f32.mrb[0].mxu0
      %v2164 = vadd.f32 0.0, %v2163
      %v2165 = vpop.f32.mrb[0].mxu0
      %v2166 = vpop.f32.mrb[0].mxu0
      %v2167 = vadd.f32 0.0, %v2166
      %v2168 = vpop.f32.mrb[0].mxu0
      %2169 = vdwg.mxu0
      %v2170 = vadd.f32 %v2083, %v2140
      %v2171 = vadd.f32 %v2084, %v2143
      %v2172 = vadd.f32 %v2085, %v2148
      %v2173 = vadd.f32 %v2086, %v2151
      %v2174 = vadd.f32 %v2087, %v2156
      %v2175 = vadd.f32 %v2088, %v2159
      %v2176 = vadd.f32 %v2089, %v2164
      %v2177 = vadd.f32 %v2090, %v2167
      %v2178 = vsel %vm1016, %v2170, 0.0
      %v2179 = vsel %vm1016, %v2171, 0.0
      %v2180 = vadd.f32 %v2178, %v2179
      %v2181 = vsel %vm1016, %v2172, 0.0
      %v2182 = vadd.f32 %v2180, %v2181
      %v2183 = vsel %vm1016, %v2173, 0.0
      %v2184 = vadd.f32 %v2182, %v2183
      %v2185 = vsel %vm1016, %v2174, 0.0
      %v2186 = vadd.f32 %v2184, %v2185
      %v2187 = vsel %vm1016, %v2175, 0.0
      %v2188 = vadd.f32 %v2186, %v2187
      %v2189 = vsel %vm1016, %v2176, 0.0
      %v2190 = vadd.f32 %v2188, %v2189
      %v2191 = vsel %vm1016, %v2177, 0.0
      %v2192 = vadd.f32 %v2190, %v2191
      %v2193 = vrot.slane %v2192, 4
      %v2194 = vadd.f32 %v2192, %v2193
      %v2195 = vrot.slane %v2194, 2
      %v2196 = vadd.f32 %v2194, %v2195
      %v2197 = vrot.slane %v2196, 1
      %v2198 = vadd.f32 %v2196, %v2197
      %v2199 = vadd.f32 %v1842, %v2198
      %v2200 = vmul.f32 %v2170, %v2170
      %v2201 = vmul.f32 %v2171, %v2171
      %v2202 = vmul.f32 %v2172, %v2172
      %v2203 = vmul.f32 %v2173, %v2173
      %v2204 = vmul.f32 %v2174, %v2174
      %v2205 = vmul.f32 %v2175, %v2175
      %v2206 = vmul.f32 %v2176, %v2176
      %v2207 = vmul.f32 %v2177, %v2177
      %v2208 = vsel %vm1016, %v2200, 0.0
      %v2209 = vsel %vm1016, %v2201, 0.0
      %v2210 = vadd.f32 %v2208, %v2209
      %v2211 = vsel %vm1016, %v2202, 0.0
      %v2212 = vadd.f32 %v2210, %v2211
      %v2213 = vsel %vm1016, %v2203, 0.0
      %v2214 = vadd.f32 %v2212, %v2213
      %v2215 = vsel %vm1016, %v2204, 0.0
      %v2216 = vadd.f32 %v2214, %v2215
      %v2217 = vsel %vm1016, %v2205, 0.0
      %v2218 = vadd.f32 %v2216, %v2217
      %v2219 = vsel %vm1016, %v2206, 0.0
      %v2220 = vadd.f32 %v2218, %v2219
      %v2221 = vsel %vm1016, %v2207, 0.0
      %v2222 = vadd.f32 %v2220, %v2221
      %v2223 = vrot.slane %v2222, 4
      %v2224 = vadd.f32 %v2222, %v2223
      %v2225 = vrot.slane %v2224, 2
      %v2226 = vadd.f32 %v2224, %v2225
      %v2227 = vrot.slane %v2226, 1
      %v2228 = vadd.f32 %v2226, %v2227
      %v2229 = vadd.f32 %v1872, %v2228
      %v2230 = vld [vmem:[%s430] sm:$0x1]
      %v2231 = vadd.f32 %v2230, %v2199
      %vm2232 = vcmask 24576
      %2233 = vst.msk [vmem:[%s430] sm:$0x1] %vm2232, %v2231
      %v2234 = vld [vmem:[%s433] sm:$0x1]
      %v2235 = vadd.f32 %v2234, %v2229
      %2236 = vst.msk [vmem:[%s433] sm:$0x1] %vm2232, %v2235
      %2245 = vrot.lane.b32.xlu0 %v1437, 4
      %v2246 = vpop.permute.xlu0 %2245
      %2247 = vrot.lane.b32.xlu0 %v1438, 4
      %v2248 = vpop.permute.xlu0 %2247
      %2249 = vrot.lane.b32.xlu0 %v1439, 4
      %v2250 = vpop.permute.xlu0 %2249
      %2251 = vrot.lane.b32.xlu0 %v1440, 4
      %v2252 = vpop.permute.xlu0 %2251
      %2253 = vrot.lane.b32.xlu0 %v1441, 4
      %v2254 = vpop.permute.xlu0 %2253
      %2255 = vrot.lane.b32.xlu0 %v1442, 4
      %v2256 = vpop.permute.xlu0 %2255
      %2257 = vrot.lane.b32.xlu0 %v1443, 4
      %v2258 = vpop.permute.xlu0 %2257
      %2259 = vrot.lane.b32.xlu0 %v1444, 4
      %v2260 = vpop.permute.xlu0 %2259
      %v2269 = vsel %vm1016, %v1008, %v2246
      %v2270 = vsel %vm1016, %v1009, %v2248
      %v2271 = vsel %vm1016, %v1010, %v2250
      %v2272 = vsel %vm1016, %v1011, %v2252
      %v2273 = vsel %vm1016, %v1012, %v2254
      %v2274 = vsel %vm1016, %v1013, %v2256
      %v2275 = vsel %vm1016, %v1014, %v2258
      %v2276 = vsel %vm1016, %v1015, %v2260
      %2285 = vrot.lane.b32.xlu0 %v2170, 4
      %v2286 = vpop.permute.xlu0 %2285
      %2287 = vrot.lane.b32.xlu0 %v2171, 4
      %v2288 = vpop.permute.xlu0 %2287
      %2289 = vrot.lane.b32.xlu0 %v2172, 4
      %v2290 = vpop.permute.xlu0 %2289
      %2291 = vrot.lane.b32.xlu0 %v2173, 4
      %v2292 = vpop.permute.xlu0 %2291
      %2293 = vrot.lane.b32.xlu0 %v2174, 4
      %v2294 = vpop.permute.xlu0 %2293
      %2295 = vrot.lane.b32.xlu0 %v2175, 4
      %v2296 = vpop.permute.xlu0 %2295
      %2297 = vrot.lane.b32.xlu0 %v2176, 4
      %v2298 = vpop.permute.xlu0 %2297
      %2299 = vrot.lane.b32.xlu0 %v2177, 4
      %v2300 = vpop.permute.xlu0 %2299
      %v2309 = vsel %vm1016, %v1813, %v2286
      %v2310 = vsel %vm1016, %v1814, %v2288
      %v2311 = vsel %vm1016, %v1815, %v2290
      %v2312 = vsel %vm1016, %v1816, %v2292
      %v2313 = vsel %vm1016, %v1817, %v2294
      %v2314 = vsel %vm1016, %v1818, %v2296
      %v2315 = vsel %vm1016, %v1819, %v2298
      %v2316 = vsel %vm1016, %v1820, %v2300
      %2317 = vst.msk [vmem:[%s426] sm:$0xff] %vm642, %v2269
      %2318 = vst.msk [vmem:[%s426 + $0x8] sm:$0xff] %vm642, %v2309
      %2319 = vst.msk [vmem:[%s426 + $0x10] sm:$0xff] %vm642, %v2270
      %2320 = vst.msk [vmem:[%s426 + $0x18] sm:$0xff] %vm642, %v2310
      %2321 = vst.msk [vmem:[%s426 + $0x20] sm:$0xff] %vm642, %v2271
      %2322 = vst.msk [vmem:[%s426 + $0x28] sm:$0xff] %vm642, %v2311
      %2323 = vst.msk [vmem:[%s426 + $0x30] sm:$0xff] %vm642, %v2272
      %2324 = vst.msk [vmem:[%s426 + $0x38] sm:$0xff] %vm642, %v2312
      %2325 = vst.msk [vmem:[%s426 + $0x40] sm:$0xff] %vm642, %v2273
      %2326 = vst.msk [vmem:[%s426 + $0x48] sm:$0xff] %vm642, %v2313
      %2327 = vst.msk [vmem:[%s426 + $0x50] sm:$0xff] %vm642, %v2274
      %2328 = vst.msk [vmem:[%s426 + $0x58] sm:$0xff] %vm642, %v2314
      %2329 = vst.msk [vmem:[%s426 + $0x60] sm:$0xff] %vm642, %v2275
      %2330 = vst.msk [vmem:[%s426 + $0x68] sm:$0xff] %vm642, %v2315
      %2331 = vst.msk [vmem:[%s426 + $0x70] sm:$0xff] %vm642, %v2276
      %2332 = vst.msk [vmem:[%s426 + $0x78] sm:$0xff] %vm642, %v2316
      %s2333 = smul.u32 8, %s23
      %p2334 = scmp.lt.s32.totalorder %s22, 1
      %s2335 = scalar_select %p2334, %s22, 1
      %p2336 = scmp.lt.s32.totalorder %s2333, 7
      %s2337 = scalar_select %p2336, %s2333, 7
      %s2338 = smul.addr %s2337, 2
      %s2339 = smul.addr %s2335, 16
      %s2340 = sadd.s32 %s2338, %s2339
      %s2341 = smul.addr %s2340, 8
      %s2342 = scalar_lea.vmem %s4, %s2341
      %p2343 = scmp.lt.s32.totalorder %s22, 1
      %s2344 = scalar_select %p2343, %s22, 1
      %s2345 = scalar_lea.vmem %s5, %s2344
      %p2346 = scmp.lt.s32.totalorder %s22, 1
      %s2347 = scalar_select %p2346, %s22, 1
      %s2348 = scalar_lea.vmem %s6, %s2347
      // Predicated region
      $region41: #{_lambda_.4} parent=35 // pred_check
        %p2349 = pneg %p163
      $region42: #{_lambda_.4} parent=35 // pred_check_branch
        %2351 = sbr.rel (%p2349) target = $region44
      $region43: #{_lambda_.4} parent=35 // pred_region
        %s2352 = smul.u32 8, %s23
      $region44: #{_lambda_.4} parent=35 // pred_fallthru
        _
      // Predicated region
      $region45: #{_lambda_.4} parent=35 // pred_check
        %p2353 = pneg %p189
      $region46: #{_lambda_.4} parent=35 // pred_check_branch
        %2355 = sbr.rel (%p2353) target = $region48
      $region47: #{_lambda_.4} parent=35 // pred_region
        _
      $region48: #{_lambda_.4} parent=35 // pred_fallthru
        _
      // Predicated region
      $region49: #{_lambda_.4} parent=35 // pred_check
        %p2356 = pneg %p215
      $region50: #{_lambda_.4} parent=35 // pred_check_branch
        %2358 = sbr.rel (%p2356) target = $region52
      $region51: #{_lambda_.4} parent=35 // pred_region
        _
      $region52: #{_lambda_.4} parent=35 // pred_fallthru
        _
    $region36: #{_lambda_.4} parent=5 // pred_fallthru
      _
    %p2359 = scmp.le.s32.totalorder 2, %s13
    // Predicated region
    $region53: #{_lambda_.4} parent=5 // pred_check
      %p2360 = pneg %p2359
    $region54: #{_lambda_.4} parent=5 // pred_check_branch
      %2362 = sbr.rel (%p2360) target = $region56
    $region55: #{_lambda_.4} parent=5 // pred_region
      %s2363 = ssub.s32 %s13, 2
      // Predicated region
      $region57: #{_lambda_.4} parent=55 // pred_check
        %p2364 = pneg %p169
      $region58: #{_lambda_.4} parent=55 // pred_check_branch
        %2366 = sbr.rel (%p2364) target = $region60
      $region59: #{_lambda_.4} parent=55 // pred_region
        %s2367 = smul.u32 8, %s25
        %p2368 = scmp.lt.s32.totalorder %s24, 1
        %s2369 = scalar_select %p2368, %s24, 1
        %p2370 = scmp.lt.s32.totalorder %s2367, 7
        %s2371 = scalar_select %p2370, %s2367, 7
        %s2372 = smul.addr %s2371, 2
        %s2373 = smul.addr %s2369, 16
        %s2374 = sadd.s32 %s2372, %s2373
        %s2375 = smul.addr %s2374, 8
        %s2376 = scalar_lea.vmem %s4, %s2375
      $region60: #{_lambda_.4} parent=55 // pred_fallthru
        _
      // Predicated region
      $region61: #{_lambda_.4} parent=55 // pred_check
        %p2377 = pneg %p195
      $region62: #{_lambda_.4} parent=55 // pred_check_branch
        %2379 = sbr.rel (%p2377) target = $region64
      $region63: #{_lambda_.4} parent=55 // pred_region
        %p2380 = scmp.lt.s32.totalorder %s24, 1
        %s2381 = scalar_select %p2380, %s24, 1
        %s2382 = scalar_lea.vmem %s5, %s2381
      $region64: #{_lambda_.4} parent=55 // pred_fallthru
        _
      // Predicated region
      $region65: #{_lambda_.4} parent=55 // pred_check
        %p2383 = pneg %p221
      $region66: #{_lambda_.4} parent=55 // pred_check_branch
        %2385 = sbr.rel (%p2383) target = $region68
      $region67: #{_lambda_.4} parent=55 // pred_region
        %p2386 = scmp.lt.s32.totalorder %s24, 1
        %s2387 = scalar_select %p2386, %s24, 1
        %s2388 = scalar_lea.vmem %s6, %s2387
      $region68: #{_lambda_.4} parent=55 // pred_fallthru
        _
    $region56: #{_lambda_.4} parent=5 // pred_fallthru
      _
  $region6: #{_lambda_.4} parent=0 // loop_footer
    %s17 = sadd.s32 1, %s13
  $region7: #{_lambda_.4} parent=0 // loop_footer_branch
    %12 = sbr.rel target = $region3
  $region8: #{_lambda_.4} parent=0 // loop_exit
    _

</llo_original>
